<compile_context>
chip_gen: v6e
topology: v6e:2x2x1
jax: 0.10.0
libtpu: 0.0.40
codegen_flags: <defaults>
</compile_context>

<pallas_src>
import functools

import jax
import jax.numpy as jnp
from jax.experimental import pallas as pl
from jax.experimental.pallas import tpu as pltpu


# ----------------------------------------------------------------------------
# Kernel helpers
# ----------------------------------------------------------------------------

def _layernorm(v, g, b, eps=1e-5):
    mu = jnp.mean(v, axis=-1, keepdims=True)
    var = jnp.mean((v - mu) ** 2, axis=-1, keepdims=True)
    return (v - mu) * jax.lax.rsqrt(var + eps) * g + b


# ----------------------------------------------------------------------------
# Fused ViT kernel: one grid step per encoder layer
# ----------------------------------------------------------------------------

def _vit_kernel(patches_ref, bias_ref, patch_w_ref,
                ln1_g, ln1_b, wqkv, bqkv, wo, bo,
                ln2_g, ln2_b, w1, b1, w2, b2,
                fln_g, fln_b, hw1, hb1, hw2, hb2,
                out_ref, x_ref,
                *, num_heads, batch, seq, seq_pad):
    f32 = jnp.float32
    bf16 = jnp.bfloat16
    l = pl.program_id(0)
    D = patch_w_ref.shape[1]
    Dh = D // num_heads
    scale = 1.0 / (Dh ** 0.5)

    # ---- patch embedding (first grid step only) ----------------------------
    # CLS token, positional embedding and conv bias are pre-folded into the
    # per-token bias; it is broadcast across the batch here (once).
    @pl.when(l == 0)
    def _():
        emb = jnp.dot(patches_ref[...], patch_w_ref[...],
                      preferred_element_type=f32)                # [B*Tp, D] f32
        x_ref[...] = emb + jnp.tile(bias_ref[...], (batch, 1))

    x = x_ref[...]                                               # [B*Tp, D] f32

    # Padded key columns (token index >= seq) must not receive attention.
    key_mask = jax.lax.broadcasted_iota(jnp.int32, (seq_pad, seq_pad), 1) < seq

    # ---------------- multi-head self attention (pre-norm) ------------------
    xn = _layernorm(x, ln1_g[0], ln1_b[0])                       # f32
    qkv = jnp.dot(xn.astype(bf16), wqkv[0],
                  preferred_element_type=f32) + bqkv[0]          # [B*Tp, 3D] f32

    ctx_heads = []
    for h in range(num_heads):                                   # tiny static loop
        c = h * Dh
        qh = qkv[:, c:c + Dh].reshape(batch, seq_pad, Dh).astype(bf16)
        kh = qkv[:, D + c:D + c + Dh].reshape(batch, seq_pad, Dh).astype(bf16)
        vh = qkv[:, 2 * D + c:2 * D + c + Dh].reshape(batch, seq_pad, Dh).astype(bf16)

        # batched over the batch axis; Dh contracted directly (no kh.T)
        s = jnp.einsum('bqd,bkd->bqk', qh, kh,
                       preferred_element_type=f32) * scale       # [B, Tp, Tp] f32
        s = jnp.where(key_mask, s, -1e30)                        # mask in f32

        # manual softmax; divide routed to EUP via approx reciprocal
        m = jnp.max(s, axis=-1, keepdims=True)
        e = jnp.exp(s - m)
        p = e * pl.reciprocal(jnp.sum(e, axis=-1, keepdims=True), approx=True)

        ctx_h = jnp.einsum('bqk,bkd->bqd', p.astype(bf16), vh,
                           preferred_element_type=f32)           # [B, Tp, Dh]
        ctx_heads.append(ctx_h.reshape(batch * seq_pad, Dh))

    ctx = jnp.concatenate(ctx_heads, axis=-1)                    # [B*Tp, D] lane-dense

    attn = jnp.dot(ctx.astype(bf16), wo[0],
                   preferred_element_type=f32) + bo[0]
    x = x + attn

    # ---------------- MLP ----------------------------------------------------
    xn2 = _layernorm(x, ln2_g[0], ln2_b[0])
    hid = jnp.dot(xn2.astype(bf16), w1[0],
                  preferred_element_type=f32) + b1[0]
    hid = jax.nn.gelu(hid, approximate=True)   # TODO(synk): torch uses exact erf
    mlp = jnp.dot(hid.astype(bf16), w2[0],
                  preferred_element_type=f32) + b2[0]
    x = x + mlp

    x_ref[...] = x

    # ---- final LayerNorm on CLS tokens + MLP head (last grid step) ---------
    @pl.when(l == pl.num_programs(0) - 1)
    def _():
        # CLS row of each batch block, gathered with static row slices.
        cls = jnp.concatenate(
            [x[b * seq_pad:b * seq_pad + 1, :] for b in range(batch)], axis=0)
        cls = _layernorm(cls, fln_g[...], fln_b[...])
        h1 = jnp.dot(cls.astype(bf16), hw1[...],
                     preferred_element_type=f32) + hb1[...]
        h1 = jnp.maximum(h1, 0.0)                                # nn.ReLU
        logits = jnp.dot(h1.astype(bf16), hw2[...],
                         preferred_element_type=f32) + hb2[...]
        out_ref[...] = logits.astype(out_ref.dtype)


# ----------------------------------------------------------------------------
# Wrapper
# ----------------------------------------------------------------------------

def vit_forward(params, x, *, patch_size, num_heads):
    """x: [B, C, H, W] (NCHW like the PyTorch module). Returns logits [B, classes]."""
    B, C, Himg, Wimg = x.shape
    P = patch_size
    Hp, Wp = Himg // P, Wimg // P
    N = Hp * Wp
    T = N + 1                          # tokens incl. CLS
    Tp = ((T + 7) // 8) * 8            # sublane-aligned padded token count
    CPP = C * P * P
    D = params["patch_w"].shape[1]
    depth = params["wqkv"].shape[0]
    Hd = params["w1"].shape[2]
    num_classes = params["head_w2"].shape[1]

    # --- patch extraction, matching Conv2d(k=P, stride=P) weight layout -----
    patches = (x.reshape(B, C, Hp, P, Wp, P)
                 .transpose(0, 2, 4, 1, 3, 5)
                 .reshape(B, N, CPP))
    # token row 0 is the CLS slot (zero patch), rows >= T are padding (zero)
    patches_pad = jnp.zeros((B, Tp, CPP), jnp.float32).at[:, 1:T, :].set(patches)
    patches_flat = patches_pad.reshape(B * Tp, CPP).astype(jnp.bfloat16)

    # per-token additive embedding bias (NOT tiled over batch):
    #   row 0      : cls + pos[0]         (no conv bias)
    #   rows 1..N  : pos[i] + patch_b
    #   pad rows   : 0   (pad rows stay zero; they are masked out as keys)
    bias_tok = jnp.zeros((Tp, D), jnp.float32)
    bias_tok = bias_tok.at[0].set(params["cls"][0] + params["pos"][0])
    bias_tok = bias_tok.at[1:T].set(params["pos"][1:T] + params["patch_b"][0])

    kernel = functools.partial(
        _vit_kernel, num_heads=num_heads, batch=B, seq=T, seq_pad=Tp)

    resident = lambda *_: (0, 0)                 # stays in VMEM across layers
    per_layer_3d = lambda l: (l, 0, 0)           # streamed per layer

    grid_spec = pltpu.PrefetchScalarGridSpec(
        num_scalar_prefetch=0,
        grid=(depth,),
        in_specs=[
            pl.BlockSpec((B * Tp, CPP), resident),          # patches
            pl.BlockSpec((Tp, D), resident),                # per-token bias
            pl.BlockSpec((CPP, D), resident),               # patch embed weight
            pl.BlockSpec((1, 1, D), per_layer_3d),          # ln1_g
            pl.BlockSpec((1, 1, D), per_layer_3d),          # ln1_b
            pl.BlockSpec((1, D, 3 * D), per_layer_3d),      # wqkv
            pl.BlockSpec((1, 1, 3 * D), per_layer_3d),      # bqkv
            pl.BlockSpec((1, D, D), per_layer_3d),          # wo
            pl.BlockSpec((1, 1, D), per_layer_3d),          # bo
            pl.BlockSpec((1, 1, D), per_layer_3d),          # ln2_g
            pl.BlockSpec((1, 1, D), per_layer_3d),          # ln2_b
            pl.BlockSpec((1, D, Hd), per_layer_3d),         # w1
            pl.BlockSpec((1, 1, Hd), per_layer_3d),         # b1
            pl.BlockSpec((1, Hd, D), per_layer_3d),         # w2
            pl.BlockSpec((1, 1, D), per_layer_3d),          # b2
            pl.BlockSpec((1, D), resident),                 # final ln g
            pl.BlockSpec((1, D), resident),                 # final ln b
            pl.BlockSpec((D, D), resident),                 # head w1
            pl.BlockSpec((1, D), resident),                 # head b1
            pl.BlockSpec((D, num_classes), resident),       # head w2
            pl.BlockSpec((1, num_classes), resident),       # head b2
        ],
        out_specs=pl.BlockSpec((B, num_classes), resident),
        scratch_shapes=[pltpu.VMEM((B * Tp, D), jnp.float32)],   # token activations
    )

    return pl.pallas_call(
        kernel,
        out_shape=jax.ShapeDtypeStruct((B, num_classes), jnp.float32),
        grid_spec=grid_spec,
        compiler_params=pltpu.CompilerParams(
            dimension_semantics=("arbitrary",),     # layer axis carries state
            vmem_limit_bytes=32 * 1024 * 1024,      # explicit (safe on v5e/v6e/v7x)
        ),
    )(patches_flat, bias_tok,
      params["patch_w"],
      params["ln1_g"], params["ln1_b"],
      params["wqkv"], params["bqkv"], params["wo"], params["bo"],
      params["ln2_g"], params["ln2_b"],
      params["w1"], params["b1"], params["w2"], params["b2"],
      params["final_ln_g"], params["final_ln_b"],
      params["head_w1"], params["head_b1"],
      params["head_w2"], params["head_b2"])


# ----------------------------------------------------------------------------
# Parameter initialization (deterministic, synthetic)
# ----------------------------------------------------------------------------

def init_params(key, *, num_channels, patch_size, embed_dim, num_heads,
                depth, num_classes, num_patches, mlp_ratio=4):
    assert embed_dim % num_heads == 0
    D = embed_dim
    Hd = mlp_ratio * D
    C, P = num_channels, patch_size
    T = num_patches + 1

    keys = jax.random.split(key, 8 + depth)
    bf16 = jnp.bfloat16

    def nrm(k, shape, scale=0.02):
        return scale * jax.random.normal(k, shape, dtype=jnp.float32)

    params = {
        # patch embedding (Conv2d(C, D, P, stride=P) flattened to a matmul)
        "patch_w": nrm(keys[0], (C * P * P, D)).astype(bf16),
        "patch_b": jnp.zeros((1, D), jnp.float32),
        "cls": nrm(keys[1], (1, D)),
        "pos": nrm(keys[2], (T, D)),
        # final encoder LayerNorm
        "final_ln_g": jnp.ones((1, D), jnp.float32),
        "final_ln_b": jnp.zeros((1, D), jnp.float32),
        # mlp_head = Linear(D, D) -> ReLU -> Linear(D, num_classes)
        "head_w1": nrm(keys[3], (D, D)).astype(bf16),
        "head_b1": jnp.zeros((1, D), jnp.float32),
        "head_w2": nrm(keys[4], (D, num_classes)).astype(bf16),
        "head_b2": jnp.zeros((1, num_classes), jnp.float32),
    }

    blk_keys = [jax.random.split(keys[8 + i], 4) for i in range(depth)]
    params.update({
        # per-layer weights stacked on a leading layer axis (fused QKV / MLP)
        "ln1_g": jnp.ones((depth, 1, D), jnp.float32),
        "ln1_b": jnp.zeros((depth, 1, D), jnp.float32),
        "wqkv": jnp.stack([nrm(blk_keys[i][0], (D, 3 * D))
                           for i in range(depth)]).astype(bf16),
        "bqkv": jnp.zeros((depth, 1, 3 * D), jnp.float32),
        "wo": jnp.stack([nrm(blk_keys[i][1], (D, D))
                         for i in range(depth)]).astype(bf16),
        "bo": jnp.zeros((depth, 1, D), jnp.float32),
        "ln2_g": jnp.ones((depth, 1, D), jnp.float32),
        "ln2_b": jnp.zeros((depth, 1, D), jnp.float32),
        "w1": jnp.stack([nrm(blk_keys[i][2], (D, Hd))
                         for i in range(depth)]).astype(bf16),
        "b1": jnp.zeros((depth, 1, Hd), jnp.float32),
        "w2": jnp.stack([nrm(blk_keys[i][3], (Hd, D))
                         for i in range(depth)]).astype(bf16),
        "b2": jnp.zeros((depth, 1, D), jnp.float32),
    })
    return params


# ----------------------------------------------------------------------------
# Main
# ----------------------------------------------------------------------------

if __name__ == "__main__":
    # Small, module-consistent shapes: grayscale quadratic image, patch_size=16.
    # embed_dim = 128 keeps every matmul lane-dense.
    B = 2
    NUM_CHANNELS = 1
    IMAGE_SIZE = 32
    PATCH_SIZE = 16
    EMBED_DIM = 128
    NUM_HEADS = 2
    DEPTH = 2
    NUM_CLASSES = 6
    NUM_PATCHES = (IMAGE_SIZE // PATCH_SIZE) ** 2   # 4 -> 5 tokens with CLS

    root = jax.random.PRNGKey(0)
    kparam, kinput = jax.random.split(root)

    params = init_params(
        kparam,
        num_channels=NUM_CHANNELS,
        patch_size=PATCH_SIZE,
        embed_dim=EMBED_DIM,
        num_heads=NUM_HEADS,
        depth=DEPTH,
        num_classes=NUM_CLASSES,
        num_patches=NUM_PATCHES,
    )

    x = jax.random.normal(kinput, (B, NUM_CHANNELS, IMAGE_SIZE, IMAGE_SIZE),
                          dtype=jnp.float32)

    logits = vit_forward(params, x, patch_size=PATCH_SIZE, num_heads=NUM_HEADS)
    logits = jax.block_until_ready(logits)

    assert logits.shape == (B, NUM_CLASSES), logits.shape
    assert bool(jnp.all(jnp.isfinite(logits)))
    # NOTE: the PyTorch forward returns logits (softmax is defined but unused).
    print("KERNEL_OK")
</pallas_src>

<mosaic_0001>
module attributes {stable_mosaic.version = 11 : i64} {
  func.func @_vit_kernel(%arg0: i32, %arg1: memref<16x256xbf16, #tpu.memory_space<vmem>>, %arg2: memref<8x128xf32, #tpu.memory_space<vmem>>, %arg3: memref<256x128xbf16, #tpu.memory_space<vmem>>, %arg4: memref<1x1x128xf32, #tpu.memory_space<vmem>>, %arg5: memref<1x1x128xf32, #tpu.memory_space<vmem>>, %arg6: memref<1x128x384xbf16, #tpu.memory_space<vmem>>, %arg7: memref<1x1x384xf32, #tpu.memory_space<vmem>>, %arg8: memref<1x128x128xbf16, #tpu.memory_space<vmem>>, %arg9: memref<1x1x128xf32, #tpu.memory_space<vmem>>, %arg10: memref<1x1x128xf32, #tpu.memory_space<vmem>>, %arg11: memref<1x1x128xf32, #tpu.memory_space<vmem>>, %arg12: memref<1x128x512xbf16, #tpu.memory_space<vmem>>, %arg13: memref<1x1x512xf32, #tpu.memory_space<vmem>>, %arg14: memref<1x512x128xbf16, #tpu.memory_space<vmem>>, %arg15: memref<1x1x128xf32, #tpu.memory_space<vmem>>, %arg16: memref<1x128xf32, #tpu.memory_space<vmem>>, %arg17: memref<1x128xf32, #tpu.memory_space<vmem>>, %arg18: memref<128x128xbf16, #tpu.memory_space<vmem>>, %arg19: memref<1x128xf32, #tpu.memory_space<vmem>>, %arg20: memref<128x6xbf16, #tpu.memory_space<vmem>>, %arg21: memref<1x6xf32, #tpu.memory_space<vmem>>, %arg22: memref<2x6xf32, #tpu.memory_space<vmem>>, %arg23: memref<16x128xf32, #tpu.memory_space<vmem>>) attributes {dimension_semantics = [#tpu.dimension_semantics<arbitrary>], iteration_bounds = array<i64: 2>, scalar_prefetch = 0 : i64, scratch_operands = 1 : i64, tpu.core_type = #tpu.core_type<tc>, window_params = [{pipeline_mode = #tpu.pipeline_mode<synchronous>, transform_indices = @transform_0, window_bounds = array<i64: 16, 256>}, {pipeline_mode = #tpu.pipeline_mode<synchronous>, transform_indices = @transform_1, window_bounds = array<i64: 8, 128>}, {pipeline_mode = #tpu.pipeline_mode<synchronous>, transform_indices = @transform_2, window_bounds = array<i64: 256, 128>}, {transform_indices = @transform_3, window_bounds = array<i64: 1, 1, 128>}, {transform_indices = @transform_4, window_bounds = array<i64: 1, 1, 128>}, {transform_indices = @transform_5, window_bounds = array<i64: 1, 128, 384>}, {transform_indices = @transform_6, window_bounds = array<i64: 1, 1, 384>}, {transform_indices = @transform_7, window_bounds = array<i64: 1, 128, 128>}, {transform_indices = @transform_8, window_bounds = array<i64: 1, 1, 128>}, {transform_indices = @transform_9, window_bounds = array<i64: 1, 1, 128>}, {transform_indices = @transform_10, window_bounds = array<i64: 1, 1, 128>}, {transform_indices = @transform_11, window_bounds = array<i64: 1, 128, 512>}, {transform_indices = @transform_12, window_bounds = array<i64: 1, 1, 512>}, {transform_indices = @transform_13, window_bounds = array<i64: 1, 512, 128>}, {transform_indices = @transform_14, window_bounds = array<i64: 1, 1, 128>}, {pipeline_mode = #tpu.pipeline_mode<synchronous>, transform_indices = @transform_15, window_bounds = array<i64: 1, 128>}, {pipeline_mode = #tpu.pipeline_mode<synchronous>, transform_indices = @transform_16, window_bounds = array<i64: 1, 128>}, {pipeline_mode = #tpu.pipeline_mode<synchronous>, transform_indices = @transform_17, window_bounds = array<i64: 128, 128>}, {pipeline_mode = #tpu.pipeline_mode<synchronous>, transform_indices = @transform_18, window_bounds = array<i64: 1, 128>}, {pipeline_mode = #tpu.pipeline_mode<synchronous>, transform_indices = @transform_19, window_bounds = array<i64: 128, 6>}, {pipeline_mode = #tpu.pipeline_mode<synchronous>, transform_indices = @transform_20, window_bounds = array<i64: 1, 6>}, {pipeline_mode = #tpu.pipeline_mode<synchronous>, transform_indices = @transform_21, window_bounds = array<i64: 2, 6>}]} {
    %c0_i32 = arith.constant 0 : i32
    %0 = arith.cmpi eq, %arg0, %c0_i32 : i32
    %1 = arith.extui %0 : i1 to i32
    %c0_i32_0 = arith.constant 0 : i32
    %2 = arith.cmpi ne, %1, %c0_i32_0 : i32
    scf.if %2 {
      %c0_70 = arith.constant 0 : index
      %c0_71 = arith.constant 0 : index
      %169 = vector.load %arg1[%c0_70, %c0_71] : memref<16x256xbf16, #tpu.memory_space<vmem>>, vector<16x256xbf16>
      %c0_72 = arith.constant 0 : index
      %c0_73 = arith.constant 0 : index
      %170 = vector.load %arg3[%c0_72, %c0_73] : memref<256x128xbf16, #tpu.memory_space<vmem>>, vector<256x128xbf16>
      %cst_74 = arith.constant dense<0.000000e+00> : vector<16x128xf32>
      %171 = tpu.matmul %169, %170, %cst_74 {dimension_numbers = #tpu.dot_dimension_numbers<[1], [0], [0], [1], [0, 0, 1, 1], [], []>} : vector<16x256xbf16>, vector<256x128xbf16>, vector<16x128xf32> -> vector<16x128xf32>
      %c0_75 = arith.constant 0 : index
      %c0_76 = arith.constant 0 : index
      %172 = vector.load %arg2[%c0_75, %c0_76] : memref<8x128xf32, #tpu.memory_space<vmem>>, vector<8x128xf32>
      %173 = tpu.concatenate %172, %172 in 0 : vector<8x128xf32>, vector<8x128xf32> -> vector<16x128xf32>
      %174 = arith.addf %171, %173 : vector<16x128xf32>
      %c0_77 = arith.constant 0 : index
      %c0_78 = arith.constant 0 : index
      %175 = vector.load %arg23[%c0_77, %c0_78] : memref<16x128xf32, #tpu.memory_space<vmem>>, vector<16x128xf32>
      tpu.vector_store %arg23[%c0_77, %c0_78], %174 {strides = array<i32>} : memref<16x128xf32, #tpu.memory_space<vmem>>, vector<16x128xf32>,
    } else {
    }
    %c0 = arith.constant 0 : index
    %c0_1 = arith.constant 0 : index
    %3 = vector.load %arg23[%c0, %c0_1] : memref<16x128xf32, #tpu.memory_space<vmem>>, vector<16x128xf32>
    %4 = tpu.iota {dimensions = array<i32: 1>} : vector<8x8xi32>
    %c5_i32 = arith.constant 5 : i32
    %5 = vector.broadcast %c5_i32 : i32 to vector<8x8xi32>
    %6 = arith.cmpi slt, %4, %5 : vector<8x8xi32>
    %c0_2 = arith.constant 0 : index
    %c0_3 = arith.constant 0 : index
    %c0_4 = arith.constant 0 : index
    %7 = vector.load %arg4[%c0_2, %c0_3, %c0_4] : memref<1x1x128xf32, #tpu.memory_space<vmem>>, vector<1x1x128xf32>
    %8 = vector.shape_cast %7 : vector<1x1x128xf32> to vector<1x128xf32>
    %c0_5 = arith.constant 0 : index
    %c0_6 = arith.constant 0 : index
    %c0_7 = arith.constant 0 : index
    %9 = vector.load %arg5[%c0_5, %c0_6, %c0_7] : memref<1x1x128xf32, #tpu.memory_space<vmem>>, vector<1x1x128xf32>
    %10 = vector.shape_cast %9 : vector<1x1x128xf32> to vector<1x128xf32>
    %cst = arith.constant dense<0.000000e+00> : vector<16xf32>
    %11 = vector.multi_reduction <add>, %3, %cst [1] : vector<16x128xf32> to vector<16xf32>
    %12 = vector.shape_cast %11 : vector<16xf32> to vector<16x1xf32>
    %cst_8 = arith.constant 1.280000e+02 : f32
    %13 = vector.broadcast %cst_8 : f32 to vector<16x1xf32>
    %14 = arith.divf %12, %13 : vector<16x1xf32>
    %15 = vector.broadcast %14 : vector<16x1xf32> to vector<16x128xf32>
    %16 = arith.subf %3, %15 : vector<16x128xf32>
    %17 = arith.mulf %16, %16 : vector<16x128xf32>
    %cst_9 = arith.constant dense<0.000000e+00> : vector<16xf32>
    %18 = vector.multi_reduction <add>, %17, %cst_9 [1] : vector<16x128xf32> to vector<16xf32>
    %19 = vector.shape_cast %18 : vector<16xf32> to vector<16x1xf32>
    %cst_10 = arith.constant 1.280000e+02 : f32
    %20 = vector.broadcast %cst_10 : f32 to vector<16x1xf32>
    %21 = arith.divf %19, %20 : vector<16x1xf32>
    %22 = vector.broadcast %14 : vector<16x1xf32> to vector<16x128xf32>
    %23 = arith.subf %3, %22 : vector<16x128xf32>
    %cst_11 = arith.constant 9.99999974E-6 : f32
    %24 = vector.broadcast %cst_11 : f32 to vector<16x1xf32>
    %25 = arith.addf %21, %24 : vector<16x1xf32>
    %26 = math.rsqrt %25 : vector<16x1xf32>
    %27 = vector.broadcast %26 : vector<16x1xf32> to vector<16x128xf32>
    %28 = arith.mulf %23, %27 : vector<16x128xf32>
    %29 = vector.broadcast %8 : vector<1x128xf32> to vector<16x128xf32>
    %30 = arith.mulf %28, %29 : vector<16x128xf32>
    %31 = vector.broadcast %10 : vector<1x128xf32> to vector<16x128xf32>
    %32 = arith.addf %30, %31 : vector<16x128xf32>
    %33 = arith.truncf %32 : vector<16x128xf32> to vector<16x128xbf16>
    %c0_12 = arith.constant 0 : index
    %c0_13 = arith.constant 0 : index
    %c0_14 = arith.constant 0 : index
    %34 = vector.load %arg6[%c0_12, %c0_13, %c0_14] : memref<1x128x384xbf16, #tpu.memory_space<vmem>>, vector<1x128x384xbf16>
    %35 = vector.shape_cast %34 : vector<1x128x384xbf16> to vector<128x384xbf16>
    %cst_15 = arith.constant dense<0.000000e+00> : vector<16x384xf32>
    %36 = tpu.matmul %33, %35, %cst_15 {dimension_numbers = #tpu.dot_dimension_numbers<[1], [0], [0], [1], [0, 0, 1, 1], [], []>} : vector<16x128xbf16>, vector<128x384xbf16>, vector<16x384xf32> -> vector<16x384xf32>
    %c0_16 = arith.constant 0 : index
    %c0_17 = arith.constant 0 : index
    %c0_18 = arith.constant 0 : index
    %37 = vector.load %arg7[%c0_16, %c0_17, %c0_18] : memref<1x1x384xf32, #tpu.memory_space<vmem>>, vector<1x1x384xf32>
    %38 = vector.shape_cast %37 : vector<1x1x384xf32> to vector<1x384xf32>
    %39 = vector.broadcast %38 : vector<1x384xf32> to vector<16x384xf32>
    %40 = arith.addf %36, %39 : vector<16x384xf32>
    %41 = vector.extract_strided_slice %40 {offsets = [0, 0], sizes = [16, 64], strides = [1, 1]} : vector<16x384xf32> to vector<16x64xf32>
    %42 = vector.shape_cast %41 : vector<16x64xf32> to vector<2x8x64xf32>
    %43 = arith.truncf %42 : vector<2x8x64xf32> to vector<2x8x64xbf16>
    %44 = vector.extract_strided_slice %40 {offsets = [0, 128], sizes = [16, 64], strides = [1, 1]} : vector<16x384xf32> to vector<16x64xf32>
    %45 = vector.shape_cast %44 : vector<16x64xf32> to vector<2x8x64xf32>
    %46 = arith.truncf %45 : vector<2x8x64xf32> to vector<2x8x64xbf16>
    %47 = vector.extract_strided_slice %40 {offsets = [0, 256], sizes = [16, 64], strides = [1, 1]} : vector<16x384xf32> to vector<16x64xf32>
    %48 = vector.shape_cast %47 : vector<16x64xf32> to vector<2x8x64xf32>
    %49 = arith.truncf %48 : vector<2x8x64xf32> to vector<2x8x64xbf16>
    "tpu.trace_start"() <{level = 10 : i32, message = "bqd,bkd->bqk"}> : () -> ()
    %cst_19 = arith.constant dense<0.000000e+00> : vector<2x8x8xf32>
    %50 = tpu.matmul %43, %46, %cst_19 {dimension_numbers = #tpu.dot_dimension_numbers<[2], [2], [1], [1], [0, 0, 0, 1, 1, 1], [0], [0]>} : vector<2x8x64xbf16>, vector<2x8x64xbf16>, vector<2x8x8xf32> -> vector<2x8x8xf32>
    "tpu.trace_stop"() : () -> ()
    %cst_20 = arith.constant 1.250000e-01 : f32
    %51 = vector.broadcast %cst_20 : f32 to vector<2x8x8xf32>
    %52 = arith.mulf %50, %51 : vector<2x8x8xf32>
    %cst_21 = arith.constant -1.000000e+30 : f32
    %53 = vector.shape_cast %6 : vector<8x8xi1> to vector<1x8x8xi1>
    %54 = vector.broadcast %53 : vector<1x8x8xi1> to vector<2x8x8xi1>
    %55 = vector.broadcast %cst_21 : f32 to vector<2x8x8xf32>
    %56 = arith.select %54, %52, %55 : vector<2x8x8xi1>, vector<2x8x8xf32>
    %cst_22 = arith.constant dense<0xFF800000> : vector<2x8xf32>
    %57 = vector.multi_reduction <maximumf>, %56, %cst_22 [2] : vector<2x8x8xf32> to vector<2x8xf32>
    %58 = vector.shape_cast %57 : vector<2x8xf32> to vector<2x8x1xf32>
    %59 = vector.broadcast %58 : vector<2x8x1xf32> to vector<2x8x8xf32>
    %60 = arith.subf %56, %59 : vector<2x8x8xf32>
    %61 = math.exp %60 : vector<2x8x8xf32>
    %cst_23 = arith.constant dense<0.000000e+00> : vector<2x8xf32>
    %62 = vector.multi_reduction <add>, %61, %cst_23 [2] : vector<2x8x8xf32> to vector<2x8xf32>
    %63 = vector.shape_cast %62 : vector<2x8xf32> to vector<2x8x1xf32>
    %64 = tpu.reciprocal %63 {approx = true} : vector<2x8x1xf32> -> vector<2x8x1xf32>
    %65 = vector.broadcast %64 : vector<2x8x1xf32> to vector<2x8x8xf32>
    %66 = arith.mulf %61, %65 : vector<2x8x8xf32>
    %67 = arith.truncf %66 : vector<2x8x8xf32> to vector<2x8x8xbf16>
    "tpu.trace_start"() <{level = 10 : i32, message = "bqk,bkd->bqd"}> : () -> ()
    %cst_24 = arith.constant dense<0.000000e+00> : vector<2x8x64xf32>
    %68 = tpu.matmul %67, %49, %cst_24 {dimension_numbers = #tpu.dot_dimension_numbers<[2], [1], [1], [2], [0, 0, 0, 1, 1, 2], [0], [0]>} : vector<2x8x8xbf16>, vector<2x8x64xbf16>, vector<2x8x64xf32> -> vector<2x8x64xf32>
    "tpu.trace_stop"() : () -> ()
    %69 = vector.shape_cast %68 : vector<2x8x64xf32> to vector<16x64xf32>
    %70 = vector.extract_strided_slice %40 {offsets = [0, 64], sizes = [16, 64], strides = [1, 1]} : vector<16x384xf32> to vector<16x64xf32>
    %71 = vector.shape_cast %70 : vector<16x64xf32> to vector<2x8x64xf32>
    %72 = arith.truncf %71 : vector<2x8x64xf32> to vector<2x8x64xbf16>
    %73 = vector.extract_strided_slice %40 {offsets = [0, 192], sizes = [16, 64], strides = [1, 1]} : vector<16x384xf32> to vector<16x64xf32>
    %74 = vector.shape_cast %73 : vector<16x64xf32> to vector<2x8x64xf32>
    %75 = arith.truncf %74 : vector<2x8x64xf32> to vector<2x8x64xbf16>
    %76 = vector.extract_strided_slice %40 {offsets = [0, 320], sizes = [16, 64], strides = [1, 1]} : vector<16x384xf32> to vector<16x64xf32>
    %77 = vector.shape_cast %76 : vector<16x64xf32> to vector<2x8x64xf32>
    %78 = arith.truncf %77 : vector<2x8x64xf32> to vector<2x8x64xbf16>
    "tpu.trace_start"() <{level = 10 : i32, message = "bqd,bkd->bqk"}> : () -> ()
    %cst_25 = arith.constant dense<0.000000e+00> : vector<2x8x8xf32>
    %79 = tpu.matmul %72, %75, %cst_25 {dimension_numbers = #tpu.dot_dimension_numbers<[2], [2], [1], [1], [0, 0, 0, 1, 1, 1], [0], [0]>} : vector<2x8x64xbf16>, vector<2x8x64xbf16>, vector<2x8x8xf32> -> vector<2x8x8xf32>
    "tpu.trace_stop"() : () -> ()
    %cst_26 = arith.constant 1.250000e-01 : f32
    %80 = vector.broadcast %cst_26 : f32 to vector<2x8x8xf32>
    %81 = arith.mulf %79, %80 : vector<2x8x8xf32>
    %cst_27 = arith.constant -1.000000e+30 : f32
    %82 = vector.shape_cast %6 : vector<8x8xi1> to vector<1x8x8xi1>
    %83 = vector.broadcast %82 : vector<1x8x8xi1> to vector<2x8x8xi1>
    %84 = vector.broadcast %cst_27 : f32 to vector<2x8x8xf32>
    %85 = arith.select %83, %81, %84 : vector<2x8x8xi1>, vector<2x8x8xf32>
    %cst_28 = arith.constant dense<0xFF800000> : vector<2x8xf32>
    %86 = vector.multi_reduction <maximumf>, %85, %cst_28 [2] : vector<2x8x8xf32> to vector<2x8xf32>
    %87 = vector.shape_cast %86 : vector<2x8xf32> to vector<2x8x1xf32>
    %88 = vector.broadcast %87 : vector<2x8x1xf32> to vector<2x8x8xf32>
    %89 = arith.subf %85, %88 : vector<2x8x8xf32>
    %90 = math.exp %89 : vector<2x8x8xf32>
    %cst_29 = arith.constant dense<0.000000e+00> : vector<2x8xf32>
    %91 = vector.multi_reduction <add>, %90, %cst_29 [2] : vector<2x8x8xf32> to vector<2x8xf32>
    %92 = vector.shape_cast %91 : vector<2x8xf32> to vector<2x8x1xf32>
    %93 = tpu.reciprocal %92 {approx = true} : vector<2x8x1xf32> -> vector<2x8x1xf32>
    %94 = vector.broadcast %93 : vector<2x8x1xf32> to vector<2x8x8xf32>
    %95 = arith.mulf %90, %94 : vector<2x8x8xf32>
    %96 = arith.truncf %95 : vector<2x8x8xf32> to vector<2x8x8xbf16>
    "tpu.trace_start"() <{level = 10 : i32, message = "bqk,bkd->bqd"}> : () -> ()
    %cst_30 = arith.constant dense<0.000000e+00> : vector<2x8x64xf32>
    %97 = tpu.matmul %96, %78, %cst_30 {dimension_numbers = #tpu.dot_dimension_numbers<[2], [1], [1], [2], [0, 0, 0, 1, 1, 2], [0], [0]>} : vector<2x8x8xbf16>, vector<2x8x64xbf16>, vector<2x8x64xf32> -> vector<2x8x64xf32>
    "tpu.trace_stop"() : () -> ()
    %98 = vector.shape_cast %97 : vector<2x8x64xf32> to vector<16x64xf32>
    %99 = tpu.concatenate %69, %98 in 1 : vector<16x64xf32>, vector<16x64xf32> -> vector<16x128xf32>
    %100 = arith.truncf %99 : vector<16x128xf32> to vector<16x128xbf16>
    %c0_31 = arith.constant 0 : index
    %c0_32 = arith.constant 0 : index
    %c0_33 = arith.constant 0 : index
    %101 = vector.load %arg8[%c0_31, %c0_32, %c0_33] : memref<1x128x128xbf16, #tpu.memory_space<vmem>>, vector<1x128x128xbf16>
    %102 = vector.shape_cast %101 : vector<1x128x128xbf16> to vector<128x128xbf16>
    %cst_34 = arith.constant dense<0.000000e+00> : vector<16x128xf32>
    %103 = tpu.matmul %100, %102, %cst_34 {dimension_numbers = #tpu.dot_dimension_numbers<[1], [0], [0], [1], [0, 0, 1, 1], [], []>} : vector<16x128xbf16>, vector<128x128xbf16>, vector<16x128xf32> -> vector<16x128xf32>
    %c0_35 = arith.constant 0 : index
    %c0_36 = arith.constant 0 : index
    %c0_37 = arith.constant 0 : index
    %104 = vector.load %arg9[%c0_35, %c0_36, %c0_37] : memref<1x1x128xf32, #tpu.memory_space<vmem>>, vector<1x1x128xf32>
    %105 = vector.shape_cast %104 : vector<1x1x128xf32> to vector<1x128xf32>
    %106 = vector.broadcast %105 : vector<1x128xf32> to vector<16x128xf32>
    %107 = arith.addf %103, %106 : vector<16x128xf32>
    %108 = arith.addf %3, %107 : vector<16x128xf32>
    %c0_38 = arith.constant 0 : index
    %c0_39 = arith.constant 0 : index
    %c0_40 = arith.constant 0 : index
    %109 = vector.load %arg10[%c0_38, %c0_39, %c0_40] : memref<1x1x128xf32, #tpu.memory_space<vmem>>, vector<1x1x128xf32>
    %110 = vector.shape_cast %109 : vector<1x1x128xf32> to vector<1x128xf32>
    %c0_41 = arith.constant 0 : index
    %c0_42 = arith.constant 0 : index
    %c0_43 = arith.constant 0 : index
    %111 = vector.load %arg11[%c0_41, %c0_42, %c0_43] : memref<1x1x128xf32, #tpu.memory_space<vmem>>, vector<1x1x128xf32>
    %112 = vector.shape_cast %111 : vector<1x1x128xf32> to vector<1x128xf32>
    %cst_44 = arith.constant dense<0.000000e+00> : vector<16xf32>
    %113 = vector.multi_reduction <add>, %108, %cst_44 [1] : vector<16x128xf32> to vector<16xf32>
    %114 = vector.shape_cast %113 : vector<16xf32> to vector<16x1xf32>
    %cst_45 = arith.constant 1.280000e+02 : f32
    %115 = vector.broadcast %cst_45 : f32 to vector<16x1xf32>
    %116 = arith.divf %114, %115 : vector<16x1xf32>
    %117 = vector.broadcast %116 : vector<16x1xf32> to vector<16x128xf32>
    %118 = arith.subf %108, %117 : vector<16x128xf32>
    %119 = arith.mulf %118, %118 : vector<16x128xf32>
    %cst_46 = arith.constant dense<0.000000e+00> : vector<16xf32>
    %120 = vector.multi_reduction <add>, %119, %cst_46 [1] : vector<16x128xf32> to vector<16xf32>
    %121 = vector.shape_cast %120 : vector<16xf32> to vector<16x1xf32>
    %cst_47 = arith.constant 1.280000e+02 : f32
    %122 = vector.broadcast %cst_47 : f32 to vector<16x1xf32>
    %123 = arith.divf %121, %122 : vector<16x1xf32>
    %124 = vector.broadcast %116 : vector<16x1xf32> to vector<16x128xf32>
    %125 = arith.subf %108, %124 : vector<16x128xf32>
    %cst_48 = arith.constant 9.99999974E-6 : f32
    %126 = vector.broadcast %cst_48 : f32 to vector<16x1xf32>
    %127 = arith.addf %123, %126 : vector<16x1xf32>
    %128 = math.rsqrt %127 : vector<16x1xf32>
    %129 = vector.broadcast %128 : vector<16x1xf32> to vector<16x128xf32>
    %130 = arith.mulf %125, %129 : vector<16x128xf32>
    %131 = vector.broadcast %110 : vector<1x128xf32> to vector<16x128xf32>
    %132 = arith.mulf %130, %131 : vector<16x128xf32>
    %133 = vector.broadcast %112 : vector<1x128xf32> to vector<16x128xf32>
    %134 = arith.addf %132, %133 : vector<16x128xf32>
    %135 = arith.truncf %134 : vector<16x128xf32> to vector<16x128xbf16>
    %c0_49 = arith.constant 0 : index
    %c0_50 = arith.constant 0 : index
    %c0_51 = arith.constant 0 : index
    %136 = vector.load %arg12[%c0_49, %c0_50, %c0_51] : memref<1x128x512xbf16, #tpu.memory_space<vmem>>, vector<1x128x512xbf16>
    %137 = vector.shape_cast %136 : vector<1x128x512xbf16> to vector<128x512xbf16>
    %cst_52 = arith.constant dense<0.000000e+00> : vector<16x512xf32>
    %138 = tpu.matmul %135, %137, %cst_52 {dimension_numbers = #tpu.dot_dimension_numbers<[1], [0], [0], [1], [0, 0, 1, 1], [], []>} : vector<16x128xbf16>, vector<128x512xbf16>, vector<16x512xf32> -> vector<16x512xf32>
    %c0_53 = arith.constant 0 : index
    %c0_54 = arith.constant 0 : index
    %c0_55 = arith.constant 0 : index
    %139 = vector.load %arg13[%c0_53, %c0_54, %c0_55] : memref<1x1x512xf32, #tpu.memory_space<vmem>>, vector<1x1x512xf32>
    %140 = vector.shape_cast %139 : vector<1x1x512xf32> to vector<1x512xf32>
    %141 = vector.broadcast %140 : vector<1x512xf32> to vector<16x512xf32>
    %142 = arith.addf %138, %141 : vector<16x512xf32>
    %143 = arith.mulf %142, %142 : vector<16x512xf32>
    %144 = arith.mulf %142, %143 : vector<16x512xf32>
    %cst_56 = arith.constant 4.471500e-02 : f32
    %145 = vector.broadcast %cst_56 : f32 to vector<16x512xf32>
    %146 = arith.mulf %145, %144 : vector<16x512xf32>
    %147 = arith.addf %142, %146 : vector<16x512xf32>
    %cst_57 = arith.constant 0.797884583 : f32
    %148 = vector.broadcast %cst_57 : f32 to vector<16x512xf32>
    %149 = arith.mulf %148, %147 : vector<16x512xf32>
    %150 = math.tanh %149 : vector<16x512xf32>
    %cst_58 = arith.constant 1.000000e+00 : f32
    %151 = vector.broadcast %cst_58 : f32 to vector<16x512xf32>
    %152 = arith.addf %151, %150 : vector<16x512xf32>
    %cst_59 = arith.constant 5.000000e-01 : f32
    %153 = vector.broadcast %cst_59 : f32 to vector<16x512xf32>
    %154 = arith.mulf %153, %152 : vector<16x512xf32>
    %155 = arith.mulf %142, %154 : vector<16x512xf32>
    %156 = arith.truncf %155 : vector<16x512xf32> to vector<16x512xbf16>
    %c0_60 = arith.constant 0 : index
    %c0_61 = arith.constant 0 : index
    %c0_62 = arith.constant 0 : index
    %157 = vector.load %arg14[%c0_60, %c0_61, %c0_62] : memref<1x512x128xbf16, #tpu.memory_space<vmem>>, vector<1x512x128xbf16>
    %158 = vector.shape_cast %157 : vector<1x512x128xbf16> to vector<512x128xbf16>
    %cst_63 = arith.constant dense<0.000000e+00> : vector<16x128xf32>
    %159 = tpu.matmul %156, %158, %cst_63 {dimension_numbers = #tpu.dot_dimension_numbers<[1], [0], [0], [1], [0, 0, 1, 1], [], []>} : vector<16x512xbf16>, vector<512x128xbf16>, vector<16x128xf32> -> vector<16x128xf32>
    %c0_64 = arith.constant 0 : index
    %c0_65 = arith.constant 0 : index
    %c0_66 = arith.constant 0 : index
    %160 = vector.load %arg15[%c0_64, %c0_65, %c0_66] : memref<1x1x128xf32, #tpu.memory_space<vmem>>, vector<1x1x128xf32>
    %161 = vector.shape_cast %160 : vector<1x1x128xf32> to vector<1x128xf32>
    %162 = vector.broadcast %161 : vector<1x128xf32> to vector<16x128xf32>
    %163 = arith.addf %159, %162 : vector<16x128xf32>
    %164 = arith.addf %108, %163 : vector<16x128xf32>
    %c0_67 = arith.constant 0 : index
    %c0_68 = arith.constant 0 : index
    %165 = vector.load %arg23[%c0_67, %c0_68] : memref<16x128xf32, #tpu.memory_space<vmem>>, vector<16x128xf32>
    tpu.vector_store %arg23[%c0_67, %c0_68], %164 {strides = array<i32>} : memref<16x128xf32, #tpu.memory_space<vmem>>, vector<16x128xf32>,
    %c1_i32 = arith.constant 1 : i32
    %166 = arith.cmpi eq, %arg0, %c1_i32 : i32
    %167 = arith.extui %166 : i1 to i32
    %c0_i32_69 = arith.constant 0 : i32
    %168 = arith.cmpi ne, %167, %c0_i32_69 : i32
    scf.if %168 {
      %169 = vector.extract_strided_slice %164 {offsets = [0, 0], sizes = [1, 128], strides = [1, 1]} : vector<16x128xf32> to vector<1x128xf32>
      %170 = vector.extract_strided_slice %164 {offsets = [8, 0], sizes = [1, 128], strides = [1, 1]} : vector<16x128xf32> to vector<1x128xf32>
      %171 = tpu.concatenate %169, %170 in 0 : vector<1x128xf32>, vector<1x128xf32> -> vector<2x128xf32>
      %c0_70 = arith.constant 0 : index
      %c0_71 = arith.constant 0 : index
      %172 = vector.load %arg16[%c0_70, %c0_71] : memref<1x128xf32, #tpu.memory_space<vmem>>, vector<1x128xf32>
      %c0_72 = arith.constant 0 : index
      %c0_73 = arith.constant 0 : index
      %173 = vector.load %arg17[%c0_72, %c0_73] : memref<1x128xf32, #tpu.memory_space<vmem>>, vector<1x128xf32>
      %cst_74 = arith.constant dense<0.000000e+00> : vector<2xf32>
      %174 = vector.multi_reduction <add>, %171, %cst_74 [1] : vector<2x128xf32> to vector<2xf32>
      %175 = vector.shape_cast %174 : vector<2xf32> to vector<2x1xf32>
      %cst_75 = arith.constant 1.280000e+02 : f32
      %176 = vector.broadcast %cst_75 : f32 to vector<2x1xf32>
      %177 = arith.divf %175, %176 : vector<2x1xf32>
      %178 = vector.broadcast %177 : vector<2x1xf32> to vector<2x128xf32>
      %179 = arith.subf %171, %178 : vector<2x128xf32>
      %180 = arith.mulf %179, %179 : vector<2x128xf32>
      %cst_76 = arith.constant dense<0.000000e+00> : vector<2xf32>
      %181 = vector.multi_reduction <add>, %180, %cst_76 [1] : vector<2x128xf32> to vector<2xf32>
      %182 = vector.shape_cast %181 : vector<2xf32> to vector<2x1xf32>
      %cst_77 = arith.constant 1.280000e+02 : f32
      %183 = vector.broadcast %cst_77 : f32 to vector<2x1xf32>
      %184 = arith.divf %182, %183 : vector<2x1xf32>
      %185 = vector.broadcast %177 : vector<2x1xf32> to vector<2x128xf32>
      %186 = arith.subf %171, %185 : vector<2x128xf32>
      %cst_78 = arith.constant 9.99999974E-6 : f32
      %187 = vector.broadcast %cst_78 : f32 to vector<2x1xf32>
      %188 = arith.addf %184, %187 : vector<2x1xf32>
      %189 = math.rsqrt %188 : vector<2x1xf32>
      %190 = vector.broadcast %189 : vector<2x1xf32> to vector<2x128xf32>
      %191 = arith.mulf %186, %190 : vector<2x128xf32>
      %192 = vector.broadcast %172 : vector<1x128xf32> to vector<2x128xf32>
      %193 = arith.mulf %191, %192 : vector<2x128xf32>
      %194 = vector.broadcast %173 : vector<1x128xf32> to vector<2x128xf32>
      %195 = arith.addf %193, %194 : vector<2x128xf32>
      %196 = arith.truncf %195 : vector<2x128xf32> to vector<2x128xbf16>
      %c0_79 = arith.constant 0 : index
      %c0_80 = arith.constant 0 : index
      %197 = vector.load %arg18[%c0_79, %c0_80] : memref<128x128xbf16, #tpu.memory_space<vmem>>, vector<128x128xbf16>
      %cst_81 = arith.constant dense<0.000000e+00> : vector<2x128xf32>
      %198 = tpu.matmul %196, %197, %cst_81 {dimension_numbers = #tpu.dot_dimension_numbers<[1], [0], [0], [1], [0, 0, 1, 1], [], []>} : vector<2x128xbf16>, vector<128x128xbf16>, vector<2x128xf32> -> vector<2x128xf32>
      %c0_82 = arith.constant 0 : index
      %c0_83 = arith.constant 0 : index
      %199 = vector.load %arg19[%c0_82, %c0_83] : memref<1x128xf32, #tpu.memory_space<vmem>>, vector<1x128xf32>
      %200 = vector.broadcast %199 : vector<1x128xf32> to vector<2x128xf32>
      %201 = arith.addf %198, %200 : vector<2x128xf32>
      %cst_84 = arith.constant 0.000000e+00 : f32
      %202 = vector.broadcast %cst_84 : f32 to vector<2x128xf32>
      %203 = arith.maximumf %201, %202 : vector<2x128xf32>
      %204 = arith.truncf %203 : vector<2x128xf32> to vector<2x128xbf16>
      %c0_85 = arith.constant 0 : index
      %c0_86 = arith.constant 0 : index
      %205 = vector.load %arg20[%c0_85, %c0_86] : memref<128x6xbf16, #tpu.memory_space<vmem>>, vector<128x6xbf16>
      %cst_87 = arith.constant dense<0.000000e+00> : vector<2x6xf32>
      %206 = tpu.matmul %204, %205, %cst_87 {dimension_numbers = #tpu.dot_dimension_numbers<[1], [0], [0], [1], [0, 0, 1, 1], [], []>} : vector<2x128xbf16>, vector<128x6xbf16>, vector<2x6xf32> -> vector<2x6xf32>
      %c0_88 = arith.constant 0 : index
      %c0_89 = arith.constant 0 : index
      %207 = vector.load %arg21[%c0_88, %c0_89] : memref<1x6xf32, #tpu.memory_space<vmem>>, vector<1x6xf32>
      %208 = vector.broadcast %207 : vector<1x6xf32> to vector<2x6xf32>
      %209 = arith.addf %206, %208 : vector<2x6xf32>
      %c0_90 = arith.constant 0 : index
      %c0_91 = arith.constant 0 : index
      %210 = vector.load %arg22[%c0_90, %c0_91] : memref<2x6xf32, #tpu.memory_space<vmem>>, vector<2x6xf32>
      tpu.vector_store %arg22[%c0_90, %c0_91], %209 {strides = array<i32>} : memref<2x6xf32, #tpu.memory_space<vmem>>, vector<2x6xf32>,
    } else {
    }
    return
  }
  func.func @transform_0(%arg0: i32) -> (i32, i32) {
    %c0_i32 = arith.constant 0 : i32
    %c0_i32_0 = arith.constant 0 : i32
    %c0_i32_1 = arith.constant 0 : i32
    return %c0_i32, %c0_i32_0 : i32, i32
  }
  func.func @transform_1(%arg0: i32) -> (i32, i32) {
    %c0_i32 = arith.constant 0 : i32
    %c0_i32_0 = arith.constant 0 : i32
    %c0_i32_1 = arith.constant 0 : i32
    return %c0_i32, %c0_i32_0 : i32, i32
  }
  func.func @transform_2(%arg0: i32) -> (i32, i32) {
    %c0_i32 = arith.constant 0 : i32
    %c0_i32_0 = arith.constant 0 : i32
    %c0_i32_1 = arith.constant 0 : i32
    return %c0_i32, %c0_i32_0 : i32, i32
  }
  func.func @transform_3(%arg0: i32) -> (i32, i32, i32) {
    %c0_i32 = arith.constant 0 : i32
    %c0_i32_0 = arith.constant 0 : i32
    %c0_i32_1 = arith.constant 0 : i32
    return %arg0, %c0_i32, %c0_i32_0 : i32, i32, i32
  }
  func.func @transform_4(%arg0: i32) -> (i32, i32, i32) {
    %c0_i32 = arith.constant 0 : i32
    %c0_i32_0 = arith.constant 0 : i32
    %c0_i32_1 = arith.constant 0 : i32
    return %arg0, %c0_i32, %c0_i32_0 : i32, i32, i32
  }
  func.func @transform_5(%arg0: i32) -> (i32, i32, i32) {
    %c0_i32 = arith.constant 0 : i32
    %c0_i32_0 = arith.constant 0 : i32
    %c0_i32_1 = arith.constant 0 : i32
    return %arg0, %c0_i32, %c0_i32_0 : i32, i32, i32
  }
  func.func @transform_6(%arg0: i32) -> (i32, i32, i32) {
    %c0_i32 = arith.constant 0 : i32
    %c0_i32_0 = arith.constant 0 : i32
    %c0_i32_1 = arith.constant 0 : i32
    return %arg0, %c0_i32, %c0_i32_0 : i32, i32, i32
  }
  func.func @transform_7(%arg0: i32) -> (i32, i32, i32) {
    %c0_i32 = arith.constant 0 : i32
    %c0_i32_0 = arith.constant 0 : i32
    %c0_i32_1 = arith.constant 0 : i32
    return %arg0, %c0_i32, %c0_i32_0 : i32, i32, i32
  }
  func.func @transform_8(%arg0: i32) -> (i32, i32, i32) {
    %c0_i32 = arith.constant 0 : i32
    %c0_i32_0 = arith.constant 0 : i32
    %c0_i32_1 = arith.constant 0 : i32
    return %arg0, %c0_i32, %c0_i32_0 : i32, i32, i32
  }
  func.func @transform_9(%arg0: i32) -> (i32, i32, i32) {
    %c0_i32 = arith.constant 0 : i32
    %c0_i32_0 = arith.constant 0 : i32
    %c0_i32_1 = arith.constant 0 : i32
    return %arg0, %c0_i32, %c0_i32_0 : i32, i32, i32
  }
  func.func @transform_10(%arg0: i32) -> (i32, i32, i32) {
    %c0_i32 = arith.constant 0 : i32
    %c0_i32_0 = arith.constant 0 : i32
    %c0_i32_1 = arith.constant 0 : i32
    return %arg0, %c0_i32, %c0_i32_0 : i32, i32, i32
  }
  func.func @transform_11(%arg0: i32) -> (i32, i32, i32) {
    %c0_i32 = arith.constant 0 : i32
    %c0_i32_0 = arith.constant 0 : i32
    %c0_i32_1 = arith.constant 0 : i32
    return %arg0, %c0_i32, %c0_i32_0 : i32, i32, i32
  }
  func.func @transform_12(%arg0: i32) -> (i32, i32, i32) {
    %c0_i32 = arith.constant 0 : i32
    %c0_i32_0 = arith.constant 0 : i32
    %c0_i32_1 = arith.constant 0 : i32
    return %arg0, %c0_i32, %c0_i32_0 : i32, i32, i32
  }
  func.func @transform_13(%arg0: i32) -> (i32, i32, i32) {
    %c0_i32 = arith.constant 0 : i32
    %c0_i32_0 = arith.constant 0 : i32
    %c0_i32_1 = arith.constant 0 : i32
    return %arg0, %c0_i32, %c0_i32_0 : i32, i32, i32
  }
  func.func @transform_14(%arg0: i32) -> (i32, i32, i32) {
    %c0_i32 = arith.constant 0 : i32
    %c0_i32_0 = arith.constant 0 : i32
    %c0_i32_1 = arith.constant 0 : i32
    return %arg0, %c0_i32, %c0_i32_0 : i32, i32, i32
  }
  func.func @transform_15(%arg0: i32) -> (i32, i32) {
    %c0_i32 = arith.constant 0 : i32
    %c0_i32_0 = arith.constant 0 : i32
    %c0_i32_1 = arith.constant 0 : i32
    return %c0_i32, %c0_i32_0 : i32, i32
  }
  func.func @transform_16(%arg0: i32) -> (i32, i32) {
    %c0_i32 = arith.constant 0 : i32
    %c0_i32_0 = arith.constant 0 : i32
    %c0_i32_1 = arith.constant 0 : i32
    return %c0_i32, %c0_i32_0 : i32, i32
  }
  func.func @transform_17(%arg0: i32) -> (i32, i32) {
    %c0_i32 = arith.constant 0 : i32
    %c0_i32_0 = arith.constant 0 : i32
    %c0_i32_1 = arith.constant 0 : i32
    return %c0_i32, %c0_i32_0 : i32, i32
  }
  func.func @transform_18(%arg0: i32) -> (i32, i32) {
    %c0_i32 = arith.constant 0 : i32
    %c0_i32_0 = arith.constant 0 : i32
    %c0_i32_1 = arith.constant 0 : i32
    return %c0_i32, %c0_i32_0 : i32, i32
  }
  func.func @transform_19(%arg0: i32) -> (i32, i32) {
    %c0_i32 = arith.constant 0 : i32
    %c0_i32_0 = arith.constant 0 : i32
    %c0_i32_1 = arith.constant 0 : i32
    return %c0_i32, %c0_i32_0 : i32, i32
  }
  func.func @transform_20(%arg0: i32) -> (i32, i32) {
    %c0_i32 = arith.constant 0 : i32
    %c0_i32_0 = arith.constant 0 : i32
    %c0_i32_1 = arith.constant 0 : i32
    return %c0_i32, %c0_i32_0 : i32, i32
  }
  func.func @transform_21(%arg0: i32) -> (i32, i32) {
    %c0_i32 = arith.constant 0 : i32
    %c0_i32_0 = arith.constant 0 : i32
    %c0_i32_1 = arith.constant 0 : i32
    return %c0_i32, %c0_i32_0 : i32, i32
  }
}

</mosaic_0001>

<llo_original>
// kernel: tpu_custom_call.1
$region0: #{tpu_custom_call.1}
  #allocation0 [shape = 'u32[]', space=smem, size = 0x4, offset = 0x4, fixed_abs, tag = 'smem constant byte address 0x4 - core index']
  #allocation1 [shape = 'u32[144,128]{1,0:T(1,128)}', space=vmem, size = 0x12000, scoped, tag = 'internal scratch']
  #allocation2 [shape = 'f32[16,128]{1,0:T(8,128)}', space=vmem, size = 0x2000, scoped, tag = 'scratch operand']
  %s0 = inlined_call_operand.vmem [shape: bf16[16,256], index: 0, kind: input, shape index: {}]
  %s1 = inlined_call_operand.vmem [shape: f32[8,128], index: 1, kind: input, shape index: {}]
  %s2 = inlined_call_operand.hbm [shape: bf16[256,128], index: 2, kind: input, shape index: {}]
  %s3 = inlined_call_operand.hbm [shape: f32[2,1,128], index: 3, kind: input, shape index: {}]
  %s4 = inlined_call_operand.hbm [shape: f32[2,1,128], index: 4, kind: input, shape index: {}]
  %s5 = inlined_call_operand.hbm [shape: bf16[2,128,384], index: 5, kind: input, shape index: {}]
  %s6 = inlined_call_operand.hbm [shape: f32[2,1,384], index: 6, kind: input, shape index: {}]
  %s7 = inlined_call_operand.hbm [shape: bf16[2,128,128], index: 7, kind: input, shape index: {}]
  %s8 = inlined_call_operand.hbm [shape: f32[2,1,128], index: 8, kind: input, shape index: {}]
  %s9 = inlined_call_operand.hbm [shape: f32[2,1,128], index: 9, kind: input, shape index: {}]
  %s10 = inlined_call_operand.hbm [shape: f32[2,1,128], index: 10, kind: input, shape index: {}]
  %s11 = inlined_call_operand.hbm [shape: bf16[2,128,512], index: 11, kind: input, shape index: {}]
  %s12 = inlined_call_operand.vmem [shape: f32[2,1,512], index: 12, kind: input, shape index: {}]
  %s13 = inlined_call_operand.hbm [shape: bf16[2,512,128], index: 13, kind: input, shape index: {}]
  %s14 = inlined_call_operand.hbm [shape: f32[2,1,128], index: 14, kind: input, shape index: {}]
  %s15 = inlined_call_operand.hbm [shape: f32[1,128], index: 15, kind: input, shape index: {}]
  %s16 = inlined_call_operand.hbm [shape: f32[1,128], index: 16, kind: input, shape index: {}]
  %s17 = inlined_call_operand.vmem [shape: bf16[128,128], index: 17, kind: input, shape index: {}]
  %s18 = inlined_call_operand.hbm [shape: f32[1,128], index: 18, kind: input, shape index: {}]
  %s19 = inlined_call_operand.vmem [shape: bf16[128,6], index: 19, kind: input, shape index: {}]
  %s20 = inlined_call_operand.vmem [shape: f32[1,6], index: 20, kind: input, shape index: {}]
  %s21 = inlined_call_operand.hbm [shape: f32[2,6], index: 21, kind: output, shape index: {}]
  %s22 = sld [smem:[#allocation0]]
  $region185: #{tpu_custom_call.1} parent=0
    _
  %s24 = ssub.s32 1, %s22
  %s25 = scalar_select 0, %s24, %s22
  $region1: #{tpu_custom_call.1} parent=0
    #allocation3 [shape = 'u8[65536]{0}', space=vmem, size = 0x10000, scoped, tag = 'input window, operand 2, single buffered']
    #allocation4 [shape = 's32[2]{0}', space=sflag, size = 0x8, scoped, tag = 'scoped memory for tpu_custom_call.1']
    #allocation5 [shape = 's32[2]{0}', space=sflag, size = 0x8, scoped, tag = 'scoped memory for tpu_custom_call.1']
    #allocation6 [shape = 'u8[1024]{0}', space=vmem, size = 0x400, scoped, tag = 'input window, operand 3']
    #allocation7 [shape = 's32[2]{0}', space=sflag, size = 0x8, scoped, tag = 'scoped memory for tpu_custom_call.1']
    #allocation8 [shape = 'u8[1024]{0}', space=vmem, size = 0x400, scoped, tag = 'input window, operand 4']
    #allocation9 [shape = 'u8[196608]{0}', space=vmem, size = 0x30000, scoped, tag = 'input window, operand 5']
    #allocation10 [shape = 's32[2]{0}', space=sflag, size = 0x8, scoped, tag = 'scoped memory for tpu_custom_call.1']
    #allocation11 [shape = 'u8[3072]{0}', space=vmem, size = 0xc00, scoped, tag = 'input window, operand 6']
    #allocation12 [shape = 'u8[65536]{0}', space=vmem, size = 0x10000, scoped, tag = 'input window, operand 7']
    #allocation13 [shape = 's32[2]{0}', space=sflag, size = 0x8, scoped, tag = 'scoped memory for tpu_custom_call.1']
    #allocation14 [shape = 'u8[1024]{0}', space=vmem, size = 0x400, scoped, tag = 'input window, operand 8']
    #allocation15 [shape = 'u8[1024]{0}', space=vmem, size = 0x400, scoped, tag = 'input window, operand 9']
    #allocation16 [shape = 's32[2]{0}', space=sflag, size = 0x8, scoped, tag = 'scoped memory for tpu_custom_call.1']
    #allocation17 [shape = 'u8[1024]{0}', space=vmem, size = 0x400, scoped, tag = 'input window, operand 10']
    #allocation18 [shape = 'u8[262144]{0}', space=vmem, size = 0x40000, scoped, tag = 'input window, operand 11']
    #allocation19 [shape = 's32[2]{0}', space=sflag, size = 0x8, scoped, tag = 'scoped memory for tpu_custom_call.1']
    #allocation20 [shape = 'u8[262144]{0}', space=vmem, size = 0x40000, scoped, tag = 'input window, operand 13']
    #allocation21 [shape = 'u8[1024]{0}', space=vmem, size = 0x400, scoped, tag = 'input window, operand 14']
    #allocation22 [shape = 's32[2]{0}', space=sflag, size = 0x8, scoped, tag = 'scoped memory for tpu_custom_call.1']
    #allocation23 [shape = 'u8[512]{0}', space=vmem, size = 0x400, scoped, tag = 'input window, operand 15, single buffered']
    #allocation24 [shape = 'u8[512]{0}', space=vmem, size = 0x400, scoped, tag = 'input window, operand 16, single buffered']
    #allocation25 [shape = 's32[1]{0}', space=sflag, size = 0x4, scoped, tag = 'scoped memory for tpu_custom_call.1']
    #allocation26 [shape = 'u8[512]{0}', space=vmem, size = 0x400, scoped, tag = 'input window, operand 18, single buffered']
    #allocation27 [shape = 'u8[1024]{0}', space=vmem, size = 0x400, scoped, tag = 'output window, operand 0, single buffered']
    %26 = vsyncpa [#allocation4], 0
    %27 = vsyncpa [#allocation7], 0
    %s28 = scalar_lea.sflag [#allocation7], 1
    %29 = vsyncpa %s28, 0
    %30 = vsyncpa [#allocation10], 0
    %s31 = scalar_lea.sflag [#allocation10], 1
    %32 = vsyncpa %s31, 0
    %33 = vsyncpa [#allocation13], 0
    %s34 = scalar_lea.sflag [#allocation13], 1
    %35 = vsyncpa %s34, 0
    %36 = vsyncpa [#allocation16], 0
    %s37 = scalar_lea.sflag [#allocation16], 1
    %38 = vsyncpa %s37, 0
    %39 = vsyncpa [#allocation19], 0
    %s40 = scalar_lea.sflag [#allocation19], 1
    %41 = vsyncpa %s40, 0
    %42 = vsyncpa [#allocation22], 0
    %s43 = scalar_lea.sflag [#allocation22], 1
    %44 = vsyncpa %s43, 0
    %45 = vsyncpa [#allocation25], 0
    %46 = vsyncpa [#allocation5], 0
    loop: start=0, step=1, limit=4
    $region2: #{tpu_custom_call.1} parent=1 // loop_pre_header
      _
    $region3: #{tpu_custom_call.1} parent=1 // loop_header
      %s48 = sphi 0, %s52
      %p49 = scmp.ge.s32.totalorder %s48, 4
      %s56 = sphi 0, %s56
      %s58 = sphi 0, %s56
      %s59 = sphi 0, %s58
      %s73 = sphi 0, %s59
      %s77 = sphi 0, %s77
      %s79 = sphi 0, %s77
      %s80 = sphi 0, %s79
      %s94 = sphi 0, %s80
      %s98 = sphi 0, %s98
      %s100 = sphi 0, %s98
      %s101 = sphi 0, %s100
      %s115 = sphi 0, %s101
      %s121 = sphi 0, %s123
      %s124 = sphi 0, %s121
      %s125 = sphi 0, %s124
      %s141 = sphi 0, %s125
      %s147 = sphi 0, %s149
      %s150 = sphi 0, %s147
      %s151 = sphi 0, %s150
      %s167 = sphi 0, %s151
      %s173 = sphi 0, %s175
      %s176 = sphi 0, %s173
      %s177 = sphi 0, %s176
      %s193 = sphi 0, %s177
      %s199 = sphi 0, %s201
      %s202 = sphi 0, %s199
      %s203 = sphi 0, %s202
      %s219 = sphi 0, %s203
      %s225 = sphi 0, %s227
      %s228 = sphi 0, %s225
      %s229 = sphi 0, %s228
      %s245 = sphi 0, %s229
      %s251 = sphi 0, %s253
      %s254 = sphi 0, %s251
      %s255 = sphi 0, %s254
      %s271 = sphi 0, %s255
      %s277 = sphi 0, %s279
      %s280 = sphi 0, %s277
      %s281 = sphi 0, %s280
      %s297 = sphi 0, %s281
      %s303 = sphi 0, %s305
      %s306 = sphi 0, %s303
      %s307 = sphi 0, %s306
      %s323 = sphi 0, %s307
      %s329 = sphi 0, %s331
      %s332 = sphi 0, %s329
      %s333 = sphi 0, %s332
      %s349 = sphi 0, %s333
      %s355 = sphi 0, %s357
      %s358 = sphi 0, %s355
      %s359 = sphi 0, %s358
      %s375 = sphi 0, %s359
      %s381 = sphi 0, %s383
      %s384 = sphi 0, %s381
      %s385 = sphi 0, %s384
      %s401 = sphi 0, %s385
      %s407 = sphi 0, %s409
      %s410 = sphi 0, %s407
      %s411 = sphi 0, %s410
      %s427 = sphi 0, %s411
      %s431 = sphi 0, %s431
      %s433 = sphi 0, %s431
      %s434 = sphi 0, %s433
      %s448 = sphi 0, %s434
      %s452 = sphi 0, %s452
      %s454 = sphi 0, %s452
      %s455 = sphi 0, %s454
      %s469 = sphi 0, %s455
      %s473 = sphi 0, %s473
      %s475 = sphi 0, %s473
      %s476 = sphi 0, %s475
      %s490 = sphi 0, %s476
      %s494 = sphi 0, %s494
      %s496 = sphi 0, %s494
      %s497 = sphi 0, %s496
      %s511 = sphi 0, %s497
      %s515 = sphi 0, %s515
      %s517 = sphi 0, %s515
      %s518 = sphi 0, %s517
      %s532 = sphi 0, %s518
      %s536 = sphi 0, %s536
      %s538 = sphi 0, %s536
      %s539 = sphi 0, %s538
      %s553 = sphi 0, %s539
      %s557 = sphi 0, %s557
      %s559 = sphi 0, %s557
      %s560 = sphi 0, %s559
      %s574 = sphi 0, %s560
    $region4: #{tpu_custom_call.1} parent=1 // loop_header_branch
      %51 = sbr.rel (%p49) target = $region8
    $region5: #{tpu_custom_call.1} parent=1 // loop_body
      %s53 = ssub.s32 %s48, 1
      %s54 = ssub.s32 %s48, 2
      %s55 = sadd.s32 %s48, 1
      %s57 = sadd.s32 %s56, 1
      %p60 = scmp.eq.s32.totalorder %s48, 1
      %p61 = scmp.ne.s32.totalorder %s56, %s58
      %p62 = scmp.eq.s32.totalorder %s48, 0
      %p63 = por %p61, %p62
      %p64 = scmp.ne.s32.totalorder %s56, %s58
      %p65 = scmp.eq.s32.totalorder %s53, 1
      %p66 = por %p64, %p65
      %p67 = scmp.ne.s32.totalorder %s58, %s59
      %p68 = scmp.eq.s32.totalorder %s53, 0
      %p69 = por %p67, %p68
      %p70 = scmp.ne.s32.totalorder %s58, %s59
      %p71 = scmp.eq.s32.totalorder %s54, 1
      %p72 = por %p70, %p71
      %p74 = scmp.ne.s32.totalorder %s59, %s73
      %p75 = scmp.eq.s32.totalorder %s54, 0
      %p76 = por %p74, %p75
      %s78 = sadd.s32 %s77, 1
      %p81 = scmp.eq.s32.totalorder %s48, 1
      %p82 = scmp.ne.s32.totalorder %s77, %s79
      %p83 = scmp.eq.s32.totalorder %s48, 0
      %p84 = por %p82, %p83
      %p85 = scmp.ne.s32.totalorder %s77, %s79
      %p86 = scmp.eq.s32.totalorder %s53, 1
      %p87 = por %p85, %p86
      %p88 = scmp.ne.s32.totalorder %s79, %s80
      %p89 = scmp.eq.s32.totalorder %s53, 0
      %p90 = por %p88, %p89
      %p91 = scmp.ne.s32.totalorder %s79, %s80
      %p92 = scmp.eq.s32.totalorder %s54, 1
      %p93 = por %p91, %p92
      %p95 = scmp.ne.s32.totalorder %s80, %s94
      %p96 = scmp.eq.s32.totalorder %s54, 0
      %p97 = por %p95, %p96
      %s99 = sadd.s32 %s98, 1
      %p102 = scmp.eq.s32.totalorder %s48, 1
      %p103 = scmp.ne.s32.totalorder %s98, %s100
      %p104 = scmp.eq.s32.totalorder %s48, 0
      %p105 = por %p103, %p104
      %p106 = scmp.ne.s32.totalorder %s98, %s100
      %p107 = scmp.eq.s32.totalorder %s53, 1
      %p108 = por %p106, %p107
      %p109 = scmp.ne.s32.totalorder %s100, %s101
      %p110 = scmp.eq.s32.totalorder %s53, 0
      %p111 = por %p109, %p110
      %p112 = scmp.ne.s32.totalorder %s100, %s101
      %p113 = scmp.eq.s32.totalorder %s54, 1
      %p114 = por %p112, %p113
      %p116 = scmp.ne.s32.totalorder %s101, %s115
      %p117 = scmp.eq.s32.totalorder %s54, 0
      %p118 = por %p116, %p117
      %s119 = ssub.s32 %s48, %s55
      %p120 = scmp.eq.s32.totalorder %s119, 0
      %s122 = sadd.s32 %s121, 1
      %s123 = scalar_select %p120, %s121, %s122
      %p126 = pneg %p120
      %p127 = scmp.eq.s32.totalorder %s48, 1
      %p128 = por %p126, %p127
      %p129 = scmp.ne.s32.totalorder %s121, %s124
      %p130 = scmp.eq.s32.totalorder %s48, 0
      %p131 = por %p129, %p130
      %p132 = scmp.ne.s32.totalorder %s121, %s124
      %p133 = scmp.eq.s32.totalorder %s53, 1
      %p134 = por %p132, %p133
      %p135 = scmp.ne.s32.totalorder %s124, %s125
      %p136 = scmp.eq.s32.totalorder %s53, 0
      %p137 = por %p135, %p136
      %p138 = scmp.ne.s32.totalorder %s124, %s125
      %p139 = scmp.eq.s32.totalorder %s54, 1
      %p140 = por %p138, %p139
      %p142 = scmp.ne.s32.totalorder %s125, %s141
      %p143 = scmp.eq.s32.totalorder %s54, 0
      %p144 = por %p142, %p143
      %s145 = ssub.s32 %s48, %s55
      %p146 = scmp.eq.s32.totalorder %s145, 0
      %s148 = sadd.s32 %s147, 1
      %s149 = scalar_select %p146, %s147, %s148
      %p152 = pneg %p146
      %p153 = scmp.eq.s32.totalorder %s48, 1
      %p154 = por %p152, %p153
      %p155 = scmp.ne.s32.totalorder %s147, %s150
      %p156 = scmp.eq.s32.totalorder %s48, 0
      %p157 = por %p155, %p156
      %p158 = scmp.ne.s32.totalorder %s147, %s150
      %p159 = scmp.eq.s32.totalorder %s53, 1
      %p160 = por %p158, %p159
      %p161 = scmp.ne.s32.totalorder %s150, %s151
      %p162 = scmp.eq.s32.totalorder %s53, 0
      %p163 = por %p161, %p162
      %p164 = scmp.ne.s32.totalorder %s150, %s151
      %p165 = scmp.eq.s32.totalorder %s54, 1
      %p166 = por %p164, %p165
      %p168 = scmp.ne.s32.totalorder %s151, %s167
      %p169 = scmp.eq.s32.totalorder %s54, 0
      %p170 = por %p168, %p169
      %s171 = ssub.s32 %s48, %s55
      %p172 = scmp.eq.s32.totalorder %s171, 0
      %s174 = sadd.s32 %s173, 1
      %s175 = scalar_select %p172, %s173, %s174
      %p178 = pneg %p172
      %p179 = scmp.eq.s32.totalorder %s48, 1
      %p180 = por %p178, %p179
      %p181 = scmp.ne.s32.totalorder %s173, %s176
      %p182 = scmp.eq.s32.totalorder %s48, 0
      %p183 = por %p181, %p182
      %p184 = scmp.ne.s32.totalorder %s173, %s176
      %p185 = scmp.eq.s32.totalorder %s53, 1
      %p186 = por %p184, %p185
      %p187 = scmp.ne.s32.totalorder %s176, %s177
      %p188 = scmp.eq.s32.totalorder %s53, 0
      %p189 = por %p187, %p188
      %p190 = scmp.ne.s32.totalorder %s176, %s177
      %p191 = scmp.eq.s32.totalorder %s54, 1
      %p192 = por %p190, %p191
      %p194 = scmp.ne.s32.totalorder %s177, %s193
      %p195 = scmp.eq.s32.totalorder %s54, 0
      %p196 = por %p194, %p195
      %s197 = ssub.s32 %s48, %s55
      %p198 = scmp.eq.s32.totalorder %s197, 0
      %s200 = sadd.s32 %s199, 1
      %s201 = scalar_select %p198, %s199, %s200
      %p204 = pneg %p198
      %p205 = scmp.eq.s32.totalorder %s48, 1
      %p206 = por %p204, %p205
      %p207 = scmp.ne.s32.totalorder %s199, %s202
      %p208 = scmp.eq.s32.totalorder %s48, 0
      %p209 = por %p207, %p208
      %p210 = scmp.ne.s32.totalorder %s199, %s202
      %p211 = scmp.eq.s32.totalorder %s53, 1
      %p212 = por %p210, %p211
      %p213 = scmp.ne.s32.totalorder %s202, %s203
      %p214 = scmp.eq.s32.totalorder %s53, 0
      %p215 = por %p213, %p214
      %p216 = scmp.ne.s32.totalorder %s202, %s203
      %p217 = scmp.eq.s32.totalorder %s54, 1
      %p218 = por %p216, %p217
      %p220 = scmp.ne.s32.totalorder %s203, %s219
      %p221 = scmp.eq.s32.totalorder %s54, 0
      %p222 = por %p220, %p221
      %s223 = ssub.s32 %s48, %s55
      %p224 = scmp.eq.s32.totalorder %s223, 0
      %s226 = sadd.s32 %s225, 1
      %s227 = scalar_select %p224, %s225, %s226
      %p230 = pneg %p224
      %p231 = scmp.eq.s32.totalorder %s48, 1
      %p232 = por %p230, %p231
      %p233 = scmp.ne.s32.totalorder %s225, %s228
      %p234 = scmp.eq.s32.totalorder %s48, 0
      %p235 = por %p233, %p234
      %p236 = scmp.ne.s32.totalorder %s225, %s228
      %p237 = scmp.eq.s32.totalorder %s53, 1
      %p238 = por %p236, %p237
      %p239 = scmp.ne.s32.totalorder %s228, %s229
      %p240 = scmp.eq.s32.totalorder %s53, 0
      %p241 = por %p239, %p240
      %p242 = scmp.ne.s32.totalorder %s228, %s229
      %p243 = scmp.eq.s32.totalorder %s54, 1
      %p244 = por %p242, %p243
      %p246 = scmp.ne.s32.totalorder %s229, %s245
      %p247 = scmp.eq.s32.totalorder %s54, 0
      %p248 = por %p246, %p247
      %s249 = ssub.s32 %s48, %s55
      %p250 = scmp.eq.s32.totalorder %s249, 0
      %s252 = sadd.s32 %s251, 1
      %s253 = scalar_select %p250, %s251, %s252
      %p256 = pneg %p250
      %p257 = scmp.eq.s32.totalorder %s48, 1
      %p258 = por %p256, %p257
      %p259 = scmp.ne.s32.totalorder %s251, %s254
      %p260 = scmp.eq.s32.totalorder %s48, 0
      %p261 = por %p259, %p260
      %p262 = scmp.ne.s32.totalorder %s251, %s254
      %p263 = scmp.eq.s32.totalorder %s53, 1
      %p264 = por %p262, %p263
      %p265 = scmp.ne.s32.totalorder %s254, %s255
      %p266 = scmp.eq.s32.totalorder %s53, 0
      %p267 = por %p265, %p266
      %p268 = scmp.ne.s32.totalorder %s254, %s255
      %p269 = scmp.eq.s32.totalorder %s54, 1
      %p270 = por %p268, %p269
      %p272 = scmp.ne.s32.totalorder %s255, %s271
      %p273 = scmp.eq.s32.totalorder %s54, 0
      %p274 = por %p272, %p273
      %s275 = ssub.s32 %s48, %s55
      %p276 = scmp.eq.s32.totalorder %s275, 0
      %s278 = sadd.s32 %s277, 1
      %s279 = scalar_select %p276, %s277, %s278
      %p282 = pneg %p276
      %p283 = scmp.eq.s32.totalorder %s48, 1
      %p284 = por %p282, %p283
      %p285 = scmp.ne.s32.totalorder %s277, %s280
      %p286 = scmp.eq.s32.totalorder %s48, 0
      %p287 = por %p285, %p286
      %p288 = scmp.ne.s32.totalorder %s277, %s280
      %p289 = scmp.eq.s32.totalorder %s53, 1
      %p290 = por %p288, %p289
      %p291 = scmp.ne.s32.totalorder %s280, %s281
      %p292 = scmp.eq.s32.totalorder %s53, 0
      %p293 = por %p291, %p292
      %p294 = scmp.ne.s32.totalorder %s280, %s281
      %p295 = scmp.eq.s32.totalorder %s54, 1
      %p296 = por %p294, %p295
      %p298 = scmp.ne.s32.totalorder %s281, %s297
      %p299 = scmp.eq.s32.totalorder %s54, 0
      %p300 = por %p298, %p299
      %s301 = ssub.s32 %s48, %s55
      %p302 = scmp.eq.s32.totalorder %s301, 0
      %s304 = sadd.s32 %s303, 1
      %s305 = scalar_select %p302, %s303, %s304
      %p308 = pneg %p302
      %p309 = scmp.eq.s32.totalorder %s48, 1
      %p310 = por %p308, %p309
      %p311 = scmp.ne.s32.totalorder %s303, %s306
      %p312 = scmp.eq.s32.totalorder %s48, 0
      %p313 = por %p311, %p312
      %p314 = scmp.ne.s32.totalorder %s303, %s306
      %p315 = scmp.eq.s32.totalorder %s53, 1
      %p316 = por %p314, %p315
      %p317 = scmp.ne.s32.totalorder %s306, %s307
      %p318 = scmp.eq.s32.totalorder %s53, 0
      %p319 = por %p317, %p318
      %p320 = scmp.ne.s32.totalorder %s306, %s307
      %p321 = scmp.eq.s32.totalorder %s54, 1
      %p322 = por %p320, %p321
      %p324 = scmp.ne.s32.totalorder %s307, %s323
      %p325 = scmp.eq.s32.totalorder %s54, 0
      %p326 = por %p324, %p325
      %s327 = ssub.s32 %s48, %s55
      %p328 = scmp.eq.s32.totalorder %s327, 0
      %s330 = sadd.s32 %s329, 1
      %s331 = scalar_select %p328, %s329, %s330
      %p334 = pneg %p328
      %p335 = scmp.eq.s32.totalorder %s48, 1
      %p336 = por %p334, %p335
      %p337 = scmp.ne.s32.totalorder %s329, %s332
      %p338 = scmp.eq.s32.totalorder %s48, 0
      %p339 = por %p337, %p338
      %p340 = scmp.ne.s32.totalorder %s329, %s332
      %p341 = scmp.eq.s32.totalorder %s53, 1
      %p342 = por %p340, %p341
      %p343 = scmp.ne.s32.totalorder %s332, %s333
      %p344 = scmp.eq.s32.totalorder %s53, 0
      %p345 = por %p343, %p344
      %p346 = scmp.ne.s32.totalorder %s332, %s333
      %p347 = scmp.eq.s32.totalorder %s54, 1
      %p348 = por %p346, %p347
      %p350 = scmp.ne.s32.totalorder %s333, %s349
      %p351 = scmp.eq.s32.totalorder %s54, 0
      %p352 = por %p350, %p351
      %s353 = ssub.s32 %s48, %s55
      %p354 = scmp.eq.s32.totalorder %s353, 0
      %s356 = sadd.s32 %s355, 1
      %s357 = scalar_select %p354, %s355, %s356
      %p360 = pneg %p354
      %p361 = scmp.eq.s32.totalorder %s48, 1
      %p362 = por %p360, %p361
      %p363 = scmp.ne.s32.totalorder %s355, %s358
      %p364 = scmp.eq.s32.totalorder %s48, 0
      %p365 = por %p363, %p364
      %p366 = scmp.ne.s32.totalorder %s355, %s358
      %p367 = scmp.eq.s32.totalorder %s53, 1
      %p368 = por %p366, %p367
      %p369 = scmp.ne.s32.totalorder %s358, %s359
      %p370 = scmp.eq.s32.totalorder %s53, 0
      %p371 = por %p369, %p370
      %p372 = scmp.ne.s32.totalorder %s358, %s359
      %p373 = scmp.eq.s32.totalorder %s54, 1
      %p374 = por %p372, %p373
      %p376 = scmp.ne.s32.totalorder %s359, %s375
      %p377 = scmp.eq.s32.totalorder %s54, 0
      %p378 = por %p376, %p377
      %s379 = ssub.s32 %s48, %s55
      %p380 = scmp.eq.s32.totalorder %s379, 0
      %s382 = sadd.s32 %s381, 1
      %s383 = scalar_select %p380, %s381, %s382
      %p386 = pneg %p380
      %p387 = scmp.eq.s32.totalorder %s48, 1
      %p388 = por %p386, %p387
      %p389 = scmp.ne.s32.totalorder %s381, %s384
      %p390 = scmp.eq.s32.totalorder %s48, 0
      %p391 = por %p389, %p390
      %p392 = scmp.ne.s32.totalorder %s381, %s384
      %p393 = scmp.eq.s32.totalorder %s53, 1
      %p394 = por %p392, %p393
      %p395 = scmp.ne.s32.totalorder %s384, %s385
      %p396 = scmp.eq.s32.totalorder %s53, 0
      %p397 = por %p395, %p396
      %p398 = scmp.ne.s32.totalorder %s384, %s385
      %p399 = scmp.eq.s32.totalorder %s54, 1
      %p400 = por %p398, %p399
      %p402 = scmp.ne.s32.totalorder %s385, %s401
      %p403 = scmp.eq.s32.totalorder %s54, 0
      %p404 = por %p402, %p403
      %s405 = ssub.s32 %s48, %s55
      %p406 = scmp.eq.s32.totalorder %s405, 0
      %s408 = sadd.s32 %s407, 1
      %s409 = scalar_select %p406, %s407, %s408
      %p412 = pneg %p406
      %p413 = scmp.eq.s32.totalorder %s48, 1
      %p414 = por %p412, %p413
      %p415 = scmp.ne.s32.totalorder %s407, %s410
      %p416 = scmp.eq.s32.totalorder %s48, 0
      %p417 = por %p415, %p416
      %p418 = scmp.ne.s32.totalorder %s407, %s410
      %p419 = scmp.eq.s32.totalorder %s53, 1
      %p420 = por %p418, %p419
      %p421 = scmp.ne.s32.totalorder %s410, %s411
      %p422 = scmp.eq.s32.totalorder %s53, 0
      %p423 = por %p421, %p422
      %p424 = scmp.ne.s32.totalorder %s410, %s411
      %p425 = scmp.eq.s32.totalorder %s54, 1
      %p426 = por %p424, %p425
      %p428 = scmp.ne.s32.totalorder %s411, %s427
      %p429 = scmp.eq.s32.totalorder %s54, 0
      %p430 = por %p428, %p429
      %s432 = sadd.s32 %s431, 1
      %p435 = scmp.eq.s32.totalorder %s48, 1
      %p436 = scmp.ne.s32.totalorder %s431, %s433
      %p437 = scmp.eq.s32.totalorder %s48, 0
      %p438 = por %p436, %p437
      %p439 = scmp.ne.s32.totalorder %s431, %s433
      %p440 = scmp.eq.s32.totalorder %s53, 1
      %p441 = por %p439, %p440
      %p442 = scmp.ne.s32.totalorder %s433, %s434
      %p443 = scmp.eq.s32.totalorder %s53, 0
      %p444 = por %p442, %p443
      %p445 = scmp.ne.s32.totalorder %s433, %s434
      %p446 = scmp.eq.s32.totalorder %s54, 1
      %p447 = por %p445, %p446
      %p449 = scmp.ne.s32.totalorder %s434, %s448
      %p450 = scmp.eq.s32.totalorder %s54, 0
      %p451 = por %p449, %p450
      %s453 = sadd.s32 %s452, 1
      %p456 = scmp.eq.s32.totalorder %s48, 1
      %p457 = scmp.ne.s32.totalorder %s452, %s454
      %p458 = scmp.eq.s32.totalorder %s48, 0
      %p459 = por %p457, %p458
      %p460 = scmp.ne.s32.totalorder %s452, %s454
      %p461 = scmp.eq.s32.totalorder %s53, 1
      %p462 = por %p460, %p461
      %p463 = scmp.ne.s32.totalorder %s454, %s455
      %p464 = scmp.eq.s32.totalorder %s53, 0
      %p465 = por %p463, %p464
      %p466 = scmp.ne.s32.totalorder %s454, %s455
      %p467 = scmp.eq.s32.totalorder %s54, 1
      %p468 = por %p466, %p467
      %p470 = scmp.ne.s32.totalorder %s455, %s469
      %p471 = scmp.eq.s32.totalorder %s54, 0
      %p472 = por %p470, %p471
      %s474 = sadd.s32 %s473, 1
      %p477 = scmp.eq.s32.totalorder %s48, 1
      %p478 = scmp.ne.s32.totalorder %s473, %s475
      %p479 = scmp.eq.s32.totalorder %s48, 0
      %p480 = por %p478, %p479
      %p481 = scmp.ne.s32.totalorder %s473, %s475
      %p482 = scmp.eq.s32.totalorder %s53, 1
      %p483 = por %p481, %p482
      %p484 = scmp.ne.s32.totalorder %s475, %s476
      %p485 = scmp.eq.s32.totalorder %s53, 0
      %p486 = por %p484, %p485
      %p487 = scmp.ne.s32.totalorder %s475, %s476
      %p488 = scmp.eq.s32.totalorder %s54, 1
      %p489 = por %p487, %p488
      %p491 = scmp.ne.s32.totalorder %s476, %s490
      %p492 = scmp.eq.s32.totalorder %s54, 0
      %p493 = por %p491, %p492
      %s495 = sadd.s32 %s494, 1
      %p498 = scmp.eq.s32.totalorder %s48, 1
      %p499 = scmp.ne.s32.totalorder %s494, %s496
      %p500 = scmp.eq.s32.totalorder %s48, 0
      %p501 = por %p499, %p500
      %p502 = scmp.ne.s32.totalorder %s494, %s496
      %p503 = scmp.eq.s32.totalorder %s53, 1
      %p504 = por %p502, %p503
      %p505 = scmp.ne.s32.totalorder %s496, %s497
      %p506 = scmp.eq.s32.totalorder %s53, 0
      %p507 = por %p505, %p506
      %p508 = scmp.ne.s32.totalorder %s496, %s497
      %p509 = scmp.eq.s32.totalorder %s54, 1
      %p510 = por %p508, %p509
      %p512 = scmp.ne.s32.totalorder %s497, %s511
      %p513 = scmp.eq.s32.totalorder %s54, 0
      %p514 = por %p512, %p513
      %s516 = sadd.s32 %s515, 1
      %p519 = scmp.eq.s32.totalorder %s48, 1
      %p520 = scmp.ne.s32.totalorder %s515, %s517
      %p521 = scmp.eq.s32.totalorder %s48, 0
      %p522 = por %p520, %p521
      %p523 = scmp.ne.s32.totalorder %s515, %s517
      %p524 = scmp.eq.s32.totalorder %s53, 1
      %p525 = por %p523, %p524
      %p526 = scmp.ne.s32.totalorder %s517, %s518
      %p527 = scmp.eq.s32.totalorder %s53, 0
      %p528 = por %p526, %p527
      %p529 = scmp.ne.s32.totalorder %s517, %s518
      %p530 = scmp.eq.s32.totalorder %s54, 1
      %p531 = por %p529, %p530
      %p533 = scmp.ne.s32.totalorder %s518, %s532
      %p534 = scmp.eq.s32.totalorder %s54, 0
      %p535 = por %p533, %p534
      %s537 = sadd.s32 %s536, 1
      %p540 = scmp.eq.s32.totalorder %s48, 1
      %p541 = scmp.ne.s32.totalorder %s536, %s538
      %p542 = scmp.eq.s32.totalorder %s48, 0
      %p543 = por %p541, %p542
      %p544 = scmp.ne.s32.totalorder %s536, %s538
      %p545 = scmp.eq.s32.totalorder %s53, 1
      %p546 = por %p544, %p545
      %p547 = scmp.ne.s32.totalorder %s538, %s539
      %p548 = scmp.eq.s32.totalorder %s53, 0
      %p549 = por %p547, %p548
      %p550 = scmp.ne.s32.totalorder %s538, %s539
      %p551 = scmp.eq.s32.totalorder %s54, 1
      %p552 = por %p550, %p551
      %p554 = scmp.ne.s32.totalorder %s539, %s553
      %p555 = scmp.eq.s32.totalorder %s54, 0
      %p556 = por %p554, %p555
      %s558 = sadd.s32 %s557, 1
      %p561 = scmp.eq.s32.totalorder %s48, 1
      %p562 = scmp.ne.s32.totalorder %s557, %s559
      %p563 = scmp.eq.s32.totalorder %s48, 0
      %p564 = por %p562, %p563
      %p565 = scmp.ne.s32.totalorder %s557, %s559
      %p566 = scmp.eq.s32.totalorder %s53, 1
      %p567 = por %p565, %p566
      %p568 = scmp.ne.s32.totalorder %s559, %s560
      %p569 = scmp.eq.s32.totalorder %s53, 0
      %p570 = por %p568, %p569
      %p571 = scmp.ne.s32.totalorder %s559, %s560
      %p572 = scmp.eq.s32.totalorder %s54, 1
      %p573 = por %p571, %p572
      %p575 = scmp.ne.s32.totalorder %s560, %s574
      %p576 = scmp.eq.s32.totalorder %s54, 0
      %p577 = por %p575, %p576
      %p578 = scmp.le.s32.totalorder 1, %s48
      %p579 = scmp.lt.s32.totalorder %s48, 3
      %p580 = pnand %p578, %p579
      %p581 = pneg %p580
      // Predicated region
      $region9: #{tpu_custom_call.1} parent=5 // pred_check
        _
      $region10: #{tpu_custom_call.1} parent=5 // pred_check_branch
        %583 = sbr.rel (%p580) target = $region12
      $region11: #{tpu_custom_call.1} parent=5 // pred_region
        %s584 = ssub.s32 %s48, 1
        // Predicated region
        $region13: #{tpu_custom_call.1} parent=11 // pred_check
          %p585 = pneg %p69
        $region14: #{tpu_custom_call.1} parent=11 // pred_check_branch
          %587 = sbr.rel (%p585) target = $region16
        $region15: #{tpu_custom_call.1} parent=11 // pred_region
          _
        $region16: #{tpu_custom_call.1} parent=11 // pred_fallthru
          _
        // Predicated region
        $region17: #{tpu_custom_call.1} parent=11 // pred_check
          %p588 = pneg %p90
        $region18: #{tpu_custom_call.1} parent=11 // pred_check_branch
          %590 = sbr.rel (%p588) target = $region20
        $region19: #{tpu_custom_call.1} parent=11 // pred_region
          _
        $region20: #{tpu_custom_call.1} parent=11 // pred_fallthru
          _
        // Predicated region
        $region21: #{tpu_custom_call.1} parent=11 // pred_check
          %p591 = pneg %p111
        $region22: #{tpu_custom_call.1} parent=11 // pred_check_branch
          %593 = sbr.rel (%p591) target = $region24
        $region23: #{tpu_custom_call.1} parent=11 // pred_region
          %s595 = ssub.s32 2048, 2048
          %596 = vsyncadd [#allocation4], %s595
          %s597 = sshll.u32 [#allocation3], 4
          %s598 = int_to_ptr.vmem [resolvable:$true] %s597
          %603 = dma.hbm_to_vmem [thread:$0]  %s2, 2048, %s598, [#allocation4], 64, 64, 4
        $region24: #{tpu_custom_call.1} parent=11 // pred_fallthru
          _
        // Predicated region
        $region25: #{tpu_custom_call.1} parent=11 // pred_check
          %p604 = pneg %p444
        $region26: #{tpu_custom_call.1} parent=11 // pred_check_branch
          %606 = sbr.rel (%p604) target = $region28
        $region27: #{tpu_custom_call.1} parent=11 // pred_region
          %s608 = ssub.s32 16, 16
          %609 = vsyncadd [#allocation22], %s608
          %s611 = sshll.u32 [#allocation23], 4
          %s612 = int_to_ptr.vmem [resolvable:$true] %s611
          %614 = dma.hbm_to_vmem [thread:$0]  %s15, 16, %s612, [#allocation22]
        $region28: #{tpu_custom_call.1} parent=11 // pred_fallthru
          _
        // Predicated region
        $region29: #{tpu_custom_call.1} parent=11 // pred_check
          %p615 = pneg %p465
        $region30: #{tpu_custom_call.1} parent=11 // pred_check_branch
          %617 = sbr.rel (%p615) target = $region32
        $region31: #{tpu_custom_call.1} parent=11 // pred_region
          %s619 = ssub.s32 16, 16
          %620 = vsyncadd [#allocation25], %s619
          %s622 = sshll.u32 [#allocation24], 4
          %s623 = int_to_ptr.vmem [resolvable:$true] %s622
          %625 = dma.hbm_to_vmem [thread:$0]  %s16, 16, %s623, [#allocation25]
        $region32: #{tpu_custom_call.1} parent=11 // pred_fallthru
          _
        // Predicated region
        $region33: #{tpu_custom_call.1} parent=11 // pred_check
          %p626 = pneg %p486
        $region34: #{tpu_custom_call.1} parent=11 // pred_check_branch
          %628 = sbr.rel (%p626) target = $region36
        $region35: #{tpu_custom_call.1} parent=11 // pred_region
          _
        $region36: #{tpu_custom_call.1} parent=11 // pred_fallthru
          _
        // Predicated region
        $region37: #{tpu_custom_call.1} parent=11 // pred_check
          %p629 = pneg %p507
        $region38: #{tpu_custom_call.1} parent=11 // pred_check_branch
          %631 = sbr.rel (%p629) target = $region40
        $region39: #{tpu_custom_call.1} parent=11 // pred_region
          %s633 = ssub.s32 16, 16
          %634 = vsyncadd [#allocation25], %s633
          %s636 = sshll.u32 [#allocation26], 4
          %s637 = int_to_ptr.vmem [resolvable:$true] %s636
          %639 = dma.hbm_to_vmem [thread:$0]  %s18, 16, %s637, [#allocation25]
        $region40: #{tpu_custom_call.1} parent=11 // pred_fallthru
          _
        // Predicated region
        $region41: #{tpu_custom_call.1} parent=11 // pred_check
          %p640 = pneg %p528
        $region42: #{tpu_custom_call.1} parent=11 // pred_check_branch
          %642 = sbr.rel (%p640) target = $region44
        $region43: #{tpu_custom_call.1} parent=11 // pred_region
          _
        $region44: #{tpu_custom_call.1} parent=11 // pred_fallthru
          _
        // Predicated region
        $region45: #{tpu_custom_call.1} parent=11 // pred_check
          %p643 = pneg %p549
        $region46: #{tpu_custom_call.1} parent=11 // pred_check_branch
          %645 = sbr.rel (%p643) target = $region48
        $region47: #{tpu_custom_call.1} parent=11 // pred_region
          _
        $region48: #{tpu_custom_call.1} parent=11 // pred_fallthru
          _
      $region12: #{tpu_custom_call.1} parent=5 // pred_fallthru
        _
      %p646 = scmp.lt.s32.totalorder %s48, 2
      // Predicated region
      $region49: #{tpu_custom_call.1} parent=5 // pred_check
        %p647 = pneg %p646
      $region50: #{tpu_custom_call.1} parent=5 // pred_check_branch
        %649 = sbr.rel (%p647) target = $region52
      $region51: #{tpu_custom_call.1} parent=5 // pred_region
        // Predicated region
        $region53: #{tpu_custom_call.1} parent=51 // pred_check
          %p650 = pneg %p131
        $region54: #{tpu_custom_call.1} parent=51 // pred_check_branch
          %652 = sbr.rel (%p650) target = $region56
        $region55: #{tpu_custom_call.1} parent=51 // pred_region
          %s653 = sand.u32 %s48, 1
          %s654 = scalar_lea.sflag [#allocation7], %s653
          %s655 = sand.u32 %s121, 1
          %s656 = scalar_lea.vmem [#allocation6], %s655
          %s658 = ssub.s32 16, 16
          %659 = vsyncadd %s654, %s658
          %s660 = smul.addr %s48, 16
          %s661 = scalar_lea.hbm %s3, %s660
          %s663 = sshll.u32 %s656, 4
          %s664 = int_to_ptr.vmem [resolvable:$true] %s663
          %666 = dma.hbm_to_vmem [thread:$0]  %s661, 16, %s664, %s654
        $region56: #{tpu_custom_call.1} parent=51 // pred_fallthru
          _
        // Predicated region
        $region57: #{tpu_custom_call.1} parent=51 // pred_check
          %p667 = pneg %p157
        $region58: #{tpu_custom_call.1} parent=51 // pred_check_branch
          %669 = sbr.rel (%p667) target = $region60
        $region59: #{tpu_custom_call.1} parent=51 // pred_region
          %s670 = sand.u32 %s48, 1
          %s671 = scalar_lea.sflag [#allocation7], %s670
          %s672 = sand.u32 %s147, 1
          %s673 = scalar_lea.vmem [#allocation8], %s672
          %s675 = ssub.s32 16, 16
          %676 = vsyncadd %s671, %s675
          %s677 = smul.addr %s48, 16
          %s678 = scalar_lea.hbm %s4, %s677
          %s680 = sshll.u32 %s673, 4
          %s681 = int_to_ptr.vmem [resolvable:$true] %s680
          %683 = dma.hbm_to_vmem [thread:$0]  %s678, 16, %s681, %s671
        $region60: #{tpu_custom_call.1} parent=51 // pred_fallthru
          _
        // Predicated region
        $region61: #{tpu_custom_call.1} parent=51 // pred_check
          %p684 = pneg %p183
        $region62: #{tpu_custom_call.1} parent=51 // pred_check_branch
          %686 = sbr.rel (%p684) target = $region64
        $region63: #{tpu_custom_call.1} parent=51 // pred_region
          %s687 = sand.u32 %s48, 1
          %s688 = scalar_lea.sflag [#allocation10], %s687
          %s689 = sand.u32 %s173, 1
          %s690 = smul.addr %s689, 192
          %s691 = scalar_lea.vmem [#allocation9], %s690
          %s693 = ssub.s32 3072, 3072
          %694 = vsyncadd %s688, %s693
          %s695 = smul.addr %s48, 48
          %s696 = smul.addr %s695, 64
          %s697 = scalar_lea.hbm %s5, %s696
          %s698 = sshll.u32 %s691, 4
          %s699 = int_to_ptr.vmem [resolvable:$true] %s698
          %704 = dma.hbm_to_vmem [thread:$0]  %s697, 3072, %s699, %s688, 192, 192, 12
        $region64: #{tpu_custom_call.1} parent=51 // pred_fallthru
          _
        // Predicated region
        $region65: #{tpu_custom_call.1} parent=51 // pred_check
          %p705 = pneg %p209
        $region66: #{tpu_custom_call.1} parent=51 // pred_check_branch
          %707 = sbr.rel (%p705) target = $region68
        $region67: #{tpu_custom_call.1} parent=51 // pred_region
          %s708 = sand.u32 %s48, 1
          %s709 = scalar_lea.sflag [#allocation10], %s708
          %s710 = sand.u32 %s199, 1
          %s711 = smul.addr %s710, 3
          %s712 = scalar_lea.vmem [#allocation11], %s711
          %s714 = ssub.s32 48, 48
          %715 = vsyncadd %s709, %s714
          %s716 = smul.addr %s48, 3
          %s717 = smul.addr %s716, 16
          %s718 = scalar_lea.hbm %s6, %s717
          %s720 = sshll.u32 %s712, 4
          %s721 = int_to_ptr.vmem [resolvable:$true] %s720
          %723 = dma.hbm_to_vmem [thread:$0]  %s718, 48, %s721, %s709
        $region68: #{tpu_custom_call.1} parent=51 // pred_fallthru
          _
        // Predicated region
        $region69: #{tpu_custom_call.1} parent=51 // pred_check
          %p724 = pneg %p235
        $region70: #{tpu_custom_call.1} parent=51 // pred_check_branch
          %726 = sbr.rel (%p724) target = $region72
        $region71: #{tpu_custom_call.1} parent=51 // pred_region
          %s727 = sand.u32 %s48, 1
          %s728 = scalar_lea.sflag [#allocation13], %s727
          %s729 = sand.u32 %s225, 1
          %s730 = smul.addr %s729, 64
          %s731 = scalar_lea.vmem [#allocation12], %s730
          %s733 = ssub.s32 1024, 1024
          %734 = vsyncadd %s728, %s733
          %s735 = smul.addr %s48, 16
          %s736 = smul.addr %s735, 64
          %s737 = scalar_lea.hbm %s7, %s736
          %s738 = sshll.u32 %s731, 4
          %s739 = int_to_ptr.vmem [resolvable:$true] %s738
          %744 = dma.hbm_to_vmem [thread:$0]  %s737, 1024, %s739, %s728, 64, 64, 4
        $region72: #{tpu_custom_call.1} parent=51 // pred_fallthru
          _
        // Predicated region
        $region73: #{tpu_custom_call.1} parent=51 // pred_check
          %p745 = pneg %p261
        $region74: #{tpu_custom_call.1} parent=51 // pred_check_branch
          %747 = sbr.rel (%p745) target = $region76
        $region75: #{tpu_custom_call.1} parent=51 // pred_region
          %s748 = sand.u32 %s48, 1
          %s749 = scalar_lea.sflag [#allocation13], %s748
          %s750 = sand.u32 %s251, 1
          %s751 = scalar_lea.vmem [#allocation14], %s750
          %s753 = ssub.s32 16, 16
          %754 = vsyncadd %s749, %s753
          %s755 = smul.addr %s48, 16
          %s756 = scalar_lea.hbm %s8, %s755
          %s758 = sshll.u32 %s751, 4
          %s759 = int_to_ptr.vmem [resolvable:$true] %s758
          %761 = dma.hbm_to_vmem [thread:$0]  %s756, 16, %s759, %s749
        $region76: #{tpu_custom_call.1} parent=51 // pred_fallthru
          _
        // Predicated region
        $region77: #{tpu_custom_call.1} parent=51 // pred_check
          %p762 = pneg %p287
        $region78: #{tpu_custom_call.1} parent=51 // pred_check_branch
          %764 = sbr.rel (%p762) target = $region80
        $region79: #{tpu_custom_call.1} parent=51 // pred_region
          %s765 = sand.u32 %s48, 1
          %s766 = scalar_lea.sflag [#allocation16], %s765
          %s767 = sand.u32 %s277, 1
          %s768 = scalar_lea.vmem [#allocation15], %s767
          %s770 = ssub.s32 16, 16
          %771 = vsyncadd %s766, %s770
          %s772 = smul.addr %s48, 16
          %s773 = scalar_lea.hbm %s9, %s772
          %s775 = sshll.u32 %s768, 4
          %s776 = int_to_ptr.vmem [resolvable:$true] %s775
          %778 = dma.hbm_to_vmem [thread:$0]  %s773, 16, %s776, %s766
        $region80: #{tpu_custom_call.1} parent=51 // pred_fallthru
          _
        // Predicated region
        $region81: #{tpu_custom_call.1} parent=51 // pred_check
          %p779 = pneg %p313
        $region82: #{tpu_custom_call.1} parent=51 // pred_check_branch
          %781 = sbr.rel (%p779) target = $region84
        $region83: #{tpu_custom_call.1} parent=51 // pred_region
          %s782 = sand.u32 %s48, 1
          %s783 = scalar_lea.sflag [#allocation16], %s782
          %s784 = sand.u32 %s303, 1
          %s785 = scalar_lea.vmem [#allocation17], %s784
          %s787 = ssub.s32 16, 16
          %788 = vsyncadd %s783, %s787
          %s789 = smul.addr %s48, 16
          %s790 = scalar_lea.hbm %s10, %s789
          %s792 = sshll.u32 %s785, 4
          %s793 = int_to_ptr.vmem [resolvable:$true] %s792
          %795 = dma.hbm_to_vmem [thread:$0]  %s790, 16, %s793, %s783
        $region84: #{tpu_custom_call.1} parent=51 // pred_fallthru
          _
        // Predicated region
        $region85: #{tpu_custom_call.1} parent=51 // pred_check
          %p796 = pneg %p339
        $region86: #{tpu_custom_call.1} parent=51 // pred_check_branch
          %798 = sbr.rel (%p796) target = $region88
        $region87: #{tpu_custom_call.1} parent=51 // pred_region
          %s799 = sand.u32 %s48, 1
          %s800 = scalar_lea.sflag [#allocation19], %s799
          %s801 = sand.u32 %s329, 1
          %s802 = smul.addr %s801, 256
          %s803 = scalar_lea.vmem [#allocation18], %s802
          %s805 = ssub.s32 4096, 4096
          %806 = vsyncadd %s800, %s805
          %s807 = smul.addr %s48, 64
          %s808 = smul.addr %s807, 64
          %s809 = scalar_lea.hbm %s11, %s808
          %s810 = sshll.u32 %s803, 4
          %s811 = int_to_ptr.vmem [resolvable:$true] %s810
          %816 = dma.hbm_to_vmem [thread:$0]  %s809, 4096, %s811, %s800, 256, 256, 16
        $region88: #{tpu_custom_call.1} parent=51 // pred_fallthru
          _
        // Predicated region
        $region89: #{tpu_custom_call.1} parent=51 // pred_check
          %p817 = pneg %p365
        $region90: #{tpu_custom_call.1} parent=51 // pred_check_branch
          %819 = sbr.rel (%p817) target = $region92
        $region91: #{tpu_custom_call.1} parent=51 // pred_region
          %p820 = scmp.lt.s32.totalorder %s48, 1
          %s821 = scalar_select %p820, %s48, 1
          %s822 = smul.addr %s821, 4
          %s823 = scalar_lea.vmem %s12, %s822
        $region92: #{tpu_custom_call.1} parent=51 // pred_fallthru
          _
        // Predicated region
        $region93: #{tpu_custom_call.1} parent=51 // pred_check
          %p824 = pneg %p391
        $region94: #{tpu_custom_call.1} parent=51 // pred_check_branch
          %826 = sbr.rel (%p824) target = $region96
        $region95: #{tpu_custom_call.1} parent=51 // pred_region
          %s827 = sand.u32 %s48, 1
          %s828 = scalar_lea.sflag [#allocation19], %s827
          %s829 = sand.u32 %s381, 1
          %s830 = smul.addr %s829, 256
          %s831 = scalar_lea.vmem [#allocation20], %s830
          %s833 = ssub.s32 4096, 4096
          %834 = vsyncadd %s828, %s833
          %s835 = smul.addr %s48, 64
          %s836 = smul.addr %s835, 64
          %s837 = scalar_lea.hbm %s13, %s836
          %s838 = sshll.u32 %s831, 4
          %s839 = int_to_ptr.vmem [resolvable:$true] %s838
          %844 = dma.hbm_to_vmem [thread:$0]  %s837, 4096, %s839, %s828, 64, 64, 4
        $region96: #{tpu_custom_call.1} parent=51 // pred_fallthru
          _
        // Predicated region
        $region97: #{tpu_custom_call.1} parent=51 // pred_check
          %p845 = pneg %p417
        $region98: #{tpu_custom_call.1} parent=51 // pred_check_branch
          %847 = sbr.rel (%p845) target = $region100
        $region99: #{tpu_custom_call.1} parent=51 // pred_region
          %s848 = sand.u32 %s48, 1
          %s849 = scalar_lea.sflag [#allocation22], %s848
          %s850 = sand.u32 %s407, 1
          %s851 = scalar_lea.vmem [#allocation21], %s850
          %s853 = ssub.s32 16, 16
          %854 = vsyncadd %s849, %s853
          %s855 = smul.addr %s48, 16
          %s856 = scalar_lea.hbm %s14, %s855
          %s858 = sshll.u32 %s851, 4
          %s859 = int_to_ptr.vmem [resolvable:$true] %s858
          %861 = dma.hbm_to_vmem [thread:$0]  %s856, 16, %s859, %s849
        $region100: #{tpu_custom_call.1} parent=51 // pred_fallthru
          _
      $region52: #{tpu_custom_call.1} parent=5 // pred_fallthru
        _
      %p862 = scmp.le.s32.totalorder 1, %s48
      %p863 = scmp.lt.s32.totalorder %s48, 3
      %p864 = pnand %p862, %p863
      %p865 = pneg %p864
      // Predicated region
      $region101: #{tpu_custom_call.1} parent=5 // pred_check
        _
      $region102: #{tpu_custom_call.1} parent=5 // pred_check_branch
        %867 = sbr.rel (%p864) target = $region104
      $region103: #{tpu_custom_call.1} parent=5 // pred_region
        %s868 = ssub.s32 %s48, 1
        // Predicated region
        $region105: #{tpu_custom_call.1} parent=103 // pred_check
          %p869 = pneg %p111
        $region106: #{tpu_custom_call.1} parent=103 // pred_check_branch
          %871 = sbr.rel (%p869) target = $region108
        $region107: #{tpu_custom_call.1} parent=103 // pred_region
          %872 = dma.done [#allocation4], 2048
        $region108: #{tpu_custom_call.1} parent=103 // pred_fallthru
          _
        %s873 = sand.u32 %s53, 1
        %s874 = scalar_lea.sflag [#allocation7], %s873
        %s875 = sand.u32 %s124, 1
        %s876 = scalar_lea.vmem [#allocation6], %s875
        // Predicated region
        $region109: #{tpu_custom_call.1} parent=103 // pred_check
          %p877 = pneg %p137
        $region110: #{tpu_custom_call.1} parent=103 // pred_check_branch
          %879 = sbr.rel (%p877) target = $region112
        $region111: #{tpu_custom_call.1} parent=103 // pred_region
          %880 = dma.done %s874, 16
        $region112: #{tpu_custom_call.1} parent=103 // pred_fallthru
          _
        %s881 = sand.u32 %s53, 1
        %s882 = scalar_lea.sflag [#allocation7], %s881
        %s883 = sand.u32 %s150, 1
        %s884 = scalar_lea.vmem [#allocation8], %s883
        // Predicated region
        $region113: #{tpu_custom_call.1} parent=103 // pred_check
          %p885 = pneg %p163
        $region114: #{tpu_custom_call.1} parent=103 // pred_check_branch
          %887 = sbr.rel (%p885) target = $region116
        $region115: #{tpu_custom_call.1} parent=103 // pred_region
          %888 = dma.done %s882, 16
        $region116: #{tpu_custom_call.1} parent=103 // pred_fallthru
          _
        %s889 = sand.u32 %s53, 1
        %s890 = scalar_lea.sflag [#allocation10], %s889
        %s891 = sand.u32 %s176, 1
        %s892 = smul.addr %s891, 192
        %s893 = scalar_lea.vmem [#allocation9], %s892
        // Predicated region
        $region117: #{tpu_custom_call.1} parent=103 // pred_check
          %p894 = pneg %p189
        $region118: #{tpu_custom_call.1} parent=103 // pred_check_branch
          %896 = sbr.rel (%p894) target = $region120
        $region119: #{tpu_custom_call.1} parent=103 // pred_region
          %897 = dma.done %s890, 3072
        $region120: #{tpu_custom_call.1} parent=103 // pred_fallthru
          _
        %s898 = sand.u32 %s53, 1
        %s899 = scalar_lea.sflag [#allocation10], %s898
        %s900 = sand.u32 %s202, 1
        %s901 = smul.addr %s900, 3
        %s902 = scalar_lea.vmem [#allocation11], %s901
        // Predicated region
        $region121: #{tpu_custom_call.1} parent=103 // pred_check
          %p903 = pneg %p215
        $region122: #{tpu_custom_call.1} parent=103 // pred_check_branch
          %905 = sbr.rel (%p903) target = $region124
        $region123: #{tpu_custom_call.1} parent=103 // pred_region
          %906 = dma.done %s899, 48
        $region124: #{tpu_custom_call.1} parent=103 // pred_fallthru
          _
        %s907 = sand.u32 %s53, 1
        %s908 = scalar_lea.sflag [#allocation13], %s907
        %s909 = sand.u32 %s228, 1
        %s910 = smul.addr %s909, 64
        %s911 = scalar_lea.vmem [#allocation12], %s910
        // Predicated region
        $region125: #{tpu_custom_call.1} parent=103 // pred_check
          %p912 = pneg %p241
        $region126: #{tpu_custom_call.1} parent=103 // pred_check_branch
          %914 = sbr.rel (%p912) target = $region128
        $region127: #{tpu_custom_call.1} parent=103 // pred_region
          %915 = dma.done %s908, 1024
        $region128: #{tpu_custom_call.1} parent=103 // pred_fallthru
          _
        %s916 = sand.u32 %s53, 1
        %s917 = scalar_lea.sflag [#allocation13], %s916
        %s918 = sand.u32 %s254, 1
        %s919 = scalar_lea.vmem [#allocation14], %s918
        // Predicated region
        $region129: #{tpu_custom_call.1} parent=103 // pred_check
          %p920 = pneg %p267
        $region130: #{tpu_custom_call.1} parent=103 // pred_check_branch
          %922 = sbr.rel (%p920) target = $region132
        $region131: #{tpu_custom_call.1} parent=103 // pred_region
          %923 = dma.done %s917, 16
        $region132: #{tpu_custom_call.1} parent=103 // pred_fallthru
          _
        %s924 = sand.u32 %s53, 1
        %s925 = scalar_lea.sflag [#allocation16], %s924
        %s926 = sand.u32 %s280, 1
        %s927 = scalar_lea.vmem [#allocation15], %s926
        // Predicated region
        $region133: #{tpu_custom_call.1} parent=103 // pred_check
          %p928 = pneg %p293
        $region134: #{tpu_custom_call.1} parent=103 // pred_check_branch
          %930 = sbr.rel (%p928) target = $region136
        $region135: #{tpu_custom_call.1} parent=103 // pred_region
          %931 = dma.done %s925, 16
        $region136: #{tpu_custom_call.1} parent=103 // pred_fallthru
          _
        %s932 = sand.u32 %s53, 1
        %s933 = scalar_lea.sflag [#allocation16], %s932
        %s934 = sand.u32 %s306, 1
        %s935 = scalar_lea.vmem [#allocation17], %s934
        // Predicated region
        $region137: #{tpu_custom_call.1} parent=103 // pred_check
          %p936 = pneg %p319
        $region138: #{tpu_custom_call.1} parent=103 // pred_check_branch
          %938 = sbr.rel (%p936) target = $region140
        $region139: #{tpu_custom_call.1} parent=103 // pred_region
          %939 = dma.done %s933, 16
        $region140: #{tpu_custom_call.1} parent=103 // pred_fallthru
          _
        %s940 = sand.u32 %s53, 1
        %s941 = scalar_lea.sflag [#allocation19], %s940
        %s942 = sand.u32 %s332, 1
        %s943 = smul.addr %s942, 256
        %s944 = scalar_lea.vmem [#allocation18], %s943
        // Predicated region
        $region141: #{tpu_custom_call.1} parent=103 // pred_check
          %p945 = pneg %p345
        $region142: #{tpu_custom_call.1} parent=103 // pred_check_branch
          %947 = sbr.rel (%p945) target = $region144
        $region143: #{tpu_custom_call.1} parent=103 // pred_region
          %948 = dma.done %s941, 4096
        $region144: #{tpu_custom_call.1} parent=103 // pred_fallthru
          _
        %s949 = sand.u32 %s53, 1
        %s950 = scalar_lea.sflag [#allocation19], %s949
        %s951 = sand.u32 %s384, 1
        %s952 = smul.addr %s951, 256
        %s953 = scalar_lea.vmem [#allocation20], %s952
        // Predicated region
        $region145: #{tpu_custom_call.1} parent=103 // pred_check
          %p954 = pneg %p397
        $region146: #{tpu_custom_call.1} parent=103 // pred_check_branch
          %956 = sbr.rel (%p954) target = $region148
        $region147: #{tpu_custom_call.1} parent=103 // pred_region
          %957 = dma.done %s950, 4096
        $region148: #{tpu_custom_call.1} parent=103 // pred_fallthru
          _
        %s958 = sand.u32 %s53, 1
        %s959 = scalar_lea.sflag [#allocation22], %s958
        %s960 = sand.u32 %s410, 1
        %s961 = scalar_lea.vmem [#allocation21], %s960
        // Predicated region
        $region149: #{tpu_custom_call.1} parent=103 // pred_check
          %p962 = pneg %p423
        $region150: #{tpu_custom_call.1} parent=103 // pred_check_branch
          %964 = sbr.rel (%p962) target = $region152
        $region151: #{tpu_custom_call.1} parent=103 // pred_region
          %965 = dma.done %s959, 16
        $region152: #{tpu_custom_call.1} parent=103 // pred_fallthru
          _
        // Predicated region
        $region153: #{tpu_custom_call.1} parent=103 // pred_check
          %p966 = pneg %p444
        $region154: #{tpu_custom_call.1} parent=103 // pred_check_branch
          %968 = sbr.rel (%p966) target = $region156
        $region155: #{tpu_custom_call.1} parent=103 // pred_region
          %969 = dma.done [#allocation22], 16
        $region156: #{tpu_custom_call.1} parent=103 // pred_fallthru
          _
        // Predicated region
        $region157: #{tpu_custom_call.1} parent=103 // pred_check
          %p970 = pneg %p465
        $region158: #{tpu_custom_call.1} parent=103 // pred_check_branch
          %972 = sbr.rel (%p970) target = $region160
        $region159: #{tpu_custom_call.1} parent=103 // pred_region
          %973 = dma.done [#allocation25], 16
        $region160: #{tpu_custom_call.1} parent=103 // pred_fallthru
          _
        // Predicated region
        $region161: #{tpu_custom_call.1} parent=103 // pred_check
          %p974 = pneg %p507
        $region162: #{tpu_custom_call.1} parent=103 // pred_check_branch
          %976 = sbr.rel (%p974) target = $region164
        $region163: #{tpu_custom_call.1} parent=103 // pred_region
          %977 = dma.done [#allocation25], 16
        $region164: #{tpu_custom_call.1} parent=103 // pred_fallthru
          _
        %p978 = pneg %p69
        %p979 = pneg %p66
        %p980 = pneg %p90
        %p981 = pneg %p87
        %p982 = pneg %p111
        %p983 = pneg %p108
        %s984 = sand.u32 %s53, 1
        %s985 = scalar_lea.sflag [#allocation7], %s984
        %s986 = sand.u32 %s124, 1
        %s987 = scalar_lea.vmem [#allocation6], %s986
        %p988 = pneg %p137
        %p989 = pneg %p134
        %s990 = sand.u32 %s53, 1
        %s991 = scalar_lea.sflag [#allocation7], %s990
        %s992 = sand.u32 %s150, 1
        %s993 = scalar_lea.vmem [#allocation8], %s992
        %p994 = pneg %p163
        %p995 = pneg %p160
        %s996 = sand.u32 %s53, 1
        %s997 = scalar_lea.sflag [#allocation10], %s996
        %s998 = sand.u32 %s176, 1
        %s999 = smul.addr %s998, 192
        %s1000 = scalar_lea.vmem [#allocation9], %s999
        %p1001 = pneg %p189
        %p1002 = pneg %p186
        %s1003 = sand.u32 %s53, 1
        %s1004 = scalar_lea.sflag [#allocation10], %s1003
        %s1005 = sand.u32 %s202, 1
        %s1006 = smul.addr %s1005, 3
        %s1007 = scalar_lea.vmem [#allocation11], %s1006
        %p1008 = pneg %p215
        %p1009 = pneg %p212
        %s1010 = sand.u32 %s53, 1
        %s1011 = scalar_lea.sflag [#allocation13], %s1010
        %s1012 = sand.u32 %s228, 1
        %s1013 = smul.addr %s1012, 64
        %s1014 = scalar_lea.vmem [#allocation12], %s1013
        %p1015 = pneg %p241
        %p1016 = pneg %p238
        %s1017 = sand.u32 %s53, 1
        %s1018 = scalar_lea.sflag [#allocation13], %s1017
        %s1019 = sand.u32 %s254, 1
        %s1020 = scalar_lea.vmem [#allocation14], %s1019
        %p1021 = pneg %p267
        %p1022 = pneg %p264
        %s1023 = sand.u32 %s53, 1
        %s1024 = scalar_lea.sflag [#allocation16], %s1023
        %s1025 = sand.u32 %s280, 1
        %s1026 = scalar_lea.vmem [#allocation15], %s1025
        %p1027 = pneg %p293
        %p1028 = pneg %p290
        %s1029 = sand.u32 %s53, 1
        %s1030 = scalar_lea.sflag [#allocation16], %s1029
        %s1031 = sand.u32 %s306, 1
        %s1032 = scalar_lea.vmem [#allocation17], %s1031
        %p1033 = pneg %p319
        %p1034 = pneg %p316
        %s1035 = sand.u32 %s53, 1
        %s1036 = scalar_lea.sflag [#allocation19], %s1035
        %s1037 = sand.u32 %s332, 1
        %s1038 = smul.addr %s1037, 256
        %s1039 = scalar_lea.vmem [#allocation18], %s1038
        %p1040 = pneg %p345
        %p1041 = pneg %p342
        %p1042 = scmp.lt.s32.totalorder %s53, 1
        %s1043 = scalar_select %p1042, %s53, 1
        %s1044 = smul.addr %s1043, 4
        %s1045 = scalar_lea.vmem %s12, %s1044
        %p1046 = pneg %p371
        %p1047 = pneg %p368
        %s1048 = sand.u32 %s53, 1
        %s1049 = scalar_lea.sflag [#allocation19], %s1048
        %s1050 = sand.u32 %s384, 1
        %s1051 = smul.addr %s1050, 256
        %s1052 = scalar_lea.vmem [#allocation20], %s1051
        %p1053 = pneg %p397
        %p1054 = pneg %p394
        %s1055 = sand.u32 %s53, 1
        %s1056 = scalar_lea.sflag [#allocation22], %s1055
        %s1057 = sand.u32 %s410, 1
        %s1058 = scalar_lea.vmem [#allocation21], %s1057
        %p1059 = pneg %p423
        %p1060 = pneg %p420
        %p1061 = pneg %p444
        %p1062 = pneg %p441
        %p1063 = pneg %p465
        %p1064 = pneg %p462
        %p1065 = pneg %p486
        %p1066 = pneg %p483
        %p1067 = pneg %p507
        %p1068 = pneg %p504
        %p1069 = pneg %p528
        %p1070 = pneg %p525
        %p1071 = pneg %p549
        %p1072 = pneg %p546
        %p1073 = pneg %p570
        %p1074 = pneg %p567
        %p1075 = scmp.lt.s32.totalorder %s53, 1
        %s1076 = scalar_select %p1075, %s53, 1
        %s1077 = smul.addr %s1076, 4
        %s1078 = scalar_lea.vmem %s12, %s1077
        %p1080 = scmp.eq.s32.totalorder %s53, 0
        // Predicated region
        $region165: #{tpu_custom_call.1} parent=103 // pred_check
          %p1081 = pneg %p1080
        $region166: #{tpu_custom_call.1} parent=103 // pred_check_branch
          %1083 = sbr.rel (%p1081) target = $region168
        $region167: #{tpu_custom_call.1} parent=103 // pred_region
          %v1084 = vld [vmem:[%s0] sm:$0xff]
          %v1085 = vld [vmem:[%s0 + $0x8] sm:$0xff]
          %v1086 = vld [vmem:[#allocation3] sm:$0xf]
          %v1087 = vld [vmem:[#allocation3 + $0x4] sm:$0xf]
          %v1088 = vld [vmem:[#allocation3 + $0x8] sm:$0xf]
          %v1089 = vld [vmem:[#allocation3 + $0xc] sm:$0xf]
          %v1090 = vld [vmem:[#allocation3 + $0x10] sm:$0xf]
          %v1091 = vld [vmem:[#allocation3 + $0x14] sm:$0xf]
          %v1092 = vld [vmem:[#allocation3 + $0x18] sm:$0xf]
          %v1093 = vld [vmem:[#allocation3 + $0x1c] sm:$0xf]
          %v1094 = vld [vmem:[#allocation3 + $0x20] sm:$0xf]
          %v1095 = vld [vmem:[#allocation3 + $0x24] sm:$0xf]
          %v1096 = vld [vmem:[#allocation3 + $0x28] sm:$0xf]
          %v1097 = vld [vmem:[#allocation3 + $0x2c] sm:$0xf]
          %v1098 = vld [vmem:[#allocation3 + $0x30] sm:$0xf]
          %v1099 = vld [vmem:[#allocation3 + $0x34] sm:$0xf]
          %v1100 = vld [vmem:[#allocation3 + $0x38] sm:$0xf]
          %v1101 = vld [vmem:[#allocation3 + $0x3c] sm:$0xf]
          %v1102 = vld [vmem:[#allocation3 + $0x40] sm:$0xf]
          %v1103 = vld [vmem:[#allocation3 + $0x44] sm:$0xf]
          %v1104 = vld [vmem:[#allocation3 + $0x48] sm:$0xf]
          %v1105 = vld [vmem:[#allocation3 + $0x4c] sm:$0xf]
          %v1106 = vld [vmem:[#allocation3 + $0x50] sm:$0xf]
          %v1107 = vld [vmem:[#allocation3 + $0x54] sm:$0xf]
          %v1108 = vld [vmem:[#allocation3 + $0x58] sm:$0xf]
          %v1109 = vld [vmem:[#allocation3 + $0x5c] sm:$0xf]
          %v1110 = vld [vmem:[#allocation3 + $0x60] sm:$0xf]
          %v1111 = vld [vmem:[#allocation3 + $0x64] sm:$0xf]
          %v1112 = vld [vmem:[#allocation3 + $0x68] sm:$0xf]
          %v1113 = vld [vmem:[#allocation3 + $0x6c] sm:$0xf]
          %v1114 = vld [vmem:[#allocation3 + $0x70] sm:$0xf]
          %v1115 = vld [vmem:[#allocation3 + $0x74] sm:$0xf]
          %v1116 = vld [vmem:[#allocation3 + $0x78] sm:$0xf]
          %v1117 = vld [vmem:[#allocation3 + $0x7c] sm:$0xf]
          %v1118 = vld [vmem:[%s1] sm:$0xff]
          %v1121 = vunpack.c.l.b16 %v1084
          %v1122 = vunpack.c.h.b16 %v1084
          %v1123 = vunpack.c.l.b16 %v1085
          %v1124 = vunpack.c.h.b16 %v1085
          %v1125 = vpack.c.b16 %v1123, %v1121
          %v1126 = vpack.c.b16 %v1124, %v1122
          %v1161 = vunpack.c.l.b16 %v1086
          %v1162 = vunpack.c.l.b16 %v1087
          %v1163 = vunpack.c.l.b16 %v1088
          %v1164 = vunpack.c.l.b16 %v1089
          %v1165 = vunpack.c.l.b16 %v1090
          %v1166 = vunpack.c.l.b16 %v1091
          %v1167 = vunpack.c.l.b16 %v1092
          %v1168 = vunpack.c.l.b16 %v1093
          %v1169 = vunpack.c.l.b16 %v1094
          %v1170 = vunpack.c.l.b16 %v1095
          %v1171 = vunpack.c.l.b16 %v1096
          %v1172 = vunpack.c.l.b16 %v1097
          %v1173 = vunpack.c.l.b16 %v1098
          %v1174 = vunpack.c.l.b16 %v1099
          %v1175 = vunpack.c.l.b16 %v1100
          %v1176 = vunpack.c.l.b16 %v1101
          %v1177 = vunpack.c.l.b16 %v1102
          %v1178 = vunpack.c.l.b16 %v1103
          %v1179 = vunpack.c.l.b16 %v1104
          %v1180 = vunpack.c.l.b16 %v1105
          %v1181 = vunpack.c.l.b16 %v1106
          %v1182 = vunpack.c.l.b16 %v1107
          %v1183 = vunpack.c.l.b16 %v1108
          %v1184 = vunpack.c.l.b16 %v1109
          %v1185 = vunpack.c.l.b16 %v1110
          %v1186 = vunpack.c.l.b16 %v1111
          %v1187 = vunpack.c.l.b16 %v1112
          %v1188 = vunpack.c.l.b16 %v1113
          %v1189 = vunpack.c.l.b16 %v1114
          %v1190 = vunpack.c.l.b16 %v1115
          %v1191 = vunpack.c.l.b16 %v1116
          %v1192 = vunpack.c.l.b16 %v1117
          %v1193 = vpack.c.b16 %v1162, %v1161
          %v1194 = vpack.c.b16 %v1164, %v1163
          %v1195 = vpack.c.b16 %v1166, %v1165
          %v1196 = vpack.c.b16 %v1168, %v1167
          %v1197 = vpack.c.b16 %v1170, %v1169
          %v1198 = vpack.c.b16 %v1172, %v1171
          %v1199 = vpack.c.b16 %v1174, %v1173
          %v1200 = vpack.c.b16 %v1176, %v1175
          %v1201 = vpack.c.b16 %v1178, %v1177
          %v1202 = vpack.c.b16 %v1180, %v1179
          %v1203 = vpack.c.b16 %v1182, %v1181
          %v1204 = vpack.c.b16 %v1184, %v1183
          %v1205 = vpack.c.b16 %v1186, %v1185
          %v1206 = vpack.c.b16 %v1188, %v1187
          %v1207 = vpack.c.b16 %v1190, %v1189
          %v1208 = vpack.c.b16 %v1192, %v1191
          %1225 = vmatprep.subr.bf16.mxu0 0
          %1226 = vmatpush1.bf16.msra.mxu0 %v1200
          %1227 = vmatprep.subr.bf16.mxu0 0
          %1228 = vmatpush1.bf16.msra.mxu0 %v1199
          %1229 = vmatprep.subr.bf16.mxu0 0
          %1230 = vmatpush1.bf16.msra.mxu0 %v1198
          %1231 = vmatprep.subr.bf16.mxu0 0
          %1232 = vmatpush1.bf16.msra.mxu0 %v1197
          %1233 = vmatprep.subr.bf16.mxu0 0
          %1234 = vmatpush1.bf16.msra.mxu0 %v1196
          %1235 = vmatprep.subr.bf16.mxu0 0
          %1236 = vmatpush1.bf16.msra.mxu0 %v1195
          %1237 = vmatprep.subr.bf16.mxu0 0
          %1238 = vmatpush1.bf16.msra.mxu0 %v1194
          %1239 = vmatprep.subr.bf16.mxu0 0
          %1240 = vmatpush1.bf16.msra.mxu0 %v1193
          %1241 = vmatprep.subr.bf16.mxu0 0
          %1242 = vmatpush2.bf16.msra.mxu0 %v1208
          %1243 = vmatprep.subr.bf16.mxu0 0
          %1244 = vmatpush2.bf16.msra.mxu0 %v1207
          %1245 = vmatprep.subr.bf16.mxu0 0
          %1246 = vmatpush2.bf16.msra.mxu0 %v1206
          %1247 = vmatprep.subr.bf16.mxu0 0
          %1248 = vmatpush2.bf16.msra.mxu0 %v1205
          %1249 = vmatprep.subr.bf16.mxu0 0
          %1250 = vmatpush2.bf16.msra.mxu0 %v1204
          %1251 = vmatprep.subr.bf16.mxu0 0
          %1252 = vmatpush2.bf16.msra.mxu0 %v1203
          %1253 = vmatprep.subr.bf16.mxu0 0
          %1254 = vmatpush2.bf16.msra.mxu0 %v1202
          %1255 = vmatprep.subr.bf16.mxu0 0
          %1256 = vmatpush2.bf16.msra.mxu0 %v1201
          %1257 = vmatprep.mubr.bf16.mxu0 %v1126
          %1258 = vmatmul.mubr.bf16.gmra.mxu0 %v1125
          %v1259 = vpop.f32.mrf.mxu0
          %v1260 = vadd.f32 %v1118, %v1259
          %v1261 = vpop.f32.mrf.mxu0
          %v1262 = vpop.f32.mrf.mxu0
          %v1263 = vadd.f32 %v1118, %v1262
          %v1264 = vpop.f32.mrf.mxu0
          %1265 = vdwg.mxu0
          %1266 = vst [vmem:[#allocation2] sm:$0xff] %v1260
          %1267 = vst [vmem:[#allocation2 + $0x8] sm:$0xff] %v1263
        $region168: #{tpu_custom_call.1} parent=103 // pred_fallthru
          _
        %v1268 = vld [vmem:[#allocation2] sm:$0xff]
        %v1269 = vld [vmem:[#allocation2 + $0x8] sm:$0xff]
        %v1270 = vlaneseq
        %v1271 = vand.u32 %v1270, 127
        %vm1272 = vcmp.lt.s32.totalorder %v1271, 5
        %v1273 = vld [vmem:[%s876] sm:$0x1]
        %v1274 = vld [vmem:[%s884] sm:$0x1]
        %1275 = vadd.xlane.f32.xlu0 %v1268
        %v1276 = vpop.xlane.xlu0 %1275
        %1277 = vadd.xlane.f32.xlu0 %v1269
        %v1278 = vpop.xlane.xlu0 %1277
        %v1279 = vrcp.pop 128.0
        %v1280 = vmul.f32 %v1276, %v1279
        %v1281 = vmul.f32 %v1278, %v1279
        %v1282 = vsub.f32 %v1268, %v1280
        %v1283 = vsub.f32 %v1269, %v1281
        %v1284 = vmul.f32 %v1282, %v1282
        %v1285 = vmul.f32 %v1283, %v1283
        %1286 = vadd.xlane.f32.xlu0 %v1284
        %v1287 = vpop.xlane.xlu0 %1286
        %1288 = vadd.xlane.f32.xlu0 %v1285
        %v1289 = vpop.xlane.xlu0 %1288
        %v1290 = vmul.f32 %v1287, %v1279
        %v1291 = vmul.f32 %v1289, %v1279
        %v1292 = vadd.f32 %v1290, 1e-05
        %v1293 = vadd.f32 %v1291, 1e-05
        %v1294 = vrsqrt.pop %v1292
        %v1295 = vrsqrt.pop %v1293
        %v1296 = vmul.f32 %v1282, %v1294
        %v1297 = vmul.f32 %v1283, %v1295
        %v1299 = vlaneseq
        %v1300 = vshrl.u32 %v1299, 7
        %v1301 = vsub.s32 0, %v1300
        %v1302 = vrot.slane %v1273, %v1301
        %v1304 = vmul.f32 %v1296, %v1302
        %v1305 = vmul.f32 %v1297, %v1302
        %v1307 = vlaneseq
        %v1308 = vshrl.u32 %v1307, 7
        %v1309 = vsub.s32 0, %v1308
        %v1310 = vrot.slane %v1274, %v1309
        %v1312 = vadd.f32 %v1304, %v1310
        %v1313 = vadd.f32 %v1305, %v1310
        %v1314 = vpack.c.bf16 %v1313, %v1312
        %v1315 = vld [vmem:[%s893] sm:$0xff]
        %v1316 = vld [vmem:[%s893 + $0x8] sm:$0xf]
        %v1317 = vld [vmem:[%s893 + $0xc] sm:$0xff]
        %v1318 = vld [vmem:[%s893 + $0x14] sm:$0xf]
        %v1319 = vld [vmem:[%s893 + $0x18] sm:$0xff]
        %v1320 = vld [vmem:[%s893 + $0x20] sm:$0xf]
        %v1321 = vld [vmem:[%s893 + $0x24] sm:$0xff]
        %v1322 = vld [vmem:[%s893 + $0x2c] sm:$0xf]
        %v1323 = vld [vmem:[%s893 + $0x30] sm:$0xff]
        %v1324 = vld [vmem:[%s893 + $0x38] sm:$0xf]
        %v1325 = vld [vmem:[%s893 + $0x3c] sm:$0xff]
        %v1326 = vld [vmem:[%s893 + $0x44] sm:$0xf]
        %v1327 = vld [vmem:[%s893 + $0x48] sm:$0xff]
        %v1328 = vld [vmem:[%s893 + $0x50] sm:$0xf]
        %v1329 = vld [vmem:[%s893 + $0x54] sm:$0xff]
        %v1330 = vld [vmem:[%s893 + $0x5c] sm:$0xf]
        %v1331 = vld [vmem:[%s893 + $0x60] sm:$0xff]
        %v1332 = vld [vmem:[%s893 + $0x68] sm:$0xf]
        %v1333 = vld [vmem:[%s893 + $0x6c] sm:$0xff]
        %v1334 = vld [vmem:[%s893 + $0x74] sm:$0xf]
        %v1335 = vld [vmem:[%s893 + $0x78] sm:$0xff]
        %v1336 = vld [vmem:[%s893 + $0x80] sm:$0xf]
        %v1337 = vld [vmem:[%s893 + $0x84] sm:$0xff]
        %v1338 = vld [vmem:[%s893 + $0x8c] sm:$0xf]
        %v1339 = vld [vmem:[%s893 + $0x90] sm:$0xff]
        %v1340 = vld [vmem:[%s893 + $0x98] sm:$0xf]
        %v1341 = vld [vmem:[%s893 + $0x9c] sm:$0xff]
        %v1342 = vld [vmem:[%s893 + $0xa4] sm:$0xf]
        %v1343 = vld [vmem:[%s893 + $0xa8] sm:$0xff]
        %v1344 = vld [vmem:[%s893 + $0xb0] sm:$0xf]
        %v1345 = vld [vmem:[%s893 + $0xb4] sm:$0xff]
        %v1346 = vld [vmem:[%s893 + $0xbc] sm:$0xf]
        %v1347 = vld [vmem:[%s902] sm:$0x7]
        %v1349 = vlaneseq
        %v1350 = vshrl.u32 %v1349, 7
        %v1351 = vsub.s32 0, %v1350
        %v1352 = vrot.slane %v1347, %v1351
        %v1353 = vlaneseq
        %v1354 = vshrl.u32 %v1353, 7
        %v1355 = vsub.s32 1, %v1354
        %v1356 = vrot.slane %v1347, %v1355
        %v1357 = vlaneseq
        %v1358 = vshrl.u32 %v1357, 7
        %v1359 = vsub.s32 2, %v1358
        %v1360 = vrot.slane %v1347, %v1359
        %v1396 = vunpack.c.l.b16 %v1315
        %v1397 = vunpack.c.h.b16 %v1315
        %v1398 = vunpack.c.l.b16 %v1316
        %v1399 = vunpack.c.l.b16 %v1317
        %v1400 = vunpack.c.h.b16 %v1317
        %v1401 = vunpack.c.l.b16 %v1318
        %v1402 = vunpack.c.l.b16 %v1319
        %v1403 = vunpack.c.h.b16 %v1319
        %v1404 = vunpack.c.l.b16 %v1320
        %v1405 = vunpack.c.l.b16 %v1321
        %v1406 = vunpack.c.h.b16 %v1321
        %v1407 = vunpack.c.l.b16 %v1322
        %v1408 = vunpack.c.l.b16 %v1323
        %v1409 = vunpack.c.h.b16 %v1323
        %v1410 = vunpack.c.l.b16 %v1324
        %v1411 = vunpack.c.l.b16 %v1325
        %v1412 = vunpack.c.h.b16 %v1325
        %v1413 = vunpack.c.l.b16 %v1326
        %v1414 = vunpack.c.l.b16 %v1327
        %v1415 = vunpack.c.h.b16 %v1327
        %v1416 = vunpack.c.l.b16 %v1328
        %v1417 = vunpack.c.l.b16 %v1329
        %v1418 = vunpack.c.h.b16 %v1329
        %v1419 = vunpack.c.l.b16 %v1330
        %v1420 = vunpack.c.l.b16 %v1331
        %v1421 = vunpack.c.h.b16 %v1331
        %v1422 = vunpack.c.l.b16 %v1332
        %v1423 = vunpack.c.l.b16 %v1333
        %v1424 = vunpack.c.h.b16 %v1333
        %v1425 = vunpack.c.l.b16 %v1334
        %v1426 = vunpack.c.l.b16 %v1335
        %v1427 = vunpack.c.h.b16 %v1335
        %v1428 = vunpack.c.l.b16 %v1336
        %v1429 = vunpack.c.l.b16 %v1337
        %v1430 = vunpack.c.h.b16 %v1337
        %v1431 = vunpack.c.l.b16 %v1338
        %v1432 = vunpack.c.l.b16 %v1339
        %v1433 = vunpack.c.h.b16 %v1339
        %v1434 = vunpack.c.l.b16 %v1340
        %v1435 = vunpack.c.l.b16 %v1341
        %v1436 = vunpack.c.h.b16 %v1341
        %v1437 = vunpack.c.l.b16 %v1342
        %v1438 = vunpack.c.l.b16 %v1343
        %v1439 = vunpack.c.h.b16 %v1343
        %v1440 = vunpack.c.l.b16 %v1344
        %v1441 = vunpack.c.l.b16 %v1345
        %v1442 = vunpack.c.h.b16 %v1345
        %v1443 = vunpack.c.l.b16 %v1346
        %v1444 = vpack.c.b16 %v1399, %v1396
        %v1445 = vpack.c.b16 %v1400, %v1397
        %v1446 = vpack.c.b16 %v1401, %v1398
        %v1447 = vpack.c.b16 %v1405, %v1402
        %v1448 = vpack.c.b16 %v1406, %v1403
        %v1449 = vpack.c.b16 %v1407, %v1404
        %v1450 = vpack.c.b16 %v1411, %v1408
        %v1451 = vpack.c.b16 %v1412, %v1409
        %v1452 = vpack.c.b16 %v1413, %v1410
        %v1453 = vpack.c.b16 %v1417, %v1414
        %v1454 = vpack.c.b16 %v1418, %v1415
        %v1455 = vpack.c.b16 %v1419, %v1416
        %v1456 = vpack.c.b16 %v1423, %v1420
        %v1457 = vpack.c.b16 %v1424, %v1421
        %v1458 = vpack.c.b16 %v1425, %v1422
        %v1459 = vpack.c.b16 %v1429, %v1426
        %v1460 = vpack.c.b16 %v1430, %v1427
        %v1461 = vpack.c.b16 %v1431, %v1428
        %v1462 = vpack.c.b16 %v1435, %v1432
        %v1463 = vpack.c.b16 %v1436, %v1433
        %v1464 = vpack.c.b16 %v1437, %v1434
        %v1465 = vpack.c.b16 %v1441, %v1438
        %v1466 = vpack.c.b16 %v1442, %v1439
        %v1467 = vpack.c.b16 %v1443, %v1440
        %1492 = vmatprep.subr.bf16.mxu0 %v1466
        %1493 = vmatpush1.bf16.msra.mxu0 %v1465
        %1494 = vmatprep.subr.bf16.mxu0 %v1463
        %1495 = vmatpush1.bf16.msra.mxu0 %v1462
        %1496 = vmatprep.subr.bf16.mxu0 %v1460
        %1497 = vmatpush1.bf16.msra.mxu0 %v1459
        %1498 = vmatprep.subr.bf16.mxu0 %v1457
        %1499 = vmatpush1.bf16.msra.mxu0 %v1456
        %1500 = vmatprep.subr.bf16.mxu0 %v1454
        %1501 = vmatpush1.bf16.msra.mxu0 %v1453
        %1502 = vmatprep.subr.bf16.mxu0 %v1451
        %1503 = vmatpush1.bf16.msra.mxu0 %v1450
        %1504 = vmatprep.subr.bf16.mxu0 %v1448
        %1505 = vmatpush1.bf16.msra.mxu0 %v1447
        %1506 = vmatprep.subr.bf16.mxu0 %v1445
        %1507 = vmatpush1.bf16.msra.mxu0 %v1444
        %1508 = vmatprep.subr.bf16.mxu0 0
        %1509 = vmatpush2.bf16.msra.mxu0 0
        %1510 = vmatprep.subr.bf16.mxu0 0
        %1511 = vmatpush2.bf16.msra.mxu0 0
        %1512 = vmatprep.subr.bf16.mxu0 0
        %1513 = vmatpush2.bf16.msra.mxu0 0
        %1514 = vmatprep.subr.bf16.mxu0 0
        %1515 = vmatpush2.bf16.msra.mxu0 0
        %1516 = vmatprep.subr.bf16.mxu0 0
        %1517 = vmatpush2.bf16.msra.mxu0 0
        %1518 = vmatprep.subr.bf16.mxu0 0
        %1519 = vmatpush2.bf16.msra.mxu0 0
        %1520 = vmatprep.subr.bf16.mxu0 0
        %1521 = vmatpush2.bf16.msra.mxu0 0
        %1522 = vmatprep.subr.bf16.mxu0 0
        %1523 = vmatpush2.bf16.msra.mxu0 0
        %1524 = vmatprep.mubr.bf16.mxu0 0
        %1525 = vmatmul.mubr.bf16.gmra.mxu0 %v1314
        %v1526 = vpop.f32.mrf.mxu0
        %v1527 = vadd.f32 %v1352, %v1526
        %v1528 = vpop.f32.mrf.mxu0
        %v1529 = vadd.f32 %v1356, %v1528
        %v1530 = vpop.f32.mrf.mxu0
        %v1531 = vadd.f32 %v1352, %v1530
        %v1532 = vpop.f32.mrf.mxu0
        %v1533 = vadd.f32 %v1356, %v1532
        %1534 = vdwg.mxu0
        %1535 = vmatprep.subr.bf16.mxu0 0
        %1536 = vmatpush1.bf16.msra.mxu0 %v1467
        %1537 = vmatprep.subr.bf16.mxu0 0
        %1538 = vmatpush1.bf16.msra.mxu0 %v1464
        %1539 = vmatprep.subr.bf16.mxu0 0
        %1540 = vmatpush1.bf16.msra.mxu0 %v1461
        %1541 = vmatprep.subr.bf16.mxu0 0
        %1542 = vmatpush1.bf16.msra.mxu0 %v1458
        %1543 = vmatprep.subr.bf16.mxu0 0
        %1544 = vmatpush1.bf16.msra.mxu0 %v1455
        %1545 = vmatprep.subr.bf16.mxu0 0
        %1546 = vmatpush1.bf16.msra.mxu0 %v1452
        %1547 = vmatprep.subr.bf16.mxu0 0
        %1548 = vmatpush1.bf16.msra.mxu0 %v1449
        %1549 = vmatprep.subr.bf16.mxu0 0
        %1550 = vmatpush1.bf16.msra.mxu0 %v1446
        %1551 = vmatprep.subr.bf16.mxu0 0
        %1552 = vmatpush2.bf16.msra.mxu0 0
        %1553 = vmatprep.subr.bf16.mxu0 0
        %1554 = vmatpush2.bf16.msra.mxu0 0
        %1555 = vmatprep.subr.bf16.mxu0 0
        %1556 = vmatpush2.bf16.msra.mxu0 0
        %1557 = vmatprep.subr.bf16.mxu0 0
        %1558 = vmatpush2.bf16.msra.mxu0 0
        %1559 = vmatprep.subr.bf16.mxu0 0
        %1560 = vmatpush2.bf16.msra.mxu0 0
        %1561 = vmatprep.subr.bf16.mxu0 0
        %1562 = vmatpush2.bf16.msra.mxu0 0
        %1563 = vmatprep.subr.bf16.mxu0 0
        %1564 = vmatpush2.bf16.msra.mxu0 0
        %1565 = vmatprep.subr.bf16.mxu0 0
        %1566 = vmatpush2.bf16.msra.mxu0 0
        %1567 = vmatprep.mubr.bf16.mxu0 0
        %1568 = vmatmul.mubr.bf16.gmra.mxu0 %v1314
        %v1569 = vpop.f32.mrf.mxu0
        %v1570 = vadd.f32 %v1360, %v1569
        %v1571 = vpop.f32.mrf.mxu0
        %v1572 = vpop.f32.mrf.mxu0
        %v1573 = vadd.f32 %v1360, %v1572
        %v1574 = vpop.f32.mrf.mxu0
        %1575 = vdwg.mxu0
        %v1576 = vpack.c.bf16 %v1527, %v1527
        %v1577 = vpack.c.bf16 %v1531, %v1531
        %v1578 = vpack.c.bf16 %v1529, %v1529
        %v1579 = vpack.c.bf16 %v1533, %v1533
        %v1580 = vpack.c.bf16 %v1570, %v1570
        %v1581 = vpack.c.bf16 %v1573, %v1573
        %vm1582 = vcmask 523264
        %v1584 = vsel %vm1582, %v1576, 0
        %v1587 = vsel %vm1582, %v1578, 0
        %1589 = vmatprep.subr.bf16.mxu0 0
        %1590 = vmatpush1.bf16.xpose.msra.mxu0 0
        %1591 = vmatprep.subr.bf16.mxu0 0
        %1592 = vmatpush1.bf16.xpose.msra.mxu0 0
        %1593 = vmatprep.subr.bf16.mxu0 0
        %1594 = vmatpush1.bf16.xpose.msra.mxu0 0
        %1595 = vmatprep.subr.bf16.mxu0 0
        %1596 = vmatpush1.bf16.xpose.msra.mxu0 0
        %1597 = vmatprep.subr.bf16.mxu0 0
        %1598 = vmatpush1.bf16.xpose.msra.mxu0 0
        %1599 = vmatprep.subr.bf16.mxu0 0
        %1600 = vmatpush1.bf16.xpose.msra.mxu0 0
        %1601 = vmatprep.subr.bf16.mxu0 0
        %1602 = vmatpush1.bf16.xpose.msra.mxu0 0
        %1603 = vmatprep.subr.bf16.mxu0 0
        %1604 = vmatpush1.bf16.xpose.msra.mxu0 %v1587
        %1605 = vmatprep.subr.bf16.mxu0 0
        %1606 = vmatpush2.bf16.xpose.msra.mxu0 0
        %1607 = vmatprep.subr.bf16.mxu0 0
        %1608 = vmatpush2.bf16.xpose.msra.mxu0 0
        %1609 = vmatprep.subr.bf16.mxu0 0
        %1610 = vmatpush2.bf16.xpose.msra.mxu0 0
        %1611 = vmatprep.subr.bf16.mxu0 0
        %1612 = vmatpush2.bf16.xpose.msra.mxu0 0
        %1613 = vmatprep.subr.bf16.mxu0 0
        %1614 = vmatpush2.bf16.xpose.msra.mxu0 0
        %1615 = vmatprep.subr.bf16.mxu0 0
        %1616 = vmatpush2.bf16.xpose.msra.mxu0 0
        %1617 = vmatprep.subr.bf16.mxu0 0
        %1618 = vmatpush2.bf16.xpose.msra.mxu0 0
        %1619 = vmatprep.subr.bf16.mxu0 0
        %1620 = vmatpush2.bf16.xpose.msra.mxu0 0
        %1621 = vmatprep.mubr.bf16.mxu0 0
        %1622 = vmatmul.mubr.bf16.gmra.mxu0 %v1584
        %v1623 = vpop.f32.mrf.mxu0
        %v1624 = vadd.f32 0.0, %v1623
        %v1625 = vpop.f32.mrf.mxu0
        %v1626 = vpop.f32.mrf.mxu0
        %v1627 = vpop.f32.mrf.mxu0
        %1628 = vdwg.mxu0
        %v1630 = vsel %vm1582, %v1577, 0
        %v1633 = vsel %vm1582, %v1579, 0
        %1635 = vmatprep.subr.bf16.mxu0 0
        %1636 = vmatpush1.bf16.xpose.msra.mxu0 0
        %1637 = vmatprep.subr.bf16.mxu0 0
        %1638 = vmatpush1.bf16.xpose.msra.mxu0 0
        %1639 = vmatprep.subr.bf16.mxu0 0
        %1640 = vmatpush1.bf16.xpose.msra.mxu0 0
        %1641 = vmatprep.subr.bf16.mxu0 0
        %1642 = vmatpush1.bf16.xpose.msra.mxu0 0
        %1643 = vmatprep.subr.bf16.mxu0 0
        %1644 = vmatpush1.bf16.xpose.msra.mxu0 0
        %1645 = vmatprep.subr.bf16.mxu0 0
        %1646 = vmatpush1.bf16.xpose.msra.mxu0 0
        %1647 = vmatprep.subr.bf16.mxu0 0
        %1648 = vmatpush1.bf16.xpose.msra.mxu0 0
        %1649 = vmatprep.subr.bf16.mxu0 0
        %1650 = vmatpush1.bf16.xpose.msra.mxu0 %v1633
        %1651 = vmatprep.subr.bf16.mxu0 0
        %1652 = vmatpush2.bf16.xpose.msra.mxu0 0
        %1653 = vmatprep.subr.bf16.mxu0 0
        %1654 = vmatpush2.bf16.xpose.msra.mxu0 0
        %1655 = vmatprep.subr.bf16.mxu0 0
        %1656 = vmatpush2.bf16.xpose.msra.mxu0 0
        %1657 = vmatprep.subr.bf16.mxu0 0
        %1658 = vmatpush2.bf16.xpose.msra.mxu0 0
        %1659 = vmatprep.subr.bf16.mxu0 0
        %1660 = vmatpush2.bf16.xpose.msra.mxu0 0
        %1661 = vmatprep.subr.bf16.mxu0 0
        %1662 = vmatpush2.bf16.xpose.msra.mxu0 0
        %1663 = vmatprep.subr.bf16.mxu0 0
        %1664 = vmatpush2.bf16.xpose.msra.mxu0 0
        %1665 = vmatprep.subr.bf16.mxu0 0
        %1666 = vmatpush2.bf16.xpose.msra.mxu0 0
        %1667 = vmatprep.mubr.bf16.mxu0 0
        %1668 = vmatmul.mubr.bf16.gmra.mxu0 %v1630
        %v1669 = vpop.f32.mrf.mxu0
        %v1670 = vadd.f32 0.0, %v1669
        %v1671 = vpop.f32.mrf.mxu0
        %v1672 = vpop.f32.mrf.mxu0
        %v1673 = vpop.f32.mrf.mxu0
        %1674 = vdwg.mxu0
        %v1675 = vmul.f32 %v1624, 0.125
        %v1676 = vmul.f32 %v1670, 0.125
        %v1677 = vsel %vm1272, 1, 0
        %vm1678 = vcmp.eq.s32.totalorder %v1677, 1
        %v1679 = vsel %vm1678, %v1675, -1e+30
        %v1680 = vsel %vm1678, %v1676, -1e+30
        %vm1681 = vcmask 64512
        %v1682 = vsel %vm1681, %v1679, -inf
        %1683 = vmax.xlane.f32.xlu0 %v1682
        %v1684 = vpop.xlane.xlu0 %1683
        %v1685 = vsel %vm1681, %v1680, -inf
        %1686 = vmax.xlane.f32.xlu0 %v1685
        %v1687 = vpop.xlane.xlu0 %1686
        %v1688 = vsub.f32 %v1679, %v1684
        %v1689 = vsub.f32 %v1680, %v1687
        %v1690 = vmul.f32 %v1688, 1.442695
        %v1691 = vpow.pop %v1690
        %v1692 = vmul.f32 %v1689, 1.442695
        %v1693 = vpow.pop %v1692
        %v1694 = vsel %vm1681, %v1691, 0.0
        %1695 = vadd.xlane.f32.xlu0 %v1694
        %v1696 = vpop.xlane.xlu0 %1695
        %v1697 = vsel %vm1681, %v1693, 0.0
        %1698 = vadd.xlane.f32.xlu0 %v1697
        %v1699 = vpop.xlane.xlu0 %1698
        %v1700 = vrcp.pop %v1696
        %v1701 = vrcp.pop %v1699
        %v1702 = vmul.f32 %v1691, %v1700
        %v1703 = vmul.f32 %v1693, %v1701
        %v1704 = vpack.c.bf16 %v1702, %v1702
        %v1705 = vpack.c.bf16 %v1703, %v1703
        %v1707 = vsel %vm1681, %v1704, 0
        %vm1709 = vcmask 1043456
        %v1711 = vsel %vm1709, %v1580, 0
        %1713 = vmatprep.subr.bf16.mxu0 0
        %1714 = vmatpush1.bf16.msra.mxu0 0
        %1715 = vmatprep.subr.bf16.mxu0 0
        %1716 = vmatpush1.bf16.msra.mxu0 0
        %1717 = vmatprep.subr.bf16.mxu0 0
        %1718 = vmatpush1.bf16.msra.mxu0 0
        %1719 = vmatprep.subr.bf16.mxu0 0
        %1720 = vmatpush1.bf16.msra.mxu0 0
        %1721 = vmatprep.subr.bf16.mxu0 0
        %1722 = vmatpush1.bf16.msra.mxu0 0
        %1723 = vmatprep.subr.bf16.mxu0 0
        %1724 = vmatpush1.bf16.msra.mxu0 0
        %1725 = vmatprep.subr.bf16.mxu0 0
        %1726 = vmatpush1.bf16.msra.mxu0 0
        %1727 = vmatprep.subr.bf16.mxu0 0
        %1728 = vmatpush1.bf16.msra.mxu0 %v1711
        %1729 = vmatprep.subr.bf16.mxu0 0
        %1730 = vmatpush2.bf16.msra.mxu0 0
        %1731 = vmatprep.subr.bf16.mxu0 0
        %1732 = vmatpush2.bf16.msra.mxu0 0
        %1733 = vmatprep.subr.bf16.mxu0 0
        %1734 = vmatpush2.bf16.msra.mxu0 0
        %1735 = vmatprep.subr.bf16.mxu0 0
        %1736 = vmatpush2.bf16.msra.mxu0 0
        %1737 = vmatprep.subr.bf16.mxu0 0
        %1738 = vmatpush2.bf16.msra.mxu0 0
        %1739 = vmatprep.subr.bf16.mxu0 0
        %1740 = vmatpush2.bf16.msra.mxu0 0
        %1741 = vmatprep.subr.bf16.mxu0 0
        %1742 = vmatpush2.bf16.msra.mxu0 0
        %1743 = vmatprep.subr.bf16.mxu0 0
        %1744 = vmatpush2.bf16.msra.mxu0 0
        %1745 = vmatprep.mubr.bf16.mxu0 0
        %1746 = vmatmul.mubr.bf16.gmra.mxu0 %v1707
        %v1747 = vpop.f32.mrf.mxu0
        %v1748 = vadd.f32 0.0, %v1747
        %v1749 = vpop.f32.mrf.mxu0
        %v1750 = vpop.f32.mrf.mxu0
        %v1751 = vpop.f32.mrf.mxu0
        %1752 = vdwg.mxu0
        %v1754 = vsel %vm1681, %v1705, 0
        %v1757 = vsel %vm1709, %v1581, 0
        %1759 = vmatprep.subr.bf16.mxu0 0
        %1760 = vmatpush1.bf16.msra.mxu0 0
        %1761 = vmatprep.subr.bf16.mxu0 0
        %1762 = vmatpush1.bf16.msra.mxu0 0
        %1763 = vmatprep.subr.bf16.mxu0 0
        %1764 = vmatpush1.bf16.msra.mxu0 0
        %1765 = vmatprep.subr.bf16.mxu0 0
        %1766 = vmatpush1.bf16.msra.mxu0 0
        %1767 = vmatprep.subr.bf16.mxu0 0
        %1768 = vmatpush1.bf16.msra.mxu0 0
        %1769 = vmatprep.subr.bf16.mxu0 0
        %1770 = vmatpush1.bf16.msra.mxu0 0
        %1771 = vmatprep.subr.bf16.mxu0 0
        %1772 = vmatpush1.bf16.msra.mxu0 0
        %1773 = vmatprep.subr.bf16.mxu0 0
        %1774 = vmatpush1.bf16.msra.mxu0 %v1757
        %1775 = vmatprep.subr.bf16.mxu0 0
        %1776 = vmatpush2.bf16.msra.mxu0 0
        %1777 = vmatprep.subr.bf16.mxu0 0
        %1778 = vmatpush2.bf16.msra.mxu0 0
        %1779 = vmatprep.subr.bf16.mxu0 0
        %1780 = vmatpush2.bf16.msra.mxu0 0
        %1781 = vmatprep.subr.bf16.mxu0 0
        %1782 = vmatpush2.bf16.msra.mxu0 0
        %1783 = vmatprep.subr.bf16.mxu0 0
        %1784 = vmatpush2.bf16.msra.mxu0 0
        %1785 = vmatprep.subr.bf16.mxu0 0
        %1786 = vmatpush2.bf16.msra.mxu0 0
        %1787 = vmatprep.subr.bf16.mxu0 0
        %1788 = vmatpush2.bf16.msra.mxu0 0
        %1789 = vmatprep.subr.bf16.mxu0 0
        %1790 = vmatpush2.bf16.msra.mxu0 0
        %1791 = vmatprep.mubr.bf16.mxu0 0
        %1792 = vmatmul.mubr.bf16.gmra.mxu0 %v1754
        %v1793 = vpop.f32.mrf.mxu0
        %v1794 = vadd.f32 0.0, %v1793
        %v1795 = vpop.f32.mrf.mxu0
        %v1796 = vpop.f32.mrf.mxu0
        %v1797 = vpop.f32.mrf.mxu0
        %1798 = vdwg.mxu0
        %1800 = vrot.lane.b32.xlu0 %v1576, 64
        %v1801 = vpop.permute.xlu0 %1800
        %1803 = vrot.lane.b32.xlu0 %v1578, 64
        %v1804 = vpop.permute.xlu0 %1803
        %v1806 = vsel %vm1582, %v1801, 0
        %v1809 = vsel %vm1582, %v1804, 0
        %1811 = vmatprep.subr.bf16.mxu0 0
        %1812 = vmatpush1.bf16.xpose.msra.mxu0 0
        %1813 = vmatprep.subr.bf16.mxu0 0
        %1814 = vmatpush1.bf16.xpose.msra.mxu0 0
        %1815 = vmatprep.subr.bf16.mxu0 0
        %1816 = vmatpush1.bf16.xpose.msra.mxu0 0
        %1817 = vmatprep.subr.bf16.mxu0 0
        %1818 = vmatpush1.bf16.xpose.msra.mxu0 0
        %1819 = vmatprep.subr.bf16.mxu0 0
        %1820 = vmatpush1.bf16.xpose.msra.mxu0 0
        %1821 = vmatprep.subr.bf16.mxu0 0
        %1822 = vmatpush1.bf16.xpose.msra.mxu0 0
        %1823 = vmatprep.subr.bf16.mxu0 0
        %1824 = vmatpush1.bf16.xpose.msra.mxu0 0
        %1825 = vmatprep.subr.bf16.mxu0 0
        %1826 = vmatpush1.bf16.xpose.msra.mxu0 %v1809
        %1827 = vmatprep.subr.bf16.mxu0 0
        %1828 = vmatpush2.bf16.xpose.msra.mxu0 0
        %1829 = vmatprep.subr.bf16.mxu0 0
        %1830 = vmatpush2.bf16.xpose.msra.mxu0 0
        %1831 = vmatprep.subr.bf16.mxu0 0
        %1832 = vmatpush2.bf16.xpose.msra.mxu0 0
        %1833 = vmatprep.subr.bf16.mxu0 0
        %1834 = vmatpush2.bf16.xpose.msra.mxu0 0
        %1835 = vmatprep.subr.bf16.mxu0 0
        %1836 = vmatpush2.bf16.xpose.msra.mxu0 0
        %1837 = vmatprep.subr.bf16.mxu0 0
        %1838 = vmatpush2.bf16.xpose.msra.mxu0 0
        %1839 = vmatprep.subr.bf16.mxu0 0
        %1840 = vmatpush2.bf16.xpose.msra.mxu0 0
        %1841 = vmatprep.subr.bf16.mxu0 0
        %1842 = vmatpush2.bf16.xpose.msra.mxu0 0
        %1843 = vmatprep.mubr.bf16.mxu0 0
        %1844 = vmatmul.mubr.bf16.gmra.mxu0 %v1806
        %v1845 = vpop.f32.mrf.mxu0
        %v1846 = vadd.f32 0.0, %v1845
        %v1847 = vpop.f32.mrf.mxu0
        %v1848 = vpop.f32.mrf.mxu0
        %v1849 = vpop.f32.mrf.mxu0
        %1850 = vdwg.mxu0
        %1852 = vrot.lane.b32.xlu0 %v1577, 64
        %v1853 = vpop.permute.xlu0 %1852
        %1855 = vrot.lane.b32.xlu0 %v1579, 64
        %v1856 = vpop.permute.xlu0 %1855
        %v1858 = vsel %vm1582, %v1853, 0
        %v1861 = vsel %vm1582, %v1856, 0
        %1863 = vmatprep.subr.bf16.mxu0 0
        %1864 = vmatpush1.bf16.xpose.msra.mxu0 0
        %1865 = vmatprep.subr.bf16.mxu0 0
        %1866 = vmatpush1.bf16.xpose.msra.mxu0 0
        %1867 = vmatprep.subr.bf16.mxu0 0
        %1868 = vmatpush1.bf16.xpose.msra.mxu0 0
        %1869 = vmatprep.subr.bf16.mxu0 0
        %1870 = vmatpush1.bf16.xpose.msra.mxu0 0
        %1871 = vmatprep.subr.bf16.mxu0 0
        %1872 = vmatpush1.bf16.xpose.msra.mxu0 0
        %1873 = vmatprep.subr.bf16.mxu0 0
        %1874 = vmatpush1.bf16.xpose.msra.mxu0 0
        %1875 = vmatprep.subr.bf16.mxu0 0
        %1876 = vmatpush1.bf16.xpose.msra.mxu0 0
        %1877 = vmatprep.subr.bf16.mxu0 0
        %1878 = vmatpush1.bf16.xpose.msra.mxu0 %v1861
        %1879 = vmatprep.subr.bf16.mxu0 0
        %1880 = vmatpush2.bf16.xpose.msra.mxu0 0
        %1881 = vmatprep.subr.bf16.mxu0 0
        %1882 = vmatpush2.bf16.xpose.msra.mxu0 0
        %1883 = vmatprep.subr.bf16.mxu0 0
        %1884 = vmatpush2.bf16.xpose.msra.mxu0 0
        %1885 = vmatprep.subr.bf16.mxu0 0
        %1886 = vmatpush2.bf16.xpose.msra.mxu0 0
        %1887 = vmatprep.subr.bf16.mxu0 0
        %1888 = vmatpush2.bf16.xpose.msra.mxu0 0
        %1889 = vmatprep.subr.bf16.mxu0 0
        %1890 = vmatpush2.bf16.xpose.msra.mxu0 0
        %1891 = vmatprep.subr.bf16.mxu0 0
        %1892 = vmatpush2.bf16.xpose.msra.mxu0 0
        %1893 = vmatprep.subr.bf16.mxu0 0
        %1894 = vmatpush2.bf16.xpose.msra.mxu0 0
        %1895 = vmatprep.mubr.bf16.mxu0 0
        %1896 = vmatmul.mubr.bf16.gmra.mxu0 %v1858
        %v1897 = vpop.f32.mrf.mxu0
        %v1898 = vadd.f32 0.0, %v1897
        %v1899 = vpop.f32.mrf.mxu0
        %v1900 = vpop.f32.mrf.mxu0
        %v1901 = vpop.f32.mrf.mxu0
        %1902 = vdwg.mxu0
        %v1903 = vmul.f32 %v1846, 0.125
        %v1904 = vmul.f32 %v1898, 0.125
        %v1905 = vsel %vm1678, %v1903, -1e+30
        %v1906 = vsel %vm1678, %v1904, -1e+30
        %v1907 = vsel %vm1681, %v1905, -inf
        %1908 = vmax.xlane.f32.xlu0 %v1907
        %v1909 = vpop.xlane.xlu0 %1908
        %v1910 = vsel %vm1681, %v1906, -inf
        %1911 = vmax.xlane.f32.xlu0 %v1910
        %v1912 = vpop.xlane.xlu0 %1911
        %v1913 = vsub.f32 %v1905, %v1909
        %v1914 = vsub.f32 %v1906, %v1912
        %v1915 = vmul.f32 %v1913, 1.442695
        %v1916 = vpow.pop %v1915
        %v1917 = vmul.f32 %v1914, 1.442695
        %v1918 = vpow.pop %v1917
        %v1919 = vsel %vm1681, %v1916, 0.0
        %1920 = vadd.xlane.f32.xlu0 %v1919
        %v1921 = vpop.xlane.xlu0 %1920
        %v1922 = vsel %vm1681, %v1918, 0.0
        %1923 = vadd.xlane.f32.xlu0 %v1922
        %v1924 = vpop.xlane.xlu0 %1923
        %v1925 = vrcp.pop %v1921
        %v1926 = vrcp.pop %v1924
        %v1927 = vmul.f32 %v1916, %v1925
        %v1928 = vmul.f32 %v1918, %v1926
        %v1929 = vpack.c.bf16 %v1927, %v1927
        %v1930 = vpack.c.bf16 %v1928, %v1928
        %1932 = vrot.lane.b32.xlu0 %v1580, 64
        %v1933 = vpop.permute.xlu0 %1932
        %v1935 = vsel %vm1681, %v1929, 0
        %v1938 = vsel %vm1709, %v1933, 0
        %1940 = vmatprep.subr.bf16.mxu0 0
        %1941 = vmatpush1.bf16.msra.mxu0 0
        %1942 = vmatprep.subr.bf16.mxu0 0
        %1943 = vmatpush1.bf16.msra.mxu0 0
        %1944 = vmatprep.subr.bf16.mxu0 0
        %1945 = vmatpush1.bf16.msra.mxu0 0
        %1946 = vmatprep.subr.bf16.mxu0 0
        %1947 = vmatpush1.bf16.msra.mxu0 0
        %1948 = vmatprep.subr.bf16.mxu0 0
        %1949 = vmatpush1.bf16.msra.mxu0 0
        %1950 = vmatprep.subr.bf16.mxu0 0
        %1951 = vmatpush1.bf16.msra.mxu0 0
        %1952 = vmatprep.subr.bf16.mxu0 0
        %1953 = vmatpush1.bf16.msra.mxu0 0
        %1954 = vmatprep.subr.bf16.mxu0 0
        %1955 = vmatpush1.bf16.msra.mxu0 %v1938
        %1956 = vmatprep.subr.bf16.mxu0 0
        %1957 = vmatpush2.bf16.msra.mxu0 0
        %1958 = vmatprep.subr.bf16.mxu0 0
        %1959 = vmatpush2.bf16.msra.mxu0 0
        %1960 = vmatprep.subr.bf16.mxu0 0
        %1961 = vmatpush2.bf16.msra.mxu0 0
        %1962 = vmatprep.subr.bf16.mxu0 0
        %1963 = vmatpush2.bf16.msra.mxu0 0
        %1964 = vmatprep.subr.bf16.mxu0 0
        %1965 = vmatpush2.bf16.msra.mxu0 0
        %1966 = vmatprep.subr.bf16.mxu0 0
        %1967 = vmatpush2.bf16.msra.mxu0 0
        %1968 = vmatprep.subr.bf16.mxu0 0
        %1969 = vmatpush2.bf16.msra.mxu0 0
        %1970 = vmatprep.subr.bf16.mxu0 0
        %1971 = vmatpush2.bf16.msra.mxu0 0
        %1972 = vmatprep.mubr.bf16.mxu0 0
        %1973 = vmatmul.mubr.bf16.gmra.mxu0 %v1935
        %v1974 = vpop.f32.mrf.mxu0
        %v1975 = vadd.f32 0.0, %v1974
        %v1976 = vpop.f32.mrf.mxu0
        %v1977 = vpop.f32.mrf.mxu0
        %v1978 = vpop.f32.mrf.mxu0
        %1979 = vdwg.mxu0
        %1981 = vrot.lane.b32.xlu0 %v1581, 64
        %v1982 = vpop.permute.xlu0 %1981
        %v1984 = vsel %vm1681, %v1930, 0
        %v1987 = vsel %vm1709, %v1982, 0
        %1989 = vmatprep.subr.bf16.mxu0 0
        %1990 = vmatpush1.bf16.msra.mxu0 0
        %1991 = vmatprep.subr.bf16.mxu0 0
        %1992 = vmatpush1.bf16.msra.mxu0 0
        %1993 = vmatprep.subr.bf16.mxu0 0
        %1994 = vmatpush1.bf16.msra.mxu0 0
        %1995 = vmatprep.subr.bf16.mxu0 0
        %1996 = vmatpush1.bf16.msra.mxu0 0
        %1997 = vmatprep.subr.bf16.mxu0 0
        %1998 = vmatpush1.bf16.msra.mxu0 0
        %1999 = vmatprep.subr.bf16.mxu0 0
        %2000 = vmatpush1.bf16.msra.mxu0 0
        %2001 = vmatprep.subr.bf16.mxu0 0
        %2002 = vmatpush1.bf16.msra.mxu0 0
        %2003 = vmatprep.subr.bf16.mxu0 0
        %2004 = vmatpush1.bf16.msra.mxu0 %v1987
        %2005 = vmatprep.subr.bf16.mxu0 0
        %2006 = vmatpush2.bf16.msra.mxu0 0
        %2007 = vmatprep.subr.bf16.mxu0 0
        %2008 = vmatpush2.bf16.msra.mxu0 0
        %2009 = vmatprep.subr.bf16.mxu0 0
        %2010 = vmatpush2.bf16.msra.mxu0 0
        %2011 = vmatprep.subr.bf16.mxu0 0
        %2012 = vmatpush2.bf16.msra.mxu0 0
        %2013 = vmatprep.subr.bf16.mxu0 0
        %2014 = vmatpush2.bf16.msra.mxu0 0
        %2015 = vmatprep.subr.bf16.mxu0 0
        %2016 = vmatpush2.bf16.msra.mxu0 0
        %2017 = vmatprep.subr.bf16.mxu0 0
        %2018 = vmatpush2.bf16.msra.mxu0 0
        %2019 = vmatprep.subr.bf16.mxu0 0
        %2020 = vmatpush2.bf16.msra.mxu0 0
        %2021 = vmatprep.mubr.bf16.mxu0 0
        %2022 = vmatmul.mubr.bf16.gmra.mxu0 %v1984
        %v2023 = vpop.f32.mrf.mxu0
        %v2024 = vadd.f32 0.0, %v2023
        %v2025 = vpop.f32.mrf.mxu0
        %v2026 = vpop.f32.mrf.mxu0
        %v2027 = vpop.f32.mrf.mxu0
        %2028 = vdwg.mxu0
        %2031 = vrot.lane.b32.xlu0 %v1975, 64
        %v2032 = vpop.permute.xlu0 %2031
        %2033 = vrot.lane.b32.xlu0 %v2024, 64
        %v2034 = vpop.permute.xlu0 %2033
        %v2037 = vsel %vm1582, %v1748, %v2032
        %v2038 = vsel %vm1582, %v1794, %v2034
        %v2039 = vpack.c.bf16 %v2038, %v2037
        %v2040 = vld [vmem:[%s911] sm:$0xf]
        %v2041 = vld [vmem:[%s911 + $0x4] sm:$0xf]
        %v2042 = vld [vmem:[%s911 + $0x8] sm:$0xf]
        %v2043 = vld [vmem:[%s911 + $0xc] sm:$0xf]
        %v2044 = vld [vmem:[%s911 + $0x10] sm:$0xf]
        %v2045 = vld [vmem:[%s911 + $0x14] sm:$0xf]
        %v2046 = vld [vmem:[%s911 + $0x18] sm:$0xf]
        %v2047 = vld [vmem:[%s911 + $0x1c] sm:$0xf]
        %v2048 = vld [vmem:[%s911 + $0x20] sm:$0xf]
        %v2049 = vld [vmem:[%s911 + $0x24] sm:$0xf]
        %v2050 = vld [vmem:[%s911 + $0x28] sm:$0xf]
        %v2051 = vld [vmem:[%s911 + $0x2c] sm:$0xf]
        %v2052 = vld [vmem:[%s911 + $0x30] sm:$0xf]
        %v2053 = vld [vmem:[%s911 + $0x34] sm:$0xf]
        %v2054 = vld [vmem:[%s911 + $0x38] sm:$0xf]
        %v2055 = vld [vmem:[%s911 + $0x3c] sm:$0xf]
        %v2056 = vld [vmem:[%s919] sm:$0x1]
        %v2058 = vlaneseq
        %v2059 = vshrl.u32 %v2058, 7
        %v2060 = vsub.s32 0, %v2059
        %v2061 = vrot.slane %v2056, %v2060
        %v2079 = vunpack.c.l.b16 %v2040
        %v2080 = vunpack.c.l.b16 %v2041
        %v2081 = vunpack.c.l.b16 %v2042
        %v2082 = vunpack.c.l.b16 %v2043
        %v2083 = vunpack.c.l.b16 %v2044
        %v2084 = vunpack.c.l.b16 %v2045
        %v2085 = vunpack.c.l.b16 %v2046
        %v2086 = vunpack.c.l.b16 %v2047
        %v2087 = vunpack.c.l.b16 %v2048
        %v2088 = vunpack.c.l.b16 %v2049
        %v2089 = vunpack.c.l.b16 %v2050
        %v2090 = vunpack.c.l.b16 %v2051
        %v2091 = vunpack.c.l.b16 %v2052
        %v2092 = vunpack.c.l.b16 %v2053
        %v2093 = vunpack.c.l.b16 %v2054
        %v2094 = vunpack.c.l.b16 %v2055
        %v2095 = vpack.c.b16 %v2080, %v2079
        %v2096 = vpack.c.b16 %v2082, %v2081
        %v2097 = vpack.c.b16 %v2084, %v2083
        %v2098 = vpack.c.b16 %v2086, %v2085
        %v2099 = vpack.c.b16 %v2088, %v2087
        %v2100 = vpack.c.b16 %v2090, %v2089
        %v2101 = vpack.c.b16 %v2092, %v2091
        %v2102 = vpack.c.b16 %v2094, %v2093
        %2111 = vmatprep.subr.bf16.mxu0 0
        %2112 = vmatpush1.bf16.msra.mxu0 %v2102
        %2113 = vmatprep.subr.bf16.mxu0 0
        %2114 = vmatpush1.bf16.msra.mxu0 %v2101
        %2115 = vmatprep.subr.bf16.mxu0 0
        %2116 = vmatpush1.bf16.msra.mxu0 %v2100
        %2117 = vmatprep.subr.bf16.mxu0 0
        %2118 = vmatpush1.bf16.msra.mxu0 %v2099
        %2119 = vmatprep.subr.bf16.mxu0 0
        %2120 = vmatpush1.bf16.msra.mxu0 %v2098
        %2121 = vmatprep.subr.bf16.mxu0 0
        %2122 = vmatpush1.bf16.msra.mxu0 %v2097
        %2123 = vmatprep.subr.bf16.mxu0 0
        %2124 = vmatpush1.bf16.msra.mxu0 %v2096
        %2125 = vmatprep.subr.bf16.mxu0 0
        %2126 = vmatpush1.bf16.msra.mxu0 %v2095
        %2127 = vmatprep.subr.bf16.mxu0 0
        %2128 = vmatpush2.bf16.msra.mxu0 0
        %2129 = vmatprep.subr.bf16.mxu0 0
        %2130 = vmatpush2.bf16.msra.mxu0 0
        %2131 = vmatprep.subr.bf16.mxu0 0
        %2132 = vmatpush2.bf16.msra.mxu0 0
        %2133 = vmatprep.subr.bf16.mxu0 0
        %2134 = vmatpush2.bf16.msra.mxu0 0
        %2135 = vmatprep.subr.bf16.mxu0 0
        %2136 = vmatpush2.bf16.msra.mxu0 0
        %2137 = vmatprep.subr.bf16.mxu0 0
        %2138 = vmatpush2.bf16.msra.mxu0 0
        %2139 = vmatprep.subr.bf16.mxu0 0
        %2140 = vmatpush2.bf16.msra.mxu0 0
        %2141 = vmatprep.subr.bf16.mxu0 0
        %2142 = vmatpush2.bf16.msra.mxu0 0
        %2143 = vmatprep.mubr.bf16.mxu0 0
        %2144 = vmatmul.mubr.bf16.gmra.mxu0 %v2039
        %v2145 = vpop.f32.mrf.mxu0
        %v2146 = vadd.f32 %v2061, %v2145
        %v2147 = vpop.f32.mrf.mxu0
        %v2148 = vpop.f32.mrf.mxu0
        %v2149 = vadd.f32 %v2061, %v2148
        %v2150 = vpop.f32.mrf.mxu0
        %2151 = vdwg.mxu0
        %v2152 = vadd.f32 %v1268, %v2146
        %v2153 = vadd.f32 %v1269, %v2149
        %v2154 = vld [vmem:[%s927] sm:$0x1]
        %v2155 = vld [vmem:[%s935] sm:$0x1]
        %2156 = vadd.xlane.f32.xlu0 %v2152
        %v2157 = vpop.xlane.xlu0 %2156
        %2158 = vadd.xlane.f32.xlu0 %v2153
        %v2159 = vpop.xlane.xlu0 %2158
        %v2160 = vmul.f32 %v2157, %v1279
        %v2161 = vmul.f32 %v2159, %v1279
        %v2162 = vsub.f32 %v2152, %v2160
        %v2163 = vsub.f32 %v2153, %v2161
        %v2164 = vmul.f32 %v2162, %v2162
        %v2165 = vmul.f32 %v2163, %v2163
        %2166 = vadd.xlane.f32.xlu0 %v2164
        %v2167 = vpop.xlane.xlu0 %2166
        %2168 = vadd.xlane.f32.xlu0 %v2165
        %v2169 = vpop.xlane.xlu0 %2168
        %v2170 = vmul.f32 %v2167, %v1279
        %v2171 = vmul.f32 %v2169, %v1279
        %v2172 = vadd.f32 %v2170, 1e-05
        %v2173 = vadd.f32 %v2171, 1e-05
        %v2174 = vrsqrt.pop %v2172
        %v2175 = vrsqrt.pop %v2173
        %v2176 = vmul.f32 %v2162, %v2174
        %v2177 = vmul.f32 %v2163, %v2175
        %v2179 = vlaneseq
        %v2180 = vshrl.u32 %v2179, 7
        %v2181 = vsub.s32 0, %v2180
        %v2182 = vrot.slane %v2154, %v2181
        %v2184 = vmul.f32 %v2176, %v2182
        %v2185 = vmul.f32 %v2177, %v2182
        %v2187 = vlaneseq
        %v2188 = vshrl.u32 %v2187, 7
        %v2189 = vsub.s32 0, %v2188
        %v2190 = vrot.slane %v2155, %v2189
        %v2192 = vadd.f32 %v2184, %v2190
        %v2193 = vadd.f32 %v2185, %v2190
        %v2194 = vpack.c.bf16 %v2193, %v2192
        %v2195 = vld [vmem:[%s944] sm:$0xff]
        %v2196 = vld [vmem:[%s944 + $0x8] sm:$0xff]
        %v2197 = vld [vmem:[%s944 + $0x10] sm:$0xff]
        %v2198 = vld [vmem:[%s944 + $0x18] sm:$0xff]
        %v2199 = vld [vmem:[%s944 + $0x20] sm:$0xff]
        %v2200 = vld [vmem:[%s944 + $0x28] sm:$0xff]
        %v2201 = vld [vmem:[%s944 + $0x30] sm:$0xff]
        %v2202 = vld [vmem:[%s944 + $0x38] sm:$0xff]
        %v2203 = vld [vmem:[%s944 + $0x40] sm:$0xff]
        %v2204 = vld [vmem:[%s944 + $0x48] sm:$0xff]
        %v2205 = vld [vmem:[%s944 + $0x50] sm:$0xff]
        %v2206 = vld [vmem:[%s944 + $0x58] sm:$0xff]
        %v2207 = vld [vmem:[%s944 + $0x60] sm:$0xff]
        %v2208 = vld [vmem:[%s944 + $0x68] sm:$0xff]
        %v2209 = vld [vmem:[%s944 + $0x70] sm:$0xff]
        %v2210 = vld [vmem:[%s944 + $0x78] sm:$0xff]
        %v2211 = vld [vmem:[%s944 + $0x80] sm:$0xff]
        %v2212 = vld [vmem:[%s944 + $0x88] sm:$0xff]
        %v2213 = vld [vmem:[%s944 + $0x90] sm:$0xff]
        %v2214 = vld [vmem:[%s944 + $0x98] sm:$0xff]
        %v2215 = vld [vmem:[%s944 + $0xa0] sm:$0xff]
        %v2216 = vld [vmem:[%s944 + $0xa8] sm:$0xff]
        %v2217 = vld [vmem:[%s944 + $0xb0] sm:$0xff]
        %v2218 = vld [vmem:[%s944 + $0xb8] sm:$0xff]
        %v2219 = vld [vmem:[%s944 + $0xc0] sm:$0xff]
        %v2220 = vld [vmem:[%s944 + $0xc8] sm:$0xff]
        %v2221 = vld [vmem:[%s944 + $0xd0] sm:$0xff]
        %v2222 = vld [vmem:[%s944 + $0xd8] sm:$0xff]
        %v2223 = vld [vmem:[%s944 + $0xe0] sm:$0xff]
        %v2224 = vld [vmem:[%s944 + $0xe8] sm:$0xff]
        %v2225 = vld [vmem:[%s944 + $0xf0] sm:$0xff]
        %v2226 = vld [vmem:[%s944 + $0xf8] sm:$0xff]
        %v2227 = vld [vmem:[%s1078] sm:$0xf]
        %v2229 = vlaneseq
        %v2230 = vshrl.u32 %v2229, 7
        %v2231 = vsub.s32 0, %v2230
        %v2232 = vrot.slane %v2227, %v2231
        %v2233 = vlaneseq
        %v2234 = vshrl.u32 %v2233, 7
        %v2235 = vsub.s32 1, %v2234
        %v2236 = vrot.slane %v2227, %v2235
        %v2237 = vlaneseq
        %v2238 = vshrl.u32 %v2237, 7
        %v2239 = vsub.s32 2, %v2238
        %v2240 = vrot.slane %v2227, %v2239
        %v2241 = vlaneseq
        %v2242 = vshrl.u32 %v2241, 7
        %v2243 = vsub.s32 3, %v2242
        %v2244 = vrot.slane %v2227, %v2243
        %v2281 = vunpack.c.l.b16 %v2195
        %v2282 = vunpack.c.h.b16 %v2195
        %v2283 = vunpack.c.l.b16 %v2196
        %v2284 = vunpack.c.h.b16 %v2196
        %v2285 = vunpack.c.l.b16 %v2197
        %v2286 = vunpack.c.h.b16 %v2197
        %v2287 = vunpack.c.l.b16 %v2198
        %v2288 = vunpack.c.h.b16 %v2198
        %v2289 = vunpack.c.l.b16 %v2199
        %v2290 = vunpack.c.h.b16 %v2199
        %v2291 = vunpack.c.l.b16 %v2200
        %v2292 = vunpack.c.h.b16 %v2200
        %v2293 = vunpack.c.l.b16 %v2201
        %v2294 = vunpack.c.h.b16 %v2201
        %v2295 = vunpack.c.l.b16 %v2202
        %v2296 = vunpack.c.h.b16 %v2202
        %v2297 = vunpack.c.l.b16 %v2203
        %v2298 = vunpack.c.h.b16 %v2203
        %v2299 = vunpack.c.l.b16 %v2204
        %v2300 = vunpack.c.h.b16 %v2204
        %v2301 = vunpack.c.l.b16 %v2205
        %v2302 = vunpack.c.h.b16 %v2205
        %v2303 = vunpack.c.l.b16 %v2206
        %v2304 = vunpack.c.h.b16 %v2206
        %v2305 = vunpack.c.l.b16 %v2207
        %v2306 = vunpack.c.h.b16 %v2207
        %v2307 = vunpack.c.l.b16 %v2208
        %v2308 = vunpack.c.h.b16 %v2208
        %v2309 = vunpack.c.l.b16 %v2209
        %v2310 = vunpack.c.h.b16 %v2209
        %v2311 = vunpack.c.l.b16 %v2210
        %v2312 = vunpack.c.h.b16 %v2210
        %v2313 = vunpack.c.l.b16 %v2211
        %v2314 = vunpack.c.h.b16 %v2211
        %v2315 = vunpack.c.l.b16 %v2212
        %v2316 = vunpack.c.h.b16 %v2212
        %v2317 = vunpack.c.l.b16 %v2213
        %v2318 = vunpack.c.h.b16 %v2213
        %v2319 = vunpack.c.l.b16 %v2214
        %v2320 = vunpack.c.h.b16 %v2214
        %v2321 = vunpack.c.l.b16 %v2215
        %v2322 = vunpack.c.h.b16 %v2215
        %v2323 = vunpack.c.l.b16 %v2216
        %v2324 = vunpack.c.h.b16 %v2216
        %v2325 = vunpack.c.l.b16 %v2217
        %v2326 = vunpack.c.h.b16 %v2217
        %v2327 = vunpack.c.l.b16 %v2218
        %v2328 = vunpack.c.h.b16 %v2218
        %v2329 = vunpack.c.l.b16 %v2219
        %v2330 = vunpack.c.h.b16 %v2219
        %v2331 = vunpack.c.l.b16 %v2220
        %v2332 = vunpack.c.h.b16 %v2220
        %v2333 = vunpack.c.l.b16 %v2221
        %v2334 = vunpack.c.h.b16 %v2221
        %v2335 = vunpack.c.l.b16 %v2222
        %v2336 = vunpack.c.h.b16 %v2222
        %v2337 = vunpack.c.l.b16 %v2223
        %v2338 = vunpack.c.h.b16 %v2223
        %v2339 = vunpack.c.l.b16 %v2224
        %v2340 = vunpack.c.h.b16 %v2224
        %v2341 = vunpack.c.l.b16 %v2225
        %v2342 = vunpack.c.h.b16 %v2225
        %v2343 = vunpack.c.l.b16 %v2226
        %v2344 = vunpack.c.h.b16 %v2226
        %v2345 = vpack.c.b16 %v2285, %v2281
        %v2346 = vpack.c.b16 %v2286, %v2282
        %v2347 = vpack.c.b16 %v2287, %v2283
        %v2348 = vpack.c.b16 %v2288, %v2284
        %v2349 = vpack.c.b16 %v2293, %v2289
        %v2350 = vpack.c.b16 %v2294, %v2290
        %v2351 = vpack.c.b16 %v2295, %v2291
        %v2352 = vpack.c.b16 %v2296, %v2292
        %v2353 = vpack.c.b16 %v2301, %v2297
        %v2354 = vpack.c.b16 %v2302, %v2298
        %v2355 = vpack.c.b16 %v2303, %v2299
        %v2356 = vpack.c.b16 %v2304, %v2300
        %v2357 = vpack.c.b16 %v2309, %v2305
        %v2358 = vpack.c.b16 %v2310, %v2306
        %v2359 = vpack.c.b16 %v2311, %v2307
        %v2360 = vpack.c.b16 %v2312, %v2308
        %v2361 = vpack.c.b16 %v2317, %v2313
        %v2362 = vpack.c.b16 %v2318, %v2314
        %v2363 = vpack.c.b16 %v2319, %v2315
        %v2364 = vpack.c.b16 %v2320, %v2316
        %v2365 = vpack.c.b16 %v2325, %v2321
        %v2366 = vpack.c.b16 %v2326, %v2322
        %v2367 = vpack.c.b16 %v2327, %v2323
        %v2368 = vpack.c.b16 %v2328, %v2324
        %v2369 = vpack.c.b16 %v2333, %v2329
        %v2370 = vpack.c.b16 %v2334, %v2330
        %v2371 = vpack.c.b16 %v2335, %v2331
        %v2372 = vpack.c.b16 %v2336, %v2332
        %v2373 = vpack.c.b16 %v2341, %v2337
        %v2374 = vpack.c.b16 %v2342, %v2338
        %v2375 = vpack.c.b16 %v2343, %v2339
        %v2376 = vpack.c.b16 %v2344, %v2340
        %2409 = vmatprep.subr.bf16.mxu0 %v2374
        %2410 = vmatpush1.bf16.msra.mxu0 %v2373
        %2411 = vmatprep.subr.bf16.mxu0 %v2370
        %2412 = vmatpush1.bf16.msra.mxu0 %v2369
        %2413 = vmatprep.subr.bf16.mxu0 %v2366
        %2414 = vmatpush1.bf16.msra.mxu0 %v2365
        %2415 = vmatprep.subr.bf16.mxu0 %v2362
        %2416 = vmatpush1.bf16.msra.mxu0 %v2361
        %2417 = vmatprep.subr.bf16.mxu0 %v2358
        %2418 = vmatpush1.bf16.msra.mxu0 %v2357
        %2419 = vmatprep.subr.bf16.mxu0 %v2354
        %2420 = vmatpush1.bf16.msra.mxu0 %v2353
        %2421 = vmatprep.subr.bf16.mxu0 %v2350
        %2422 = vmatpush1.bf16.msra.mxu0 %v2349
        %2423 = vmatprep.subr.bf16.mxu0 %v2346
        %2424 = vmatpush1.bf16.msra.mxu0 %v2345
        %2425 = vmatprep.subr.bf16.mxu0 0
        %2426 = vmatpush2.bf16.msra.mxu0 0
        %2427 = vmatprep.subr.bf16.mxu0 0
        %2428 = vmatpush2.bf16.msra.mxu0 0
        %2429 = vmatprep.subr.bf16.mxu0 0
        %2430 = vmatpush2.bf16.msra.mxu0 0
        %2431 = vmatprep.subr.bf16.mxu0 0
        %2432 = vmatpush2.bf16.msra.mxu0 0
        %2433 = vmatprep.subr.bf16.mxu0 0
        %2434 = vmatpush2.bf16.msra.mxu0 0
        %2435 = vmatprep.subr.bf16.mxu0 0
        %2436 = vmatpush2.bf16.msra.mxu0 0
        %2437 = vmatprep.subr.bf16.mxu0 0
        %2438 = vmatpush2.bf16.msra.mxu0 0
        %2439 = vmatprep.subr.bf16.mxu0 0
        %2440 = vmatpush2.bf16.msra.mxu0 0
        %2441 = vmatprep.mubr.bf16.mxu0 0
        %2442 = vmatmul.mubr.bf16.gmra.mxu0 %v2194
        %v2443 = vpop.f32.mrf.mxu0
        %v2444 = vadd.f32 %v2232, %v2443
        %v2445 = vpop.f32.mrf.mxu0
        %v2446 = vadd.f32 %v2236, %v2445
        %v2447 = vpop.f32.mrf.mxu0
        %v2448 = vadd.f32 %v2232, %v2447
        %v2449 = vpop.f32.mrf.mxu0
        %v2450 = vadd.f32 %v2236, %v2449
        %2451 = vdwg.mxu0
        %2452 = vmatprep.subr.bf16.mxu0 %v2376
        %2453 = vmatpush1.bf16.msra.mxu0 %v2375
        %2454 = vmatprep.subr.bf16.mxu0 %v2372
        %2455 = vmatpush1.bf16.msra.mxu0 %v2371
        %2456 = vmatprep.subr.bf16.mxu0 %v2368
        %2457 = vmatpush1.bf16.msra.mxu0 %v2367
        %2458 = vmatprep.subr.bf16.mxu0 %v2364
        %2459 = vmatpush1.bf16.msra.mxu0 %v2363
        %2460 = vmatprep.subr.bf16.mxu0 %v2360
        %2461 = vmatpush1.bf16.msra.mxu0 %v2359
        %2462 = vmatprep.subr.bf16.mxu0 %v2356
        %2463 = vmatpush1.bf16.msra.mxu0 %v2355
        %2464 = vmatprep.subr.bf16.mxu0 %v2352
        %2465 = vmatpush1.bf16.msra.mxu0 %v2351
        %2466 = vmatprep.subr.bf16.mxu0 %v2348
        %2467 = vmatpush1.bf16.msra.mxu0 %v2347
        %2468 = vmatprep.subr.bf16.mxu0 0
        %2469 = vmatpush2.bf16.msra.mxu0 0
        %2470 = vmatprep.subr.bf16.mxu0 0
        %2471 = vmatpush2.bf16.msra.mxu0 0
        %2472 = vmatprep.subr.bf16.mxu0 0
        %2473 = vmatpush2.bf16.msra.mxu0 0
        %2474 = vmatprep.subr.bf16.mxu0 0
        %2475 = vmatpush2.bf16.msra.mxu0 0
        %2476 = vmatprep.subr.bf16.mxu0 0
        %2477 = vmatpush2.bf16.msra.mxu0 0
        %2478 = vmatprep.subr.bf16.mxu0 0
        %2479 = vmatpush2.bf16.msra.mxu0 0
        %2480 = vmatprep.subr.bf16.mxu0 0
        %2481 = vmatpush2.bf16.msra.mxu0 0
        %2482 = vmatprep.subr.bf16.mxu0 0
        %2483 = vmatpush2.bf16.msra.mxu0 0
        %2484 = vmatprep.mubr.bf16.mxu0 0
        %2485 = vmatmul.mubr.bf16.gmra.mxu0 %v2194
        %v2486 = vpop.f32.mrf.mxu0
        %v2487 = vadd.f32 %v2240, %v2486
        %v2488 = vpop.f32.mrf.mxu0
        %v2489 = vadd.f32 %v2244, %v2488
        %v2490 = vpop.f32.mrf.mxu0
        %v2491 = vadd.f32 %v2240, %v2490
        %v2492 = vpop.f32.mrf.mxu0
        %v2493 = vadd.f32 %v2244, %v2492
        %2494 = vdwg.mxu0
        %v2495 = vmul.f32 %v2444, %v2444
        %v2496 = vmul.f32 %v2446, %v2446
        %v2497 = vmul.f32 %v2487, %v2487
        %v2498 = vmul.f32 %v2489, %v2489
        %v2499 = vmul.f32 %v2448, %v2448
        %v2500 = vmul.f32 %v2450, %v2450
        %v2501 = vmul.f32 %v2491, %v2491
        %v2502 = vmul.f32 %v2493, %v2493
        %v2503 = vmul.f32 %v2444, %v2495
        %v2504 = vmul.f32 %v2446, %v2496
        %v2505 = vmul.f32 %v2487, %v2497
        %v2506 = vmul.f32 %v2489, %v2498
        %v2507 = vmul.f32 %v2448, %v2499
        %v2508 = vmul.f32 %v2450, %v2500
        %v2509 = vmul.f32 %v2491, %v2501
        %v2510 = vmul.f32 %v2493, %v2502
        %v2511 = vmul.f32 %v2503, 0.044715
        %v2512 = vmul.f32 %v2504, 0.044715
        %v2513 = vmul.f32 %v2505, 0.044715
        %v2514 = vmul.f32 %v2506, 0.044715
        %v2515 = vmul.f32 %v2507, 0.044715
        %v2516 = vmul.f32 %v2508, 0.044715
        %v2517 = vmul.f32 %v2509, 0.044715
        %v2518 = vmul.f32 %v2510, 0.044715
        %v2519 = vadd.f32 %v2444, %v2511
        %v2520 = vadd.f32 %v2446, %v2512
        %v2521 = vadd.f32 %v2487, %v2513
        %v2522 = vadd.f32 %v2489, %v2514
        %v2523 = vadd.f32 %v2448, %v2515
        %v2524 = vadd.f32 %v2450, %v2516
        %v2525 = vadd.f32 %v2491, %v2517
        %v2526 = vadd.f32 %v2493, %v2518
        %v2527 = vmul.f32 %v2519, 0.7978846
        %v2528 = vmul.f32 %v2520, 0.7978846
        %v2529 = vmul.f32 %v2521, 0.7978846
        %v2530 = vmul.f32 %v2522, 0.7978846
        %v2531 = vmul.f32 %v2523, 0.7978846
        %v2532 = vmul.f32 %v2524, 0.7978846
        %v2533 = vmul.f32 %v2525, 0.7978846
        %v2534 = vmul.f32 %v2526, 0.7978846
        %v2535 = vtanh.pop %v2527
        %v2536 = vtanh.pop %v2528
        %v2537 = vtanh.pop %v2529
        %v2538 = vtanh.pop %v2530
        %v2539 = vtanh.pop %v2531
        %v2540 = vtanh.pop %v2532
        %v2541 = vtanh.pop %v2533
        %v2542 = vtanh.pop %v2534
        %v2543 = vadd.f32 %v2535, 1.0
        %v2544 = vadd.f32 %v2536, 1.0
        %v2545 = vadd.f32 %v2537, 1.0
        %v2546 = vadd.f32 %v2538, 1.0
        %v2547 = vadd.f32 %v2539, 1.0
        %v2548 = vadd.f32 %v2540, 1.0
        %v2549 = vadd.f32 %v2541, 1.0
        %v2550 = vadd.f32 %v2542, 1.0
        %v2551 = vmul.f32 %v2543, 0.5
        %v2552 = vmul.f32 %v2544, 0.5
        %v2553 = vmul.f32 %v2545, 0.5
        %v2554 = vmul.f32 %v2546, 0.5
        %v2555 = vmul.f32 %v2547, 0.5
        %v2556 = vmul.f32 %v2548, 0.5
        %v2557 = vmul.f32 %v2549, 0.5
        %v2558 = vmul.f32 %v2550, 0.5
        %v2559 = vmul.f32 %v2444, %v2551
        %v2560 = vmul.f32 %v2446, %v2552
        %v2561 = vmul.f32 %v2487, %v2553
        %v2562 = vmul.f32 %v2489, %v2554
        %v2563 = vmul.f32 %v2448, %v2555
        %v2564 = vmul.f32 %v2450, %v2556
        %v2565 = vmul.f32 %v2491, %v2557
        %v2566 = vmul.f32 %v2493, %v2558
        %v2567 = vpack.c.bf16 %v2563, %v2559
        %v2568 = vpack.c.bf16 %v2564, %v2560
        %v2569 = vpack.c.bf16 %v2565, %v2561
        %v2570 = vpack.c.bf16 %v2566, %v2562
        %v2571 = vld [vmem:[%s953] sm:$0xf]
        %v2572 = vld [vmem:[%s953 + $0x4] sm:$0xf]
        %v2573 = vld [vmem:[%s953 + $0x8] sm:$0xf]
        %v2574 = vld [vmem:[%s953 + $0xc] sm:$0xf]
        %v2575 = vld [vmem:[%s953 + $0x10] sm:$0xf]
        %v2576 = vld [vmem:[%s953 + $0x14] sm:$0xf]
        %v2577 = vld [vmem:[%s953 + $0x18] sm:$0xf]
        %v2578 = vld [vmem:[%s953 + $0x1c] sm:$0xf]
        %v2579 = vld [vmem:[%s953 + $0x20] sm:$0xf]
        %v2580 = vld [vmem:[%s953 + $0x24] sm:$0xf]
        %v2581 = vld [vmem:[%s953 + $0x28] sm:$0xf]
        %v2582 = vld [vmem:[%s953 + $0x2c] sm:$0xf]
        %v2583 = vld [vmem:[%s953 + $0x30] sm:$0xf]
        %v2584 = vld [vmem:[%s953 + $0x34] sm:$0xf]
        %v2585 = vld [vmem:[%s953 + $0x38] sm:$0xf]
        %v2586 = vld [vmem:[%s953 + $0x3c] sm:$0xf]
        %v2587 = vld [vmem:[%s953 + $0x40] sm:$0xf]
        %v2588 = vld [vmem:[%s953 + $0x44] sm:$0xf]
        %v2589 = vld [vmem:[%s953 + $0x48] sm:$0xf]
        %v2590 = vld [vmem:[%s953 + $0x4c] sm:$0xf]
        %v2591 = vld [vmem:[%s953 + $0x50] sm:$0xf]
        %v2592 = vld [vmem:[%s953 + $0x54] sm:$0xf]
        %v2593 = vld [vmem:[%s953 + $0x58] sm:$0xf]
        %v2594 = vld [vmem:[%s953 + $0x5c] sm:$0xf]
        %v2595 = vld [vmem:[%s953 + $0x60] sm:$0xf]
        %v2596 = vld [vmem:[%s953 + $0x64] sm:$0xf]
        %v2597 = vld [vmem:[%s953 + $0x68] sm:$0xf]
        %v2598 = vld [vmem:[%s953 + $0x6c] sm:$0xf]
        %v2599 = vld [vmem:[%s953 + $0x70] sm:$0xf]
        %v2600 = vld [vmem:[%s953 + $0x74] sm:$0xf]
        %v2601 = vld [vmem:[%s953 + $0x78] sm:$0xf]
        %v2602 = vld [vmem:[%s953 + $0x7c] sm:$0xf]
        %v2603 = vld [vmem:[%s953 + $0x80] sm:$0xf]
        %v2604 = vld [vmem:[%s953 + $0x84] sm:$0xf]
        %v2605 = vld [vmem:[%s953 + $0x88] sm:$0xf]
        %v2606 = vld [vmem:[%s953 + $0x8c] sm:$0xf]
        %v2607 = vld [vmem:[%s953 + $0x90] sm:$0xf]
        %v2608 = vld [vmem:[%s953 + $0x94] sm:$0xf]
        %v2609 = vld [vmem:[%s953 + $0x98] sm:$0xf]
        %v2610 = vld [vmem:[%s953 + $0x9c] sm:$0xf]
        %v2611 = vld [vmem:[%s953 + $0xa0] sm:$0xf]
        %v2612 = vld [vmem:[%s953 + $0xa4] sm:$0xf]
        %v2613 = vld [vmem:[%s953 + $0xa8] sm:$0xf]
        %v2614 = vld [vmem:[%s953 + $0xac] sm:$0xf]
        %v2615 = vld [vmem:[%s953 + $0xb0] sm:$0xf]
        %v2616 = vld [vmem:[%s953 + $0xb4] sm:$0xf]
        %v2617 = vld [vmem:[%s953 + $0xb8] sm:$0xf]
        %v2618 = vld [vmem:[%s953 + $0xbc] sm:$0xf]
        %v2619 = vld [vmem:[%s953 + $0xc0] sm:$0xf]
        %v2620 = vld [vmem:[%s953 + $0xc4] sm:$0xf]
        %v2621 = vld [vmem:[%s953 + $0xc8] sm:$0xf]
        %v2622 = vld [vmem:[%s953 + $0xcc] sm:$0xf]
        %v2623 = vld [vmem:[%s953 + $0xd0] sm:$0xf]
        %v2624 = vld [vmem:[%s953 + $0xd4] sm:$0xf]
        %v2625 = vld [vmem:[%s953 + $0xd8] sm:$0xf]
        %v2626 = vld [vmem:[%s953 + $0xdc] sm:$0xf]
        %v2627 = vld [vmem:[%s953 + $0xe0] sm:$0xf]
        %v2628 = vld [vmem:[%s953 + $0xe4] sm:$0xf]
        %v2629 = vld [vmem:[%s953 + $0xe8] sm:$0xf]
        %v2630 = vld [vmem:[%s953 + $0xec] sm:$0xf]
        %v2631 = vld [vmem:[%s953 + $0xf0] sm:$0xf]
        %v2632 = vld [vmem:[%s953 + $0xf4] sm:$0xf]
        %v2633 = vld [vmem:[%s953 + $0xf8] sm:$0xf]
        %v2634 = vld [vmem:[%s953 + $0xfc] sm:$0xf]
        %v2635 = vld [vmem:[%s961] sm:$0x1]
        %v2637 = vlaneseq
        %v2638 = vshrl.u32 %v2637, 7
        %v2639 = vsub.s32 0, %v2638
        %v2640 = vrot.slane %v2635, %v2639
        %v2706 = vunpack.c.l.b16 %v2571
        %v2707 = vunpack.c.l.b16 %v2572
        %v2708 = vunpack.c.l.b16 %v2573
        %v2709 = vunpack.c.l.b16 %v2574
        %v2710 = vunpack.c.l.b16 %v2575
        %v2711 = vunpack.c.l.b16 %v2576
        %v2712 = vunpack.c.l.b16 %v2577
        %v2713 = vunpack.c.l.b16 %v2578
        %v2714 = vunpack.c.l.b16 %v2579
        %v2715 = vunpack.c.l.b16 %v2580
        %v2716 = vunpack.c.l.b16 %v2581
        %v2717 = vunpack.c.l.b16 %v2582
        %v2718 = vunpack.c.l.b16 %v2583
        %v2719 = vunpack.c.l.b16 %v2584
        %v2720 = vunpack.c.l.b16 %v2585
        %v2721 = vunpack.c.l.b16 %v2586
        %v2722 = vunpack.c.l.b16 %v2587
        %v2723 = vunpack.c.l.b16 %v2588
        %v2724 = vunpack.c.l.b16 %v2589
        %v2725 = vunpack.c.l.b16 %v2590
        %v2726 = vunpack.c.l.b16 %v2591
        %v2727 = vunpack.c.l.b16 %v2592
        %v2728 = vunpack.c.l.b16 %v2593
        %v2729 = vunpack.c.l.b16 %v2594
        %v2730 = vunpack.c.l.b16 %v2595
        %v2731 = vunpack.c.l.b16 %v2596
        %v2732 = vunpack.c.l.b16 %v2597
        %v2733 = vunpack.c.l.b16 %v2598
        %v2734 = vunpack.c.l.b16 %v2599
        %v2735 = vunpack.c.l.b16 %v2600
        %v2736 = vunpack.c.l.b16 %v2601
        %v2737 = vunpack.c.l.b16 %v2602
        %v2738 = vunpack.c.l.b16 %v2603
        %v2739 = vunpack.c.l.b16 %v2604
        %v2740 = vunpack.c.l.b16 %v2605
        %v2741 = vunpack.c.l.b16 %v2606
        %v2742 = vunpack.c.l.b16 %v2607
        %v2743 = vunpack.c.l.b16 %v2608
        %v2744 = vunpack.c.l.b16 %v2609
        %v2745 = vunpack.c.l.b16 %v2610
        %v2746 = vunpack.c.l.b16 %v2611
        %v2747 = vunpack.c.l.b16 %v2612
        %v2748 = vunpack.c.l.b16 %v2613
        %v2749 = vunpack.c.l.b16 %v2614
        %v2750 = vunpack.c.l.b16 %v2615
        %v2751 = vunpack.c.l.b16 %v2616
        %v2752 = vunpack.c.l.b16 %v2617
        %v2753 = vunpack.c.l.b16 %v2618
        %v2754 = vunpack.c.l.b16 %v2619
        %v2755 = vunpack.c.l.b16 %v2620
        %v2756 = vunpack.c.l.b16 %v2621
        %v2757 = vunpack.c.l.b16 %v2622
        %v2758 = vunpack.c.l.b16 %v2623
        %v2759 = vunpack.c.l.b16 %v2624
        %v2760 = vunpack.c.l.b16 %v2625
        %v2761 = vunpack.c.l.b16 %v2626
        %v2762 = vunpack.c.l.b16 %v2627
        %v2763 = vunpack.c.l.b16 %v2628
        %v2764 = vunpack.c.l.b16 %v2629
        %v2765 = vunpack.c.l.b16 %v2630
        %v2766 = vunpack.c.l.b16 %v2631
        %v2767 = vunpack.c.l.b16 %v2632
        %v2768 = vunpack.c.l.b16 %v2633
        %v2769 = vunpack.c.l.b16 %v2634
        %v2770 = vpack.c.b16 %v2707, %v2706
        %v2771 = vpack.c.b16 %v2709, %v2708
        %v2772 = vpack.c.b16 %v2711, %v2710
        %v2773 = vpack.c.b16 %v2713, %v2712
        %v2774 = vpack.c.b16 %v2715, %v2714
        %v2775 = vpack.c.b16 %v2717, %v2716
        %v2776 = vpack.c.b16 %v2719, %v2718
        %v2777 = vpack.c.b16 %v2721, %v2720
        %v2778 = vpack.c.b16 %v2723, %v2722
        %v2779 = vpack.c.b16 %v2725, %v2724
        %v2780 = vpack.c.b16 %v2727, %v2726
        %v2781 = vpack.c.b16 %v2729, %v2728
        %v2782 = vpack.c.b16 %v2731, %v2730
        %v2783 = vpack.c.b16 %v2733, %v2732
        %v2784 = vpack.c.b16 %v2735, %v2734
        %v2785 = vpack.c.b16 %v2737, %v2736
        %v2786 = vpack.c.b16 %v2739, %v2738
        %v2787 = vpack.c.b16 %v2741, %v2740
        %v2788 = vpack.c.b16 %v2743, %v2742
        %v2789 = vpack.c.b16 %v2745, %v2744
        %v2790 = vpack.c.b16 %v2747, %v2746
        %v2791 = vpack.c.b16 %v2749, %v2748
        %v2792 = vpack.c.b16 %v2751, %v2750
        %v2793 = vpack.c.b16 %v2753, %v2752
        %v2794 = vpack.c.b16 %v2755, %v2754
        %v2795 = vpack.c.b16 %v2757, %v2756
        %v2796 = vpack.c.b16 %v2759, %v2758
        %v2797 = vpack.c.b16 %v2761, %v2760
        %v2798 = vpack.c.b16 %v2763, %v2762
        %v2799 = vpack.c.b16 %v2765, %v2764
        %v2800 = vpack.c.b16 %v2767, %v2766
        %v2801 = vpack.c.b16 %v2769, %v2768
        %2834 = vmatprep.subr.bf16.mxu0 0
        %2835 = vmatpush1.bf16.msra.mxu0 %v2777
        %2836 = vmatprep.subr.bf16.mxu0 0
        %2837 = vmatpush1.bf16.msra.mxu0 %v2776
        %2838 = vmatprep.subr.bf16.mxu0 0
        %2839 = vmatpush1.bf16.msra.mxu0 %v2775
        %2840 = vmatprep.subr.bf16.mxu0 0
        %2841 = vmatpush1.bf16.msra.mxu0 %v2774
        %2842 = vmatprep.subr.bf16.mxu0 0
        %2843 = vmatpush1.bf16.msra.mxu0 %v2773
        %2844 = vmatprep.subr.bf16.mxu0 0
        %2845 = vmatpush1.bf16.msra.mxu0 %v2772
        %2846 = vmatprep.subr.bf16.mxu0 0
        %2847 = vmatpush1.bf16.msra.mxu0 %v2771
        %2848 = vmatprep.subr.bf16.mxu0 0
        %2849 = vmatpush1.bf16.msra.mxu0 %v2770
        %2850 = vmatprep.subr.bf16.mxu0 0
        %2851 = vmatpush2.bf16.msra.mxu0 %v2785
        %2852 = vmatprep.subr.bf16.mxu0 0
        %2853 = vmatpush2.bf16.msra.mxu0 %v2784
        %2854 = vmatprep.subr.bf16.mxu0 0
        %2855 = vmatpush2.bf16.msra.mxu0 %v2783
        %2856 = vmatprep.subr.bf16.mxu0 0
        %2857 = vmatpush2.bf16.msra.mxu0 %v2782
        %2858 = vmatprep.subr.bf16.mxu0 0
        %2859 = vmatpush2.bf16.msra.mxu0 %v2781
        %2860 = vmatprep.subr.bf16.mxu0 0
        %2861 = vmatpush2.bf16.msra.mxu0 %v2780
        %2862 = vmatprep.subr.bf16.mxu0 0
        %2863 = vmatpush2.bf16.msra.mxu0 %v2779
        %2864 = vmatprep.subr.bf16.mxu0 0
        %2865 = vmatpush2.bf16.msra.mxu0 %v2778
        %2866 = vmatprep.mubr.bf16.mxu0 %v2568
        %2867 = vmatmul.mubr.bf16.gmra.mxu0 %v2567
        %v2868 = vpop.f32.mrf.mxu0
        %v2869 = vadd.f32 %v2640, %v2868
        %v2870 = vpop.f32.mrf.mxu0
        %v2871 = vpop.f32.mrf.mxu0
        %v2872 = vadd.f32 %v2640, %v2871
        %v2873 = vpop.f32.mrf.mxu0
        %2874 = vdwg.mxu0
        %2875 = vmatprep.subr.bf16.mxu0 0
        %2876 = vmatpush1.bf16.msra.mxu0 %v2793
        %2877 = vmatprep.subr.bf16.mxu0 0
        %2878 = vmatpush1.bf16.msra.mxu0 %v2792
        %2879 = vmatprep.subr.bf16.mxu0 0
        %2880 = vmatpush1.bf16.msra.mxu0 %v2791
        %2881 = vmatprep.subr.bf16.mxu0 0
        %2882 = vmatpush1.bf16.msra.mxu0 %v2790
        %2883 = vmatprep.subr.bf16.mxu0 0
        %2884 = vmatpush1.bf16.msra.mxu0 %v2789
        %2885 = vmatprep.subr.bf16.mxu0 0
        %2886 = vmatpush1.bf16.msra.mxu0 %v2788
        %2887 = vmatprep.subr.bf16.mxu0 0
        %2888 = vmatpush1.bf16.msra.mxu0 %v2787
        %2889 = vmatprep.subr.bf16.mxu0 0
        %2890 = vmatpush1.bf16.msra.mxu0 %v2786
        %2891 = vmatprep.subr.bf16.mxu0 0
        %2892 = vmatpush2.bf16.msra.mxu0 %v2801
        %2893 = vmatprep.subr.bf16.mxu0 0
        %2894 = vmatpush2.bf16.msra.mxu0 %v2800
        %2895 = vmatprep.subr.bf16.mxu0 0
        %2896 = vmatpush2.bf16.msra.mxu0 %v2799
        %2897 = vmatprep.subr.bf16.mxu0 0
        %2898 = vmatpush2.bf16.msra.mxu0 %v2798
        %2899 = vmatprep.subr.bf16.mxu0 0
        %2900 = vmatpush2.bf16.msra.mxu0 %v2797
        %2901 = vmatprep.subr.bf16.mxu0 0
        %2902 = vmatpush2.bf16.msra.mxu0 %v2796
        %2903 = vmatprep.subr.bf16.mxu0 0
        %2904 = vmatpush2.bf16.msra.mxu0 %v2795
        %2905 = vmatprep.subr.bf16.mxu0 0
        %2906 = vmatpush2.bf16.msra.mxu0 %v2794
        %2907 = vmatprep.mubr.bf16.mxu0 %v2570
        %2908 = vmatmul.mubr.bf16.gmra.mxu0 %v2569
        %v2909 = vpop.f32.mrf.mxu0
        %v2910 = vadd.f32 %v2869, %v2909
        %v2911 = vpop.f32.mrf.mxu0
        %v2912 = vpop.f32.mrf.mxu0
        %v2913 = vadd.f32 %v2872, %v2912
        %v2914 = vpop.f32.mrf.mxu0
        %2915 = vdwg.mxu0
        %v2916 = vadd.f32 %v2152, %v2910
        %v2917 = vadd.f32 %v2153, %v2913
        %2918 = vst [vmem:[#allocation2] sm:$0xff] %v2916
        %2919 = vst [vmem:[#allocation2 + $0x8] sm:$0xff] %v2917
        %p2920 = scmp.eq.s32.totalorder %s53, 1
        // Predicated region
        $region169: #{tpu_custom_call.1} parent=103 // pred_check
          %p2921 = pneg %p2920
        $region170: #{tpu_custom_call.1} parent=103 // pred_check_branch
          %2923 = sbr.rel (%p2921) target = $region172
        $region171: #{tpu_custom_call.1} parent=103 // pred_region
          %v2925 = vrot.slane %v2917, 7
          %vm2927 = vcmask 1040384
          %v2928 = vsel %vm2927, %v2916, %v2925
          %v2929 = vld [vmem:[#allocation23] sm:$0x1]
          %v2930 = vld [vmem:[#allocation24] sm:$0x1]
          %vm2931 = vcmask 1041408
          %v2932 = vsel %vm2931, %v2928, 0.0
          %2933 = vadd.xlane.f32.xlu0 %v2932
          %v2934 = vpop.xlane.xlu0 %2933
          %v2935 = vmul.f32 %v2934, %v1279
          %v2936 = vsub.f32 %v2928, %v2935
          %v2937 = vmul.f32 %v2936, %v2936
          %v2938 = vsel %vm2931, %v2937, 0.0
          %2939 = vadd.xlane.f32.xlu0 %v2938
          %v2940 = vpop.xlane.xlu0 %2939
          %v2941 = vmul.f32 %v2940, %v1279
          %v2942 = vadd.f32 %v2941, 1e-05
          %v2943 = vrsqrt.pop %v2942
          %v2944 = vmul.f32 %v2936, %v2943
          %v2946 = vlaneseq
          %v2947 = vshrl.u32 %v2946, 7
          %v2948 = vsub.s32 0, %v2947
          %v2949 = vrot.slane %v2929, %v2948
          %v2951 = vmul.f32 %v2944, %v2949
          %v2953 = vlaneseq
          %v2954 = vshrl.u32 %v2953, 7
          %v2955 = vsub.s32 0, %v2954
          %v2956 = vrot.slane %v2930, %v2955
          %v2958 = vadd.f32 %v2951, %v2956
          %v2959 = vpack.c.bf16 %v2958, %v2958
          %v2960 = vld [vmem:[%s17] sm:$0xf]
          %v2961 = vld [vmem:[%s17 + $0x4] sm:$0xf]
          %v2962 = vld [vmem:[%s17 + $0x8] sm:$0xf]
          %v2963 = vld [vmem:[%s17 + $0xc] sm:$0xf]
          %v2964 = vld [vmem:[%s17 + $0x10] sm:$0xf]
          %v2965 = vld [vmem:[%s17 + $0x14] sm:$0xf]
          %v2966 = vld [vmem:[%s17 + $0x18] sm:$0xf]
          %v2967 = vld [vmem:[%s17 + $0x1c] sm:$0xf]
          %v2968 = vld [vmem:[%s17 + $0x20] sm:$0xf]
          %v2969 = vld [vmem:[%s17 + $0x24] sm:$0xf]
          %v2970 = vld [vmem:[%s17 + $0x28] sm:$0xf]
          %v2971 = vld [vmem:[%s17 + $0x2c] sm:$0xf]
          %v2972 = vld [vmem:[%s17 + $0x30] sm:$0xf]
          %v2973 = vld [vmem:[%s17 + $0x34] sm:$0xf]
          %v2974 = vld [vmem:[%s17 + $0x38] sm:$0xf]
          %v2975 = vld [vmem:[%s17 + $0x3c] sm:$0xf]
          %v2976 = vld [vmem:[#allocation26] sm:$0x1]
          %v2978 = vlaneseq
          %v2979 = vshrl.u32 %v2978, 7
          %v2980 = vsub.s32 0, %v2979
          %v2981 = vrot.slane %v2976, %v2980
          %v2999 = vunpack.c.l.b16 %v2960
          %v3000 = vunpack.c.l.b16 %v2961
          %v3001 = vunpack.c.l.b16 %v2962
          %v3002 = vunpack.c.l.b16 %v2963
          %v3003 = vunpack.c.l.b16 %v2964
          %v3004 = vunpack.c.l.b16 %v2965
          %v3005 = vunpack.c.l.b16 %v2966
          %v3006 = vunpack.c.l.b16 %v2967
          %v3007 = vunpack.c.l.b16 %v2968
          %v3008 = vunpack.c.l.b16 %v2969
          %v3009 = vunpack.c.l.b16 %v2970
          %v3010 = vunpack.c.l.b16 %v2971
          %v3011 = vunpack.c.l.b16 %v2972
          %v3012 = vunpack.c.l.b16 %v2973
          %v3013 = vunpack.c.l.b16 %v2974
          %v3014 = vunpack.c.l.b16 %v2975
          %v3015 = vpack.c.b16 %v3000, %v2999
          %v3016 = vpack.c.b16 %v3002, %v3001
          %v3017 = vpack.c.b16 %v3004, %v3003
          %v3018 = vpack.c.b16 %v3006, %v3005
          %v3019 = vpack.c.b16 %v3008, %v3007
          %v3020 = vpack.c.b16 %v3010, %v3009
          %v3021 = vpack.c.b16 %v3012, %v3011
          %v3022 = vpack.c.b16 %v3014, %v3013
          %3031 = vmatprep.subr.bf16.mxu0 0
          %3032 = vmatpush1.bf16.msra.mxu0 %v3022
          %3033 = vmatprep.subr.bf16.mxu0 0
          %3034 = vmatpush1.bf16.msra.mxu0 %v3021
          %3035 = vmatprep.subr.bf16.mxu0 0
          %3036 = vmatpush1.bf16.msra.mxu0 %v3020
          %3037 = vmatprep.subr.bf16.mxu0 0
          %3038 = vmatpush1.bf16.msra.mxu0 %v3019
          %3039 = vmatprep.subr.bf16.mxu0 0
          %3040 = vmatpush1.bf16.msra.mxu0 %v3018
          %3041 = vmatprep.subr.bf16.mxu0 0
          %3042 = vmatpush1.bf16.msra.mxu0 %v3017
          %3043 = vmatprep.subr.bf16.mxu0 0
          %3044 = vmatpush1.bf16.msra.mxu0 %v3016
          %3045 = vmatprep.subr.bf16.mxu0 0
          %3046 = vmatpush1.bf16.msra.mxu0 %v3015
          %3047 = vmatprep.subr.bf16.mxu0 0
          %3048 = vmatpush2.bf16.msra.mxu0 0
          %3049 = vmatprep.subr.bf16.mxu0 0
          %3050 = vmatpush2.bf16.msra.mxu0 0
          %3051 = vmatprep.subr.bf16.mxu0 0
          %3052 = vmatpush2.bf16.msra.mxu0 0
          %3053 = vmatprep.subr.bf16.mxu0 0
          %3054 = vmatpush2.bf16.msra.mxu0 0
          %3055 = vmatprep.subr.bf16.mxu0 0
          %3056 = vmatpush2.bf16.msra.mxu0 0
          %3057 = vmatprep.subr.bf16.mxu0 0
          %3058 = vmatpush2.bf16.msra.mxu0 0
          %3059 = vmatprep.subr.bf16.mxu0 0
          %3060 = vmatpush2.bf16.msra.mxu0 0
          %3061 = vmatprep.subr.bf16.mxu0 0
          %3062 = vmatpush2.bf16.msra.mxu0 0
          %3063 = vmatprep.mubr.bf16.mxu0 0
          %3064 = vmatmul.mubr.bf16.gmra.mxu0 %v2959
          %v3065 = vpop.f32.mrf.mxu0
          %v3066 = vadd.f32 %v2981, %v3065
          %v3067 = vpop.f32.mrf.mxu0
          %v3068 = vpop.f32.mrf.mxu0
          %v3069 = vpop.f32.mrf.mxu0
          %3070 = vdwg.mxu0
          %v3071 = vmax.f32 %v3066, 0.0
          %v3072 = vpack.c.bf16 %v3071, %v3071
          %v3073 = vld [vmem:[%s19] sm:$0xf]
          %v3074 = vld [vmem:[%s19 + $0x4] sm:$0xf]
          %v3075 = vld [vmem:[%s19 + $0x8] sm:$0xf]
          %v3076 = vld [vmem:[%s19 + $0xc] sm:$0xf]
          %v3077 = vld [vmem:[%s19 + $0x10] sm:$0xf]
          %v3078 = vld [vmem:[%s19 + $0x14] sm:$0xf]
          %v3079 = vld [vmem:[%s19 + $0x18] sm:$0xf]
          %v3080 = vld [vmem:[%s19 + $0x1c] sm:$0xf]
          %v3081 = vld [vmem:[%s19 + $0x20] sm:$0xf]
          %v3082 = vld [vmem:[%s19 + $0x24] sm:$0xf]
          %v3083 = vld [vmem:[%s19 + $0x28] sm:$0xf]
          %v3084 = vld [vmem:[%s19 + $0x2c] sm:$0xf]
          %v3085 = vld [vmem:[%s19 + $0x30] sm:$0xf]
          %v3086 = vld [vmem:[%s19 + $0x34] sm:$0xf]
          %v3087 = vld [vmem:[%s19 + $0x38] sm:$0xf]
          %v3088 = vld [vmem:[%s19 + $0x3c] sm:$0xf]
          %v3089 = vld [vmem:[%s20] sm:$0x1]
          %v3091 = vlaneseq
          %v3092 = vshrl.u32 %v3091, 7
          %v3093 = vsub.s32 0, %v3092
          %v3094 = vrot.slane %v3089, %v3093
          %v3112 = vunpack.c.l.b16 %v3073
          %v3113 = vunpack.c.l.b16 %v3074
          %v3114 = vunpack.c.l.b16 %v3075
          %v3115 = vunpack.c.l.b16 %v3076
          %v3116 = vunpack.c.l.b16 %v3077
          %v3117 = vunpack.c.l.b16 %v3078
          %v3118 = vunpack.c.l.b16 %v3079
          %v3119 = vunpack.c.l.b16 %v3080
          %v3120 = vunpack.c.l.b16 %v3081
          %v3121 = vunpack.c.l.b16 %v3082
          %v3122 = vunpack.c.l.b16 %v3083
          %v3123 = vunpack.c.l.b16 %v3084
          %v3124 = vunpack.c.l.b16 %v3085
          %v3125 = vunpack.c.l.b16 %v3086
          %v3126 = vunpack.c.l.b16 %v3087
          %v3127 = vunpack.c.l.b16 %v3088
          %v3128 = vpack.c.b16 %v3113, %v3112
          %v3129 = vpack.c.b16 %v3115, %v3114
          %v3130 = vpack.c.b16 %v3117, %v3116
          %v3131 = vpack.c.b16 %v3119, %v3118
          %v3132 = vpack.c.b16 %v3121, %v3120
          %v3133 = vpack.c.b16 %v3123, %v3122
          %v3134 = vpack.c.b16 %v3125, %v3124
          %v3135 = vpack.c.b16 %v3127, %v3126
          %3144 = vmatprep.subr.bf16.mxu0 0
          %3145 = vmatpush1.bf16.msra.mxu0 %v3135
          %3146 = vmatprep.subr.bf16.mxu0 0
          %3147 = vmatpush1.bf16.msra.mxu0 %v3134
          %3148 = vmatprep.subr.bf16.mxu0 0
          %3149 = vmatpush1.bf16.msra.mxu0 %v3133
          %3150 = vmatprep.subr.bf16.mxu0 0
          %3151 = vmatpush1.bf16.msra.mxu0 %v3132
          %3152 = vmatprep.subr.bf16.mxu0 0
          %3153 = vmatpush1.bf16.msra.mxu0 %v3131
          %3154 = vmatprep.subr.bf16.mxu0 0
          %3155 = vmatpush1.bf16.msra.mxu0 %v3130
          %3156 = vmatprep.subr.bf16.mxu0 0
          %3157 = vmatpush1.bf16.msra.mxu0 %v3129
          %3158 = vmatprep.subr.bf16.mxu0 0
          %3159 = vmatpush1.bf16.msra.mxu0 %v3128
          %3160 = vmatprep.subr.bf16.mxu0 0
          %3161 = vmatpush2.bf16.msra.mxu0 0
          %3162 = vmatprep.subr.bf16.mxu0 0
          %3163 = vmatpush2.bf16.msra.mxu0 0
          %3164 = vmatprep.subr.bf16.mxu0 0
          %3165 = vmatpush2.bf16.msra.mxu0 0
          %3166 = vmatprep.subr.bf16.mxu0 0
          %3167 = vmatpush2.bf16.msra.mxu0 0
          %3168 = vmatprep.subr.bf16.mxu0 0
          %3169 = vmatpush2.bf16.msra.mxu0 0
          %3170 = vmatprep.subr.bf16.mxu0 0
          %3171 = vmatpush2.bf16.msra.mxu0 0
          %3172 = vmatprep.subr.bf16.mxu0 0
          %3173 = vmatpush2.bf16.msra.mxu0 0
          %3174 = vmatprep.subr.bf16.mxu0 0
          %3175 = vmatpush2.bf16.msra.mxu0 0
          %3176 = vmatprep.mubr.bf16.mxu0 0
          %3177 = vmatmul.mubr.bf16.gmra.mxu0 %v3072
          %v3178 = vpop.f32.mrf.mxu0
          %v3179 = vadd.f32 %v3094, %v3178
          %v3180 = vpop.f32.mrf.mxu0
          %v3181 = vpop.f32.mrf.mxu0
          %v3182 = vpop.f32.mrf.mxu0
          %3183 = vdwg.mxu0
          %vm3184 = vcmask 41984
          %3185 = vst.msk [vmem:[#allocation27] sm:$0x3] %vm3184, %v3179
        $region172: #{tpu_custom_call.1} parent=103 // pred_fallthru
          _
        // Predicated region
        $region173: #{tpu_custom_call.1} parent=103 // pred_check
          %p3186 = pneg %p567
        $region174: #{tpu_custom_call.1} parent=103 // pred_check_branch
          %3188 = sbr.rel (%p3186) target = $region176
        $region175: #{tpu_custom_call.1} parent=103 // pred_region
          %s3190 = ssub.s32 32, 32
          %3191 = vsyncadd [#allocation5], %s3190
          %s3193 = sshll.u32 [#allocation27], 4
          %s3194 = int_to_ptr.vmem [resolvable:$true] %s3193
          %3196 = dma.vmem_to_hbm [thread:$0]  %s3194, 32, %s21, [#allocation5]
        $region176: #{tpu_custom_call.1} parent=103 // pred_fallthru
          _
        // Predicated region
        $region177: #{tpu_custom_call.1} parent=103 // pred_check
          %p3197 = pneg %p567
        $region178: #{tpu_custom_call.1} parent=103 // pred_check_branch
          %3199 = sbr.rel (%p3197) target = $region180
        $region179: #{tpu_custom_call.1} parent=103 // pred_region
          %3200 = dma.done [#allocation5], 32
        $region180: #{tpu_custom_call.1} parent=103 // pred_fallthru
          _
      $region104: #{tpu_custom_call.1} parent=5 // pred_fallthru
        _
      %p3201 = scmp.le.s32.totalorder 2, %s48
      // Predicated region
      $region181: #{tpu_custom_call.1} parent=5 // pred_check
        %p3202 = pneg %p3201
      $region182: #{tpu_custom_call.1} parent=5 // pred_check_branch
        %3204 = sbr.rel (%p3202) target = $region184
      $region183: #{tpu_custom_call.1} parent=5 // pred_region
        %s3205 = ssub.s32 %s48, 2
      $region184: #{tpu_custom_call.1} parent=5 // pred_fallthru
        _
    $region6: #{tpu_custom_call.1} parent=1 // loop_footer
      %s52 = sadd.s32 1, %s48
    $region7: #{tpu_custom_call.1} parent=1 // loop_footer_branch
      %47 = sbr.rel target = $region3
    $region8: #{tpu_custom_call.1} parent=1 // loop_exit
      _
    %3206 = vsyncpa [#allocation4], 1
    %s3207 = scalar_lea.sflag [#allocation4], 1
    %3208 = vsyncpa %s3207, 1
    %3209 = vsyncpa [#allocation7], 1
    %s3210 = scalar_lea.sflag [#allocation7], 1
    %3211 = vsyncpa %s3210, 1
    %3212 = vsyncpa [#allocation10], 1
    %s3213 = scalar_lea.sflag [#allocation10], 1
    %3214 = vsyncpa %s3213, 1
    %3215 = vsyncpa [#allocation13], 1
    %s3216 = scalar_lea.sflag [#allocation13], 1
    %3217 = vsyncpa %s3216, 1
    %3218 = vsyncpa [#allocation16], 1
    %s3219 = scalar_lea.sflag [#allocation16], 1
    %3220 = vsyncpa %s3219, 1
    %3221 = vsyncpa [#allocation19], 1
    %s3222 = scalar_lea.sflag [#allocation19], 1
    %3223 = vsyncpa %s3222, 1
    %3224 = vsyncpa [#allocation22], 1
    %s3225 = scalar_lea.sflag [#allocation22], 1
    %3226 = vsyncpa %s3225, 1
    %3227 = vsyncpa [#allocation25], 1
    %3228 = vsyncpa [#allocation5], 1
    %s3229 = scalar_lea.sflag [#allocation5], 1
    %3230 = vsyncpa %s3229, 1

</llo_original>
